<compile_context>
chip_gen: v7x
topology: tpu7x:2x2x1
jax: 0.10.0
libtpu: 0.0.40
codegen_flags: <defaults>
</compile_context>

<pallas_src>
import jax
import jax.numpy as jnp
from jax.experimental import pallas as pl
from jax.experimental.pallas import tpu as pltpu

LANE = 128


def _pad_to_lane(n):
    return max(LANE, ((n + LANE - 1) // LANE) * LANE)


def _pad_block(w, rows_p, cols_p):
    return jnp.pad(w, ((0, rows_p - w.shape[0]), (0, cols_p - w.shape[1])))


def encoder_kernel(x_ref, wih1_ref, b_ref, wbig_ref, out_ref):
    P = wbig_ref.shape[0]          # HP + EP (padded hidden + padded embedding)
    EP = out_ref.shape[1]          # padded embedding width
    HP = P - EP                    # padded hidden width
    n_steps = x_ref.shape[0] - 1   # x carries one trailing dummy entry

    wih1 = wih1_ref[...]           # (1, 4P) f32, gate-interleaved, layer-2 cols = 0
    bias = b_ref[...]              # (1, 4P) f32, gate-interleaved b1|b2
    wbig = wbig_ref[...]           # (P, 4P) bf16 fused recurrent weights

    sig = jax.nn.sigmoid

    # ---- Prologue: layer-1 cell at t = 0 (h1(-1) = c1(-1) = 0, so no matmul
    # and the forget gate is irrelevant).  Uses the layer-1 column groups of
    # the interleaved input/bias vectors (128-aligned static slices).
    x0 = x_ref[0]

    def l1_cols(k):
        return x0 * wih1[:, k * P:k * P + HP] + bias[:, k * P:k * P + HP]

    i1 = sig(l1_cols(0))
    g1 = jnp.tanh(l1_cols(2))
    o1 = sig(l1_cols(3))
    c1 = i1 * g1
    h1 = o1 * jnp.tanh(c1)

    zero2 = jnp.zeros((1, EP), jnp.float32)
    h12 = jnp.concatenate([h1, zero2], axis=1)     # [h1(0) | h2(-1) = 0]
    c12 = jnp.concatenate([c1, zero2], axis=1)     # [c1(0) | c2(-1) = 0]

    # ---- Fused recurrence: one bf16 MXU matmul per step produces the gates of
    # layer-2(t) AND layer-1(t+1); one double-width elementwise update advances
    # the combined state.  The last iteration consumes the dummy x entry; its
    # layer-1 half is simply discarded.
    for t in range(n_steps):
        g = (jnp.dot(h12.astype(wbig.dtype), wbig,
                     preferred_element_type=jnp.float32)
             + x_ref[t + 1] * wih1 + bias)
        i = sig(g[:, 0 * P:1 * P])
        f = sig(g[:, 1 * P:2 * P])
        gg = jnp.tanh(g[:, 2 * P:3 * P])
        o = sig(g[:, 3 * P:4 * P])
        c12 = f * c12 + i * gg
        h12 = o * jnp.tanh(c12)

    # h12 = [h1(T) (unused) | h2(T-1)] -> lane-dense single store of rnn2's
    # final hidden state.
    out_ref[...] = h12[:, HP:HP + EP].astype(out_ref.dtype)


def _pack_fused(params, hidden_dim, embedding_dim, HP, EP):
    """Pack logical (pre-transposed, PyTorch gate order) weights into the fused,
    gate-interleaved, zero-padded kernel layout."""
    wih1, whh1, b1, wih2, whh2, b2 = params
    P = HP + EP

    wbig_cols, wih1_cols, b_cols = [], [], []
    for k in range(4):
        w1k = whh1[:, k * hidden_dim:(k + 1) * hidden_dim]          # h1 -> layer-1 gate k
        w12k = wih2[:, k * embedding_dim:(k + 1) * embedding_dim]    # h1 -> layer-2 gate k
        w2k = whh2[:, k * embedding_dim:(k + 1) * embedding_dim]     # h2 -> layer-2 gate k

        top = jnp.concatenate([_pad_block(w1k, HP, HP),
                               _pad_block(w12k, HP, EP)], axis=1)    # (HP, P)
        bot = jnp.concatenate([jnp.zeros((EP, HP), jnp.float32),
                               _pad_block(w2k, EP, EP)], axis=1)     # (EP, P)
        wbig_cols.append(jnp.concatenate([top, bot], axis=0))        # (P, P)

        wih1_cols.append(jnp.concatenate(
            [_pad_block(wih1[:, k * hidden_dim:(k + 1) * hidden_dim], 1, HP),
             jnp.zeros((1, EP), jnp.float32)], axis=1))              # (1, P)
        b_cols.append(jnp.concatenate(
            [_pad_block(b1[:, k * hidden_dim:(k + 1) * hidden_dim], 1, HP),
             _pad_block(b2[:, k * embedding_dim:(k + 1) * embedding_dim], 1, EP)],
            axis=1))                                                 # (1, P)

    wbig = jnp.concatenate(wbig_cols, axis=1).astype(jnp.bfloat16)   # (P, 4P) bf16
    wih1_inter = jnp.concatenate(wih1_cols, axis=1)                  # (1, 4P) f32
    b_inter = jnp.concatenate(b_cols, axis=1)                        # (1, 4P) f32
    return wbig, wih1_inter, b_inter


def encoder_forward(x, params, *, seq_len, n_features, embedding_dim):
    assert n_features == 1, \
        "hidden_n.reshape((n_features, embedding_dim)) requires n_features == 1"
    hidden_dim = 2 * embedding_dim
    HP = _pad_to_lane(hidden_dim)
    EP = _pad_to_lane(embedding_dim)
    P = HP + EP

    wbig, wih1_inter, b_inter = _pack_fused(params, hidden_dim, embedding_dim, HP, EP)

    # Input scalars go to SMEM; one trailing dummy entry feeds the discarded
    # layer-1 half of the last fused iteration.
    x_s = jnp.concatenate([x.reshape((seq_len,)).astype(jnp.float32),
                           jnp.zeros((1,), jnp.float32)])

    def full(shape):
        return pl.BlockSpec(shape, lambda i: (0,) * len(shape))

    out = pl.pallas_call(
        encoder_kernel,
        out_shape=jax.ShapeDtypeStruct((1, EP), jnp.float32),
        grid=(1,),                                    # whole recurrence in one program
        in_specs=[
            pl.BlockSpec(memory_space=pltpu.MemorySpace.SMEM),   # x scalars
            full((1, 4 * P)),                                    # interleaved W_ih layer 1
            full((1, 4 * P)),                                    # interleaved bias (b1|b2)
            full((P, 4 * P)),                                    # fused recurrent weights (bf16)
        ],
        out_specs=full((1, EP)),
        compiler_params=pltpu.CompilerParams(
            dimension_semantics=("arbitrary",)),
    )(x_s, wih1_inter, b_inter, wbig)

    # hidden_n.reshape((n_features, embedding_dim))  (n_features == 1)
    return out[:, :embedding_dim].reshape((n_features, embedding_dim))


def init_encoder_params(key, n_features, embedding_dim):
    """Deterministic init mimicking nn.LSTM's U(-1/sqrt(H), 1/sqrt(H)).
    Returns logical (unpadded) weights, pre-transposed to (in_dim, 4*hidden);
    biases are the sum b_ih + b_hh."""
    hidden_dim = 2 * embedding_dim

    def uni(k, shape, bound):
        return jax.random.uniform(k, shape, jnp.float32, -bound, bound)

    ks = jax.random.split(key, 8)
    b1 = 1.0 / jnp.sqrt(hidden_dim)
    b2 = 1.0 / jnp.sqrt(embedding_dim)
    wih1 = uni(ks[0], (n_features, 4 * hidden_dim), b1)
    whh1 = uni(ks[1], (hidden_dim, 4 * hidden_dim), b1)
    bias1 = uni(ks[2], (1, 4 * hidden_dim), b1) + uni(ks[3], (1, 4 * hidden_dim), b1)
    wih2 = uni(ks[4], (hidden_dim, 4 * embedding_dim), b2)
    whh2 = uni(ks[5], (embedding_dim, 4 * embedding_dim), b2)
    bias2 = uni(ks[6], (1, 4 * embedding_dim), b2) + uni(ks[7], (1, 4 * embedding_dim), b2)
    return (wih1, whh1, bias1, wih2, whh2, bias2)


def encoder_reference(x, params, *, seq_len, n_features, embedding_dim):
    """Pure-JAX reference (lax.scan) with identical PyTorch LSTM semantics."""
    hidden_dim = 2 * embedding_dim
    wih1, whh1, b1, wih2, whh2, b2 = params

    def cell(x_t, h, c, w_ih, w_hh, b, hidden):
        g = x_t @ w_ih + h @ w_hh + b
        i = jax.nn.sigmoid(g[:, 0 * hidden:1 * hidden])
        f = jax.nn.sigmoid(g[:, 1 * hidden:2 * hidden])
        gg = jnp.tanh(g[:, 2 * hidden:3 * hidden])
        o = jax.nn.sigmoid(g[:, 3 * hidden:4 * hidden])
        c_new = f * c + i * gg
        return o * jnp.tanh(c_new), c_new

    def step(carry, x_t):
        h1, c1, h2, c2 = carry
        h1, c1 = cell(x_t[None, :], h1, c1, wih1, whh1, b1, hidden_dim)
        h2, c2 = cell(h1, h2, c2, wih2, whh2, b2, embedding_dim)
        return (h1, c1, h2, c2), None

    init = (jnp.zeros((1, hidden_dim), jnp.float32),
            jnp.zeros((1, hidden_dim), jnp.float32),
            jnp.zeros((1, embedding_dim), jnp.float32),
            jnp.zeros((1, embedding_dim), jnp.float32))
    (h1, c1, h2, c2), _ = jax.lax.scan(step, init, x)
    return h2.reshape((n_features, embedding_dim))


if __name__ == "__main__":
    seq_len = 8
    n_features = 1            # forced by hidden_n.reshape((n_features, embedding_dim))
    embedding_dim = 32

    key = jax.random.PRNGKey(0)
    k_params, k_x = jax.random.split(key)
    params = init_encoder_params(k_params, n_features, embedding_dim)
    x = jax.random.normal(k_x, (seq_len, n_features), jnp.float32)

    out = encoder_forward(x, params, seq_len=seq_len,
                          n_features=n_features, embedding_dim=embedding_dim)
    out = jax.block_until_ready(out)

    ref = encoder_reference(x, params, seq_len=seq_len,
                            n_features=n_features, embedding_dim=embedding_dim)
    assert out.shape == (n_features, embedding_dim)
    # Tolerance slightly above f32: the recurrent matmul feeds bf16 operands to
    # the MXU (f32 accumulate), per the perf review; observed error is well
    # inside this bound.
    assert jnp.allclose(out, ref, rtol=2e-3, atol=2e-3), "mismatch vs pure-JAX reference"

    print("KERNEL_OK")
</pallas_src>

<mosaic_0001>
module attributes {stable_mosaic.version = 11 : i64} {
  func.func @encoder_kernel(%arg0: i32, %arg1: memref<9xf32, #tpu.memory_space<smem>>, %arg2: memref<1x1024xf32, #tpu.memory_space<vmem>>, %arg3: memref<1x1024xf32, #tpu.memory_space<vmem>>, %arg4: memref<256x1024xbf16, #tpu.memory_space<vmem>>, %arg5: memref<1x128xf32, #tpu.memory_space<vmem>>) attributes {dimension_semantics = [#tpu.dimension_semantics<arbitrary>], iteration_bounds = array<i64: 1>, scalar_prefetch = 0 : i64, scratch_operands = 0 : i64, tpu.core_type = #tpu.core_type<tc>, window_params = [{transform_indices = @transform_0, window_bounds = array<i64: 9>}, {pipeline_mode = #tpu.pipeline_mode<synchronous>, transform_indices = @transform_1, window_bounds = array<i64: 1, 1024>}, {pipeline_mode = #tpu.pipeline_mode<synchronous>, transform_indices = @transform_2, window_bounds = array<i64: 1, 1024>}, {pipeline_mode = #tpu.pipeline_mode<synchronous>, transform_indices = @transform_3, window_bounds = array<i64: 256, 1024>}, {pipeline_mode = #tpu.pipeline_mode<synchronous>, transform_indices = @transform_4, window_bounds = array<i64: 1, 128>}]} {
    %c0 = arith.constant 0 : index
    %c0_0 = arith.constant 0 : index
    %0 = vector.load %arg2[%c0, %c0_0] : memref<1x1024xf32, #tpu.memory_space<vmem>>, vector<1x1024xf32>
    %c0_1 = arith.constant 0 : index
    %c0_2 = arith.constant 0 : index
    %1 = vector.load %arg3[%c0_1, %c0_2] : memref<1x1024xf32, #tpu.memory_space<vmem>>, vector<1x1024xf32>
    %c0_3 = arith.constant 0 : index
    %c0_4 = arith.constant 0 : index
    %2 = vector.load %arg4[%c0_3, %c0_4] : memref<256x1024xbf16, #tpu.memory_space<vmem>>, vector<256x1024xbf16>
    %c0_5 = arith.constant 0 : index
    %3 = memref.load %arg1[%c0_5] : memref<9xf32, #tpu.memory_space<smem>>
    %4 = vector.extract_strided_slice %0 {offsets = [0, 0], sizes = [1, 128], strides = [1, 1]} : vector<1x1024xf32> to vector<1x128xf32>
    %5 = vector.broadcast %3 : f32 to vector<1x128xf32>
    %6 = arith.mulf %5, %4 : vector<1x128xf32>
    %7 = vector.extract_strided_slice %1 {offsets = [0, 0], sizes = [1, 128], strides = [1, 1]} : vector<1x1024xf32> to vector<1x128xf32>
    %8 = arith.addf %6, %7 : vector<1x128xf32>
    %9 = arith.negf %8 : vector<1x128xf32>
    %10 = math.exp %9 : vector<1x128xf32>
    %cst = arith.constant 1.000000e+00 : f32
    %11 = vector.broadcast %cst : f32 to vector<1x128xf32>
    %12 = arith.addf %11, %10 : vector<1x128xf32>
    %13 = arith.divf %11, %12 : vector<1x128xf32>
    %14 = vector.extract_strided_slice %0 {offsets = [0, 512], sizes = [1, 128], strides = [1, 1]} : vector<1x1024xf32> to vector<1x128xf32>
    %15 = vector.broadcast %3 : f32 to vector<1x128xf32>
    %16 = arith.mulf %15, %14 : vector<1x128xf32>
    %17 = vector.extract_strided_slice %1 {offsets = [0, 512], sizes = [1, 128], strides = [1, 1]} : vector<1x1024xf32> to vector<1x128xf32>
    %18 = arith.addf %16, %17 : vector<1x128xf32>
    %19 = math.tanh %18 : vector<1x128xf32>
    %20 = vector.extract_strided_slice %0 {offsets = [0, 768], sizes = [1, 128], strides = [1, 1]} : vector<1x1024xf32> to vector<1x128xf32>
    %21 = vector.broadcast %3 : f32 to vector<1x128xf32>
    %22 = arith.mulf %21, %20 : vector<1x128xf32>
    %23 = vector.extract_strided_slice %1 {offsets = [0, 768], sizes = [1, 128], strides = [1, 1]} : vector<1x1024xf32> to vector<1x128xf32>
    %24 = arith.addf %22, %23 : vector<1x128xf32>
    %25 = arith.negf %24 : vector<1x128xf32>
    %26 = math.exp %25 : vector<1x128xf32>
    %cst_6 = arith.constant 1.000000e+00 : f32
    %27 = vector.broadcast %cst_6 : f32 to vector<1x128xf32>
    %28 = arith.addf %27, %26 : vector<1x128xf32>
    %29 = arith.divf %27, %28 : vector<1x128xf32>
    %30 = arith.mulf %13, %19 : vector<1x128xf32>
    %31 = math.tanh %30 : vector<1x128xf32>
    %32 = arith.mulf %29, %31 : vector<1x128xf32>
    %cst_7 = arith.constant 0.000000e+00 : f32
    %33 = vector.broadcast %cst_7 : f32 to vector<1x128xf32>
    %34 = tpu.concatenate %32, %33 in 1 : vector<1x128xf32>, vector<1x128xf32> -> vector<1x256xf32>
    %35 = tpu.concatenate %30, %33 in 1 : vector<1x128xf32>, vector<1x128xf32> -> vector<1x256xf32>
    %36 = arith.truncf %34 : vector<1x256xf32> to vector<1x256xbf16>
    %cst_8 = arith.constant dense<0.000000e+00> : vector<1x1024xf32>
    %37 = tpu.matmul %36, %2, %cst_8 {dimension_numbers = #tpu.dot_dimension_numbers<[1], [0], [0], [1], [0, 0, 1, 1], [], []>} : vector<1x256xbf16>, vector<256x1024xbf16>, vector<1x1024xf32> -> vector<1x1024xf32>
    %c1 = arith.constant 1 : index
    %38 = memref.load %arg1[%c1] : memref<9xf32, #tpu.memory_space<smem>>
    %39 = vector.broadcast %38 : f32 to vector<1x1024xf32>
    %40 = arith.mulf %39, %0 : vector<1x1024xf32>
    %41 = arith.addf %37, %40 : vector<1x1024xf32>
    %42 = arith.addf %41, %1 : vector<1x1024xf32>
    %43 = vector.extract_strided_slice %42 {offsets = [0, 0], sizes = [1, 256], strides = [1, 1]} : vector<1x1024xf32> to vector<1x256xf32>
    %44 = arith.negf %43 : vector<1x256xf32>
    %45 = math.exp %44 : vector<1x256xf32>
    %cst_9 = arith.constant 1.000000e+00 : f32
    %46 = vector.broadcast %cst_9 : f32 to vector<1x256xf32>
    %47 = arith.addf %46, %45 : vector<1x256xf32>
    %48 = arith.divf %46, %47 : vector<1x256xf32>
    %49 = vector.extract_strided_slice %42 {offsets = [0, 256], sizes = [1, 256], strides = [1, 1]} : vector<1x1024xf32> to vector<1x256xf32>
    %50 = arith.negf %49 : vector<1x256xf32>
    %51 = math.exp %50 : vector<1x256xf32>
    %cst_10 = arith.constant 1.000000e+00 : f32
    %52 = vector.broadcast %cst_10 : f32 to vector<1x256xf32>
    %53 = arith.addf %52, %51 : vector<1x256xf32>
    %54 = arith.divf %52, %53 : vector<1x256xf32>
    %55 = vector.extract_strided_slice %42 {offsets = [0, 512], sizes = [1, 256], strides = [1, 1]} : vector<1x1024xf32> to vector<1x256xf32>
    %56 = math.tanh %55 : vector<1x256xf32>
    %57 = vector.extract_strided_slice %42 {offsets = [0, 768], sizes = [1, 256], strides = [1, 1]} : vector<1x1024xf32> to vector<1x256xf32>
    %58 = arith.negf %57 : vector<1x256xf32>
    %59 = math.exp %58 : vector<1x256xf32>
    %cst_11 = arith.constant 1.000000e+00 : f32
    %60 = vector.broadcast %cst_11 : f32 to vector<1x256xf32>
    %61 = arith.addf %60, %59 : vector<1x256xf32>
    %62 = arith.divf %60, %61 : vector<1x256xf32>
    %63 = arith.mulf %54, %35 : vector<1x256xf32>
    %64 = arith.mulf %48, %56 : vector<1x256xf32>
    %65 = arith.addf %63, %64 : vector<1x256xf32>
    %66 = math.tanh %65 : vector<1x256xf32>
    %67 = arith.mulf %62, %66 : vector<1x256xf32>
    %68 = arith.truncf %67 : vector<1x256xf32> to vector<1x256xbf16>
    %cst_12 = arith.constant dense<0.000000e+00> : vector<1x1024xf32>
    %69 = tpu.matmul %68, %2, %cst_12 {dimension_numbers = #tpu.dot_dimension_numbers<[1], [0], [0], [1], [0, 0, 1, 1], [], []>} : vector<1x256xbf16>, vector<256x1024xbf16>, vector<1x1024xf32> -> vector<1x1024xf32>
    %c2 = arith.constant 2 : index
    %70 = memref.load %arg1[%c2] : memref<9xf32, #tpu.memory_space<smem>>
    %71 = vector.broadcast %70 : f32 to vector<1x1024xf32>
    %72 = arith.mulf %71, %0 : vector<1x1024xf32>
    %73 = arith.addf %69, %72 : vector<1x1024xf32>
    %74 = arith.addf %73, %1 : vector<1x1024xf32>
    %75 = vector.extract_strided_slice %74 {offsets = [0, 0], sizes = [1, 256], strides = [1, 1]} : vector<1x1024xf32> to vector<1x256xf32>
    %76 = arith.negf %75 : vector<1x256xf32>
    %77 = math.exp %76 : vector<1x256xf32>
    %cst_13 = arith.constant 1.000000e+00 : f32
    %78 = vector.broadcast %cst_13 : f32 to vector<1x256xf32>
    %79 = arith.addf %78, %77 : vector<1x256xf32>
    %80 = arith.divf %78, %79 : vector<1x256xf32>
    %81 = vector.extract_strided_slice %74 {offsets = [0, 256], sizes = [1, 256], strides = [1, 1]} : vector<1x1024xf32> to vector<1x256xf32>
    %82 = arith.negf %81 : vector<1x256xf32>
    %83 = math.exp %82 : vector<1x256xf32>
    %cst_14 = arith.constant 1.000000e+00 : f32
    %84 = vector.broadcast %cst_14 : f32 to vector<1x256xf32>
    %85 = arith.addf %84, %83 : vector<1x256xf32>
    %86 = arith.divf %84, %85 : vector<1x256xf32>
    %87 = vector.extract_strided_slice %74 {offsets = [0, 512], sizes = [1, 256], strides = [1, 1]} : vector<1x1024xf32> to vector<1x256xf32>
    %88 = math.tanh %87 : vector<1x256xf32>
    %89 = vector.extract_strided_slice %74 {offsets = [0, 768], sizes = [1, 256], strides = [1, 1]} : vector<1x1024xf32> to vector<1x256xf32>
    %90 = arith.negf %89 : vector<1x256xf32>
    %91 = math.exp %90 : vector<1x256xf32>
    %cst_15 = arith.constant 1.000000e+00 : f32
    %92 = vector.broadcast %cst_15 : f32 to vector<1x256xf32>
    %93 = arith.addf %92, %91 : vector<1x256xf32>
    %94 = arith.divf %92, %93 : vector<1x256xf32>
    %95 = arith.mulf %86, %65 : vector<1x256xf32>
    %96 = arith.mulf %80, %88 : vector<1x256xf32>
    %97 = arith.addf %95, %96 : vector<1x256xf32>
    %98 = math.tanh %97 : vector<1x256xf32>
    %99 = arith.mulf %94, %98 : vector<1x256xf32>
    %100 = arith.truncf %99 : vector<1x256xf32> to vector<1x256xbf16>
    %cst_16 = arith.constant dense<0.000000e+00> : vector<1x1024xf32>
    %101 = tpu.matmul %100, %2, %cst_16 {dimension_numbers = #tpu.dot_dimension_numbers<[1], [0], [0], [1], [0, 0, 1, 1], [], []>} : vector<1x256xbf16>, vector<256x1024xbf16>, vector<1x1024xf32> -> vector<1x1024xf32>
    %c3 = arith.constant 3 : index
    %102 = memref.load %arg1[%c3] : memref<9xf32, #tpu.memory_space<smem>>
    %103 = vector.broadcast %102 : f32 to vector<1x1024xf32>
    %104 = arith.mulf %103, %0 : vector<1x1024xf32>
    %105 = arith.addf %101, %104 : vector<1x1024xf32>
    %106 = arith.addf %105, %1 : vector<1x1024xf32>
    %107 = vector.extract_strided_slice %106 {offsets = [0, 0], sizes = [1, 256], strides = [1, 1]} : vector<1x1024xf32> to vector<1x256xf32>
    %108 = arith.negf %107 : vector<1x256xf32>
    %109 = math.exp %108 : vector<1x256xf32>
    %cst_17 = arith.constant 1.000000e+00 : f32
    %110 = vector.broadcast %cst_17 : f32 to vector<1x256xf32>
    %111 = arith.addf %110, %109 : vector<1x256xf32>
    %112 = arith.divf %110, %111 : vector<1x256xf32>
    %113 = vector.extract_strided_slice %106 {offsets = [0, 256], sizes = [1, 256], strides = [1, 1]} : vector<1x1024xf32> to vector<1x256xf32>
    %114 = arith.negf %113 : vector<1x256xf32>
    %115 = math.exp %114 : vector<1x256xf32>
    %cst_18 = arith.constant 1.000000e+00 : f32
    %116 = vector.broadcast %cst_18 : f32 to vector<1x256xf32>
    %117 = arith.addf %116, %115 : vector<1x256xf32>
    %118 = arith.divf %116, %117 : vector<1x256xf32>
    %119 = vector.extract_strided_slice %106 {offsets = [0, 512], sizes = [1, 256], strides = [1, 1]} : vector<1x1024xf32> to vector<1x256xf32>
    %120 = math.tanh %119 : vector<1x256xf32>
    %121 = vector.extract_strided_slice %106 {offsets = [0, 768], sizes = [1, 256], strides = [1, 1]} : vector<1x1024xf32> to vector<1x256xf32>
    %122 = arith.negf %121 : vector<1x256xf32>
    %123 = math.exp %122 : vector<1x256xf32>
    %cst_19 = arith.constant 1.000000e+00 : f32
    %124 = vector.broadcast %cst_19 : f32 to vector<1x256xf32>
    %125 = arith.addf %124, %123 : vector<1x256xf32>
    %126 = arith.divf %124, %125 : vector<1x256xf32>
    %127 = arith.mulf %118, %97 : vector<1x256xf32>
    %128 = arith.mulf %112, %120 : vector<1x256xf32>
    %129 = arith.addf %127, %128 : vector<1x256xf32>
    %130 = math.tanh %129 : vector<1x256xf32>
    %131 = arith.mulf %126, %130 : vector<1x256xf32>
    %132 = arith.truncf %131 : vector<1x256xf32> to vector<1x256xbf16>
    %cst_20 = arith.constant dense<0.000000e+00> : vector<1x1024xf32>
    %133 = tpu.matmul %132, %2, %cst_20 {dimension_numbers = #tpu.dot_dimension_numbers<[1], [0], [0], [1], [0, 0, 1, 1], [], []>} : vector<1x256xbf16>, vector<256x1024xbf16>, vector<1x1024xf32> -> vector<1x1024xf32>
    %c4 = arith.constant 4 : index
    %134 = memref.load %arg1[%c4] : memref<9xf32, #tpu.memory_space<smem>>
    %135 = vector.broadcast %134 : f32 to vector<1x1024xf32>
    %136 = arith.mulf %135, %0 : vector<1x1024xf32>
    %137 = arith.addf %133, %136 : vector<1x1024xf32>
    %138 = arith.addf %137, %1 : vector<1x1024xf32>
    %139 = vector.extract_strided_slice %138 {offsets = [0, 0], sizes = [1, 256], strides = [1, 1]} : vector<1x1024xf32> to vector<1x256xf32>
    %140 = arith.negf %139 : vector<1x256xf32>
    %141 = math.exp %140 : vector<1x256xf32>
    %cst_21 = arith.constant 1.000000e+00 : f32
    %142 = vector.broadcast %cst_21 : f32 to vector<1x256xf32>
    %143 = arith.addf %142, %141 : vector<1x256xf32>
    %144 = arith.divf %142, %143 : vector<1x256xf32>
    %145 = vector.extract_strided_slice %138 {offsets = [0, 256], sizes = [1, 256], strides = [1, 1]} : vector<1x1024xf32> to vector<1x256xf32>
    %146 = arith.negf %145 : vector<1x256xf32>
    %147 = math.exp %146 : vector<1x256xf32>
    %cst_22 = arith.constant 1.000000e+00 : f32
    %148 = vector.broadcast %cst_22 : f32 to vector<1x256xf32>
    %149 = arith.addf %148, %147 : vector<1x256xf32>
    %150 = arith.divf %148, %149 : vector<1x256xf32>
    %151 = vector.extract_strided_slice %138 {offsets = [0, 512], sizes = [1, 256], strides = [1, 1]} : vector<1x1024xf32> to vector<1x256xf32>
    %152 = math.tanh %151 : vector<1x256xf32>
    %153 = vector.extract_strided_slice %138 {offsets = [0, 768], sizes = [1, 256], strides = [1, 1]} : vector<1x1024xf32> to vector<1x256xf32>
    %154 = arith.negf %153 : vector<1x256xf32>
    %155 = math.exp %154 : vector<1x256xf32>
    %cst_23 = arith.constant 1.000000e+00 : f32
    %156 = vector.broadcast %cst_23 : f32 to vector<1x256xf32>
    %157 = arith.addf %156, %155 : vector<1x256xf32>
    %158 = arith.divf %156, %157 : vector<1x256xf32>
    %159 = arith.mulf %150, %129 : vector<1x256xf32>
    %160 = arith.mulf %144, %152 : vector<1x256xf32>
    %161 = arith.addf %159, %160 : vector<1x256xf32>
    %162 = math.tanh %161 : vector<1x256xf32>
    %163 = arith.mulf %158, %162 : vector<1x256xf32>
    %164 = arith.truncf %163 : vector<1x256xf32> to vector<1x256xbf16>
    %cst_24 = arith.constant dense<0.000000e+00> : vector<1x1024xf32>
    %165 = tpu.matmul %164, %2, %cst_24 {dimension_numbers = #tpu.dot_dimension_numbers<[1], [0], [0], [1], [0, 0, 1, 1], [], []>} : vector<1x256xbf16>, vector<256x1024xbf16>, vector<1x1024xf32> -> vector<1x1024xf32>
    %c5 = arith.constant 5 : index
    %166 = memref.load %arg1[%c5] : memref<9xf32, #tpu.memory_space<smem>>
    %167 = vector.broadcast %166 : f32 to vector<1x1024xf32>
    %168 = arith.mulf %167, %0 : vector<1x1024xf32>
    %169 = arith.addf %165, %168 : vector<1x1024xf32>
    %170 = arith.addf %169, %1 : vector<1x1024xf32>
    %171 = vector.extract_strided_slice %170 {offsets = [0, 0], sizes = [1, 256], strides = [1, 1]} : vector<1x1024xf32> to vector<1x256xf32>
    %172 = arith.negf %171 : vector<1x256xf32>
    %173 = math.exp %172 : vector<1x256xf32>
    %cst_25 = arith.constant 1.000000e+00 : f32
    %174 = vector.broadcast %cst_25 : f32 to vector<1x256xf32>
    %175 = arith.addf %174, %173 : vector<1x256xf32>
    %176 = arith.divf %174, %175 : vector<1x256xf32>
    %177 = vector.extract_strided_slice %170 {offsets = [0, 256], sizes = [1, 256], strides = [1, 1]} : vector<1x1024xf32> to vector<1x256xf32>
    %178 = arith.negf %177 : vector<1x256xf32>
    %179 = math.exp %178 : vector<1x256xf32>
    %cst_26 = arith.constant 1.000000e+00 : f32
    %180 = vector.broadcast %cst_26 : f32 to vector<1x256xf32>
    %181 = arith.addf %180, %179 : vector<1x256xf32>
    %182 = arith.divf %180, %181 : vector<1x256xf32>
    %183 = vector.extract_strided_slice %170 {offsets = [0, 512], sizes = [1, 256], strides = [1, 1]} : vector<1x1024xf32> to vector<1x256xf32>
    %184 = math.tanh %183 : vector<1x256xf32>
    %185 = vector.extract_strided_slice %170 {offsets = [0, 768], sizes = [1, 256], strides = [1, 1]} : vector<1x1024xf32> to vector<1x256xf32>
    %186 = arith.negf %185 : vector<1x256xf32>
    %187 = math.exp %186 : vector<1x256xf32>
    %cst_27 = arith.constant 1.000000e+00 : f32
    %188 = vector.broadcast %cst_27 : f32 to vector<1x256xf32>
    %189 = arith.addf %188, %187 : vector<1x256xf32>
    %190 = arith.divf %188, %189 : vector<1x256xf32>
    %191 = arith.mulf %182, %161 : vector<1x256xf32>
    %192 = arith.mulf %176, %184 : vector<1x256xf32>
    %193 = arith.addf %191, %192 : vector<1x256xf32>
    %194 = math.tanh %193 : vector<1x256xf32>
    %195 = arith.mulf %190, %194 : vector<1x256xf32>
    %196 = arith.truncf %195 : vector<1x256xf32> to vector<1x256xbf16>
    %cst_28 = arith.constant dense<0.000000e+00> : vector<1x1024xf32>
    %197 = tpu.matmul %196, %2, %cst_28 {dimension_numbers = #tpu.dot_dimension_numbers<[1], [0], [0], [1], [0, 0, 1, 1], [], []>} : vector<1x256xbf16>, vector<256x1024xbf16>, vector<1x1024xf32> -> vector<1x1024xf32>
    %c6 = arith.constant 6 : index
    %198 = memref.load %arg1[%c6] : memref<9xf32, #tpu.memory_space<smem>>
    %199 = vector.broadcast %198 : f32 to vector<1x1024xf32>
    %200 = arith.mulf %199, %0 : vector<1x1024xf32>
    %201 = arith.addf %197, %200 : vector<1x1024xf32>
    %202 = arith.addf %201, %1 : vector<1x1024xf32>
    %203 = vector.extract_strided_slice %202 {offsets = [0, 0], sizes = [1, 256], strides = [1, 1]} : vector<1x1024xf32> to vector<1x256xf32>
    %204 = arith.negf %203 : vector<1x256xf32>
    %205 = math.exp %204 : vector<1x256xf32>
    %cst_29 = arith.constant 1.000000e+00 : f32
    %206 = vector.broadcast %cst_29 : f32 to vector<1x256xf32>
    %207 = arith.addf %206, %205 : vector<1x256xf32>
    %208 = arith.divf %206, %207 : vector<1x256xf32>
    %209 = vector.extract_strided_slice %202 {offsets = [0, 256], sizes = [1, 256], strides = [1, 1]} : vector<1x1024xf32> to vector<1x256xf32>
    %210 = arith.negf %209 : vector<1x256xf32>
    %211 = math.exp %210 : vector<1x256xf32>
    %cst_30 = arith.constant 1.000000e+00 : f32
    %212 = vector.broadcast %cst_30 : f32 to vector<1x256xf32>
    %213 = arith.addf %212, %211 : vector<1x256xf32>
    %214 = arith.divf %212, %213 : vector<1x256xf32>
    %215 = vector.extract_strided_slice %202 {offsets = [0, 512], sizes = [1, 256], strides = [1, 1]} : vector<1x1024xf32> to vector<1x256xf32>
    %216 = math.tanh %215 : vector<1x256xf32>
    %217 = vector.extract_strided_slice %202 {offsets = [0, 768], sizes = [1, 256], strides = [1, 1]} : vector<1x1024xf32> to vector<1x256xf32>
    %218 = arith.negf %217 : vector<1x256xf32>
    %219 = math.exp %218 : vector<1x256xf32>
    %cst_31 = arith.constant 1.000000e+00 : f32
    %220 = vector.broadcast %cst_31 : f32 to vector<1x256xf32>
    %221 = arith.addf %220, %219 : vector<1x256xf32>
    %222 = arith.divf %220, %221 : vector<1x256xf32>
    %223 = arith.mulf %214, %193 : vector<1x256xf32>
    %224 = arith.mulf %208, %216 : vector<1x256xf32>
    %225 = arith.addf %223, %224 : vector<1x256xf32>
    %226 = math.tanh %225 : vector<1x256xf32>
    %227 = arith.mulf %222, %226 : vector<1x256xf32>
    %228 = arith.truncf %227 : vector<1x256xf32> to vector<1x256xbf16>
    %cst_32 = arith.constant dense<0.000000e+00> : vector<1x1024xf32>
    %229 = tpu.matmul %228, %2, %cst_32 {dimension_numbers = #tpu.dot_dimension_numbers<[1], [0], [0], [1], [0, 0, 1, 1], [], []>} : vector<1x256xbf16>, vector<256x1024xbf16>, vector<1x1024xf32> -> vector<1x1024xf32>
    %c7 = arith.constant 7 : index
    %230 = memref.load %arg1[%c7] : memref<9xf32, #tpu.memory_space<smem>>
    %231 = vector.broadcast %230 : f32 to vector<1x1024xf32>
    %232 = arith.mulf %231, %0 : vector<1x1024xf32>
    %233 = arith.addf %229, %232 : vector<1x1024xf32>
    %234 = arith.addf %233, %1 : vector<1x1024xf32>
    %235 = vector.extract_strided_slice %234 {offsets = [0, 0], sizes = [1, 256], strides = [1, 1]} : vector<1x1024xf32> to vector<1x256xf32>
    %236 = arith.negf %235 : vector<1x256xf32>
    %237 = math.exp %236 : vector<1x256xf32>
    %cst_33 = arith.constant 1.000000e+00 : f32
    %238 = vector.broadcast %cst_33 : f32 to vector<1x256xf32>
    %239 = arith.addf %238, %237 : vector<1x256xf32>
    %240 = arith.divf %238, %239 : vector<1x256xf32>
    %241 = vector.extract_strided_slice %234 {offsets = [0, 256], sizes = [1, 256], strides = [1, 1]} : vector<1x1024xf32> to vector<1x256xf32>
    %242 = arith.negf %241 : vector<1x256xf32>
    %243 = math.exp %242 : vector<1x256xf32>
    %cst_34 = arith.constant 1.000000e+00 : f32
    %244 = vector.broadcast %cst_34 : f32 to vector<1x256xf32>
    %245 = arith.addf %244, %243 : vector<1x256xf32>
    %246 = arith.divf %244, %245 : vector<1x256xf32>
    %247 = vector.extract_strided_slice %234 {offsets = [0, 512], sizes = [1, 256], strides = [1, 1]} : vector<1x1024xf32> to vector<1x256xf32>
    %248 = math.tanh %247 : vector<1x256xf32>
    %249 = vector.extract_strided_slice %234 {offsets = [0, 768], sizes = [1, 256], strides = [1, 1]} : vector<1x1024xf32> to vector<1x256xf32>
    %250 = arith.negf %249 : vector<1x256xf32>
    %251 = math.exp %250 : vector<1x256xf32>
    %cst_35 = arith.constant 1.000000e+00 : f32
    %252 = vector.broadcast %cst_35 : f32 to vector<1x256xf32>
    %253 = arith.addf %252, %251 : vector<1x256xf32>
    %254 = arith.divf %252, %253 : vector<1x256xf32>
    %255 = arith.mulf %246, %225 : vector<1x256xf32>
    %256 = arith.mulf %240, %248 : vector<1x256xf32>
    %257 = arith.addf %255, %256 : vector<1x256xf32>
    %258 = math.tanh %257 : vector<1x256xf32>
    %259 = arith.mulf %254, %258 : vector<1x256xf32>
    %260 = arith.truncf %259 : vector<1x256xf32> to vector<1x256xbf16>
    %cst_36 = arith.constant dense<0.000000e+00> : vector<1x1024xf32>
    %261 = tpu.matmul %260, %2, %cst_36 {dimension_numbers = #tpu.dot_dimension_numbers<[1], [0], [0], [1], [0, 0, 1, 1], [], []>} : vector<1x256xbf16>, vector<256x1024xbf16>, vector<1x1024xf32> -> vector<1x1024xf32>
    %c8 = arith.constant 8 : index
    %262 = memref.load %arg1[%c8] : memref<9xf32, #tpu.memory_space<smem>>
    %263 = vector.broadcast %262 : f32 to vector<1x1024xf32>
    %264 = arith.mulf %263, %0 : vector<1x1024xf32>
    %265 = arith.addf %261, %264 : vector<1x1024xf32>
    %266 = arith.addf %265, %1 : vector<1x1024xf32>
    %267 = vector.extract_strided_slice %266 {offsets = [0, 0], sizes = [1, 256], strides = [1, 1]} : vector<1x1024xf32> to vector<1x256xf32>
    %268 = arith.negf %267 : vector<1x256xf32>
    %269 = math.exp %268 : vector<1x256xf32>
    %cst_37 = arith.constant 1.000000e+00 : f32
    %270 = vector.broadcast %cst_37 : f32 to vector<1x256xf32>
    %271 = arith.addf %270, %269 : vector<1x256xf32>
    %272 = arith.divf %270, %271 : vector<1x256xf32>
    %273 = vector.extract_strided_slice %266 {offsets = [0, 256], sizes = [1, 256], strides = [1, 1]} : vector<1x1024xf32> to vector<1x256xf32>
    %274 = arith.negf %273 : vector<1x256xf32>
    %275 = math.exp %274 : vector<1x256xf32>
    %cst_38 = arith.constant 1.000000e+00 : f32
    %276 = vector.broadcast %cst_38 : f32 to vector<1x256xf32>
    %277 = arith.addf %276, %275 : vector<1x256xf32>
    %278 = arith.divf %276, %277 : vector<1x256xf32>
    %279 = vector.extract_strided_slice %266 {offsets = [0, 512], sizes = [1, 256], strides = [1, 1]} : vector<1x1024xf32> to vector<1x256xf32>
    %280 = math.tanh %279 : vector<1x256xf32>
    %281 = vector.extract_strided_slice %266 {offsets = [0, 768], sizes = [1, 256], strides = [1, 1]} : vector<1x1024xf32> to vector<1x256xf32>
    %282 = arith.negf %281 : vector<1x256xf32>
    %283 = math.exp %282 : vector<1x256xf32>
    %cst_39 = arith.constant 1.000000e+00 : f32
    %284 = vector.broadcast %cst_39 : f32 to vector<1x256xf32>
    %285 = arith.addf %284, %283 : vector<1x256xf32>
    %286 = arith.divf %284, %285 : vector<1x256xf32>
    %287 = arith.mulf %278, %257 : vector<1x256xf32>
    %288 = arith.mulf %272, %280 : vector<1x256xf32>
    %289 = arith.addf %287, %288 : vector<1x256xf32>
    %290 = math.tanh %289 : vector<1x256xf32>
    %291 = arith.mulf %286, %290 : vector<1x256xf32>
    %292 = vector.extract_strided_slice %291 {offsets = [0, 128], sizes = [1, 128], strides = [1, 1]} : vector<1x256xf32> to vector<1x128xf32>
    %c0_40 = arith.constant 0 : index
    %c0_41 = arith.constant 0 : index
    %293 = vector.load %arg5[%c0_40, %c0_41] : memref<1x128xf32, #tpu.memory_space<vmem>>, vector<1x128xf32>
    tpu.vector_store %arg5[%c0_40, %c0_41], %292 {strides = array<i32>} : memref<1x128xf32, #tpu.memory_space<vmem>>, vector<1x128xf32>,
    return
  }
  func.func @transform_0(%arg0: i32) -> i32 {
    %c0_i32 = arith.constant 0 : i32
    %c0_i32_0 = arith.constant 0 : i32
    return %c0_i32 : i32
  }
  func.func @transform_1(%arg0: i32) -> (i32, i32) {
    %c0_i32 = arith.constant 0 : i32
    %c0_i32_0 = arith.constant 0 : i32
    %c0_i32_1 = arith.constant 0 : i32
    return %c0_i32, %c0_i32_0 : i32, i32
  }
  func.func @transform_2(%arg0: i32) -> (i32, i32) {
    %c0_i32 = arith.constant 0 : i32
    %c0_i32_0 = arith.constant 0 : i32
    %c0_i32_1 = arith.constant 0 : i32
    return %c0_i32, %c0_i32_0 : i32, i32
  }
  func.func @transform_3(%arg0: i32) -> (i32, i32) {
    %c0_i32 = arith.constant 0 : i32
    %c0_i32_0 = arith.constant 0 : i32
    %c0_i32_1 = arith.constant 0 : i32
    return %c0_i32, %c0_i32_0 : i32, i32
  }
  func.func @transform_4(%arg0: i32) -> (i32, i32) {
    %c0_i32 = arith.constant 0 : i32
    %c0_i32_0 = arith.constant 0 : i32
    %c0_i32_1 = arith.constant 0 : i32
    return %c0_i32, %c0_i32_0 : i32, i32
  }
}

</mosaic_0001>

<llo_original>
// kernel: tpu_custom_call.1
$region0: #{tpu_custom_call.1}
  #allocation0 [shape = 'u32[]', space=smem, size = 0x4, offset = 0x4, fixed_abs, tag = 'smem constant byte address 0x4 - core index']
  #allocation1 [shape = 'u32[144,128]{1,0:T(1,128)}', space=vmem, size = 0x12000, scoped, tag = 'internal scratch']
  %s0 = inlined_call_operand.hbm [shape: f32[9], index: 0, kind: input, shape index: {}]
  %s1 = inlined_call_operand.hbm [shape: f32[1,1024], index: 1, kind: input, shape index: {}]
  %s2 = inlined_call_operand.hbm [shape: f32[1,1024], index: 2, kind: input, shape index: {}]
  %s3 = inlined_call_operand.hbm [shape: bf16[256,1024], index: 3, kind: input, shape index: {}]
  %s4 = inlined_call_operand.hbm [shape: f32[1,128], index: 4, kind: output, shape index: {}]
  %s5 = sld [smem:[#allocation0]]
  $region42: #{tpu_custom_call.1} parent=0
    _
  %s7 = ssub.s32 1, %s5
  %s8 = scalar_select 0, %s7, %s5
  $region1: #{tpu_custom_call.1} parent=0
    #allocation2 [shape = 'u8[512]{0}', space=smem, size = 0x200, scoped, tag = 'input window, operand 0, single buffered']
    #allocation3 [shape = 's32[1]{0}', space=sflag, size = 0x4, scoped, tag = 'scoped memory for tpu_custom_call.1']
    #allocation4 [shape = 's32[1]{0}', space=sflag, size = 0x4, scoped, tag = 'scoped memory for tpu_custom_call.1']
    #allocation5 [shape = 's32[1]{0}', space=sflag, size = 0x4, scoped, tag = 'scoped memory for tpu_custom_call.1']
    #allocation6 [shape = 'u8[4096]{0}', space=vmem, size = 0x1000, scoped, tag = 'input window, operand 1, single buffered']
    #allocation7 [shape = 'u8[4096]{0}', space=vmem, size = 0x1000, scoped, tag = 'input window, operand 2, single buffered']
    #allocation8 [shape = 's32[1]{0}', space=sflag, size = 0x4, scoped, tag = 'scoped memory for tpu_custom_call.1']
    #allocation9 [shape = 'u8[524288]{0}', space=vmem, size = 0x80000, scoped, tag = 'input window, operand 3, single buffered']
    #allocation10 [shape = 'u8[512]{0}', space=vmem, size = 0x400, scoped, tag = 'output window, operand 0, single buffered']
    %9 = vsyncpa [#allocation5], 0
    %10 = vsyncpa [#allocation3], 0
    %11 = vsyncpa [#allocation8], 0
    %12 = vsyncpa [#allocation4], 0
    // Predicated region
    $region2: #{tpu_custom_call.1} parent=1 // pred_check
      _
    $region3: #{tpu_custom_call.1} parent=1 // pred_check_branch
      %14 = sbr.rel (0) target = $region5
    $region4: #{tpu_custom_call.1} parent=1 // pred_region
      %s16 = ssub.s32 16, 16
      %17 = vsyncadd [#allocation5], %s16
      %20 = dma.hbm_to_smem %s0, 16, [#allocation2], [#allocation5]
    $region5: #{tpu_custom_call.1} parent=1 // pred_fallthru
      _
    // Predicated region
    $region6: #{tpu_custom_call.1} parent=1 // pred_check
      _
    $region7: #{tpu_custom_call.1} parent=1 // pred_check_branch
      %22 = sbr.rel (0) target = $region9
    $region8: #{tpu_custom_call.1} parent=1 // pred_region
      %s24 = ssub.s32 128, 128
      %25 = vsyncadd [#allocation3], %s24
      %s27 = sshll.u32 [#allocation6], 4
      %s28 = int_to_ptr.vmem [resolvable:$true] %s27
      %30 = dma.hbm_to_vmem [thread:$0]  %s1, 128, %s28, [#allocation3]
    $region9: #{tpu_custom_call.1} parent=1 // pred_fallthru
      _
    // Predicated region
    $region10: #{tpu_custom_call.1} parent=1 // pred_check
      _
    $region11: #{tpu_custom_call.1} parent=1 // pred_check_branch
      %32 = sbr.rel (0) target = $region13
    $region12: #{tpu_custom_call.1} parent=1 // pred_region
      %s34 = ssub.s32 128, 128
      %35 = vsyncadd [#allocation8], %s34
      %s37 = sshll.u32 [#allocation7], 4
      %s38 = int_to_ptr.vmem [resolvable:$true] %s37
      %40 = dma.hbm_to_vmem [thread:$0]  %s2, 128, %s38, [#allocation8]
    $region13: #{tpu_custom_call.1} parent=1 // pred_fallthru
      _
    // Predicated region
    $region14: #{tpu_custom_call.1} parent=1 // pred_check
      _
    $region15: #{tpu_custom_call.1} parent=1 // pred_check_branch
      %42 = sbr.rel (0) target = $region17
    $region16: #{tpu_custom_call.1} parent=1 // pred_region
      %s44 = ssub.s32 16384, 16384
      %45 = vsyncadd [#allocation8], %s44
      %s46 = sshll.u32 [#allocation9], 4
      %s47 = int_to_ptr.vmem [resolvable:$true] %s46
      %52 = dma.hbm_to_vmem [thread:$0]  %s3, 16384, %s47, [#allocation8], 512, 512, 32
    $region17: #{tpu_custom_call.1} parent=1 // pred_fallthru
      _
    // Predicated region
    $region18: #{tpu_custom_call.1} parent=1 // pred_check
      _
    $region19: #{tpu_custom_call.1} parent=1 // pred_check_branch
      %54 = sbr.rel (0) target = $region21
    $region20: #{tpu_custom_call.1} parent=1 // pred_region
      %55 = dma.done [#allocation5], 16
    $region21: #{tpu_custom_call.1} parent=1 // pred_fallthru
      _
    // Predicated region
    $region22: #{tpu_custom_call.1} parent=1 // pred_check
      _
    $region23: #{tpu_custom_call.1} parent=1 // pred_check_branch
      %57 = sbr.rel (0) target = $region25
    $region24: #{tpu_custom_call.1} parent=1 // pred_region
      %58 = dma.done [#allocation3], 128
    $region25: #{tpu_custom_call.1} parent=1 // pred_fallthru
      _
    // Predicated region
    $region26: #{tpu_custom_call.1} parent=1 // pred_check
      _
    $region27: #{tpu_custom_call.1} parent=1 // pred_check_branch
      %60 = sbr.rel (0) target = $region29
    $region28: #{tpu_custom_call.1} parent=1 // pred_region
      %61 = dma.done [#allocation8], 128
    $region29: #{tpu_custom_call.1} parent=1 // pred_fallthru
      _
    // Predicated region
    $region30: #{tpu_custom_call.1} parent=1 // pred_check
      _
    $region31: #{tpu_custom_call.1} parent=1 // pred_check_branch
      %63 = sbr.rel (0) target = $region33
    $region32: #{tpu_custom_call.1} parent=1 // pred_region
      %64 = dma.done [#allocation8], 16384
    $region33: #{tpu_custom_call.1} parent=1 // pred_fallthru
      _
    %65 = sfence
    %v66 = vld [vmem:[#allocation6] sm:$0xff]
    %v67 = vld [vmem:[#allocation7] sm:$0xff]
    %v68 = vld [vmem:[#allocation9] sm:$0xff]
    %v69 = vld [vmem:[#allocation9 + $0x8] sm:$0xff]
    %v70 = vld [vmem:[#allocation9 + $0x10] sm:$0xff]
    %v71 = vld [vmem:[#allocation9 + $0x18] sm:$0xff]
    %v72 = vld [vmem:[#allocation9 + $0x20] sm:$0xff]
    %v73 = vld [vmem:[#allocation9 + $0x28] sm:$0xff]
    %v74 = vld [vmem:[#allocation9 + $0x30] sm:$0xff]
    %v75 = vld [vmem:[#allocation9 + $0x38] sm:$0xff]
    %v76 = vld [vmem:[#allocation9 + $0x40] sm:$0xff]
    %v77 = vld [vmem:[#allocation9 + $0x48] sm:$0xff]
    %v78 = vld [vmem:[#allocation9 + $0x50] sm:$0xff]
    %v79 = vld [vmem:[#allocation9 + $0x58] sm:$0xff]
    %v80 = vld [vmem:[#allocation9 + $0x60] sm:$0xff]
    %v81 = vld [vmem:[#allocation9 + $0x68] sm:$0xff]
    %v82 = vld [vmem:[#allocation9 + $0x70] sm:$0xff]
    %v83 = vld [vmem:[#allocation9 + $0x78] sm:$0xff]
    %v84 = vld [vmem:[#allocation9 + $0x80] sm:$0xff]
    %v85 = vld [vmem:[#allocation9 + $0x88] sm:$0xff]
    %v86 = vld [vmem:[#allocation9 + $0x90] sm:$0xff]
    %v87 = vld [vmem:[#allocation9 + $0x98] sm:$0xff]
    %v88 = vld [vmem:[#allocation9 + $0xa0] sm:$0xff]
    %v89 = vld [vmem:[#allocation9 + $0xa8] sm:$0xff]
    %v90 = vld [vmem:[#allocation9 + $0xb0] sm:$0xff]
    %v91 = vld [vmem:[#allocation9 + $0xb8] sm:$0xff]
    %v92 = vld [vmem:[#allocation9 + $0xc0] sm:$0xff]
    %v93 = vld [vmem:[#allocation9 + $0xc8] sm:$0xff]
    %v94 = vld [vmem:[#allocation9 + $0xd0] sm:$0xff]
    %v95 = vld [vmem:[#allocation9 + $0xd8] sm:$0xff]
    %v96 = vld [vmem:[#allocation9 + $0xe0] sm:$0xff]
    %v97 = vld [vmem:[#allocation9 + $0xe8] sm:$0xff]
    %v98 = vld [vmem:[#allocation9 + $0xf0] sm:$0xff]
    %v99 = vld [vmem:[#allocation9 + $0xf8] sm:$0xff]
    %v100 = vld [vmem:[#allocation9 + $0x100] sm:$0xff]
    %v101 = vld [vmem:[#allocation9 + $0x108] sm:$0xff]
    %v102 = vld [vmem:[#allocation9 + $0x110] sm:$0xff]
    %v103 = vld [vmem:[#allocation9 + $0x118] sm:$0xff]
    %v104 = vld [vmem:[#allocation9 + $0x120] sm:$0xff]
    %v105 = vld [vmem:[#allocation9 + $0x128] sm:$0xff]
    %v106 = vld [vmem:[#allocation9 + $0x130] sm:$0xff]
    %v107 = vld [vmem:[#allocation9 + $0x138] sm:$0xff]
    %v108 = vld [vmem:[#allocation9 + $0x140] sm:$0xff]
    %v109 = vld [vmem:[#allocation9 + $0x148] sm:$0xff]
    %v110 = vld [vmem:[#allocation9 + $0x150] sm:$0xff]
    %v111 = vld [vmem:[#allocation9 + $0x158] sm:$0xff]
    %v112 = vld [vmem:[#allocation9 + $0x160] sm:$0xff]
    %v113 = vld [vmem:[#allocation9 + $0x168] sm:$0xff]
    %v114 = vld [vmem:[#allocation9 + $0x170] sm:$0xff]
    %v115 = vld [vmem:[#allocation9 + $0x178] sm:$0xff]
    %v116 = vld [vmem:[#allocation9 + $0x180] sm:$0xff]
    %v117 = vld [vmem:[#allocation9 + $0x188] sm:$0xff]
    %v118 = vld [vmem:[#allocation9 + $0x190] sm:$0xff]
    %v119 = vld [vmem:[#allocation9 + $0x198] sm:$0xff]
    %v120 = vld [vmem:[#allocation9 + $0x1a0] sm:$0xff]
    %v121 = vld [vmem:[#allocation9 + $0x1a8] sm:$0xff]
    %v122 = vld [vmem:[#allocation9 + $0x1b0] sm:$0xff]
    %v123 = vld [vmem:[#allocation9 + $0x1b8] sm:$0xff]
    %v124 = vld [vmem:[#allocation9 + $0x1c0] sm:$0xff]
    %v125 = vld [vmem:[#allocation9 + $0x1c8] sm:$0xff]
    %v126 = vld [vmem:[#allocation9 + $0x1d0] sm:$0xff]
    %v127 = vld [vmem:[#allocation9 + $0x1d8] sm:$0xff]
    %v128 = vld [vmem:[#allocation9 + $0x1e0] sm:$0xff]
    %v129 = vld [vmem:[#allocation9 + $0x1e8] sm:$0xff]
    %v130 = vld [vmem:[#allocation9 + $0x1f0] sm:$0xff]
    %v131 = vld [vmem:[#allocation9 + $0x1f8] sm:$0xff]
    %v132 = vld [vmem:[#allocation9 + $0x200] sm:$0xff]
    %v133 = vld [vmem:[#allocation9 + $0x208] sm:$0xff]
    %v134 = vld [vmem:[#allocation9 + $0x210] sm:$0xff]
    %v135 = vld [vmem:[#allocation9 + $0x218] sm:$0xff]
    %v136 = vld [vmem:[#allocation9 + $0x220] sm:$0xff]
    %v137 = vld [vmem:[#allocation9 + $0x228] sm:$0xff]
    %v138 = vld [vmem:[#allocation9 + $0x230] sm:$0xff]
    %v139 = vld [vmem:[#allocation9 + $0x238] sm:$0xff]
    %v140 = vld [vmem:[#allocation9 + $0x240] sm:$0xff]
    %v141 = vld [vmem:[#allocation9 + $0x248] sm:$0xff]
    %v142 = vld [vmem:[#allocation9 + $0x250] sm:$0xff]
    %v143 = vld [vmem:[#allocation9 + $0x258] sm:$0xff]
    %v144 = vld [vmem:[#allocation9 + $0x260] sm:$0xff]
    %v145 = vld [vmem:[#allocation9 + $0x268] sm:$0xff]
    %v146 = vld [vmem:[#allocation9 + $0x270] sm:$0xff]
    %v147 = vld [vmem:[#allocation9 + $0x278] sm:$0xff]
    %v148 = vld [vmem:[#allocation9 + $0x280] sm:$0xff]
    %v149 = vld [vmem:[#allocation9 + $0x288] sm:$0xff]
    %v150 = vld [vmem:[#allocation9 + $0x290] sm:$0xff]
    %v151 = vld [vmem:[#allocation9 + $0x298] sm:$0xff]
    %v152 = vld [vmem:[#allocation9 + $0x2a0] sm:$0xff]
    %v153 = vld [vmem:[#allocation9 + $0x2a8] sm:$0xff]
    %v154 = vld [vmem:[#allocation9 + $0x2b0] sm:$0xff]
    %v155 = vld [vmem:[#allocation9 + $0x2b8] sm:$0xff]
    %v156 = vld [vmem:[#allocation9 + $0x2c0] sm:$0xff]
    %v157 = vld [vmem:[#allocation9 + $0x2c8] sm:$0xff]
    %v158 = vld [vmem:[#allocation9 + $0x2d0] sm:$0xff]
    %v159 = vld [vmem:[#allocation9 + $0x2d8] sm:$0xff]
    %v160 = vld [vmem:[#allocation9 + $0x2e0] sm:$0xff]
    %v161 = vld [vmem:[#allocation9 + $0x2e8] sm:$0xff]
    %v162 = vld [vmem:[#allocation9 + $0x2f0] sm:$0xff]
    %v163 = vld [vmem:[#allocation9 + $0x2f8] sm:$0xff]
    %v164 = vld [vmem:[#allocation9 + $0x300] sm:$0xff]
    %v165 = vld [vmem:[#allocation9 + $0x308] sm:$0xff]
    %v166 = vld [vmem:[#allocation9 + $0x310] sm:$0xff]
    %v167 = vld [vmem:[#allocation9 + $0x318] sm:$0xff]
    %v168 = vld [vmem:[#allocation9 + $0x320] sm:$0xff]
    %v169 = vld [vmem:[#allocation9 + $0x328] sm:$0xff]
    %v170 = vld [vmem:[#allocation9 + $0x330] sm:$0xff]
    %v171 = vld [vmem:[#allocation9 + $0x338] sm:$0xff]
    %v172 = vld [vmem:[#allocation9 + $0x340] sm:$0xff]
    %v173 = vld [vmem:[#allocation9 + $0x348] sm:$0xff]
    %v174 = vld [vmem:[#allocation9 + $0x350] sm:$0xff]
    %v175 = vld [vmem:[#allocation9 + $0x358] sm:$0xff]
    %v176 = vld [vmem:[#allocation9 + $0x360] sm:$0xff]
    %v177 = vld [vmem:[#allocation9 + $0x368] sm:$0xff]
    %v178 = vld [vmem:[#allocation9 + $0x370] sm:$0xff]
    %v179 = vld [vmem:[#allocation9 + $0x378] sm:$0xff]
    %v180 = vld [vmem:[#allocation9 + $0x380] sm:$0xff]
    %v181 = vld [vmem:[#allocation9 + $0x388] sm:$0xff]
    %v182 = vld [vmem:[#allocation9 + $0x390] sm:$0xff]
    %v183 = vld [vmem:[#allocation9 + $0x398] sm:$0xff]
    %v184 = vld [vmem:[#allocation9 + $0x3a0] sm:$0xff]
    %v185 = vld [vmem:[#allocation9 + $0x3a8] sm:$0xff]
    %v186 = vld [vmem:[#allocation9 + $0x3b0] sm:$0xff]
    %v187 = vld [vmem:[#allocation9 + $0x3b8] sm:$0xff]
    %v188 = vld [vmem:[#allocation9 + $0x3c0] sm:$0xff]
    %v189 = vld [vmem:[#allocation9 + $0x3c8] sm:$0xff]
    %v190 = vld [vmem:[#allocation9 + $0x3d0] sm:$0xff]
    %v191 = vld [vmem:[#allocation9 + $0x3d8] sm:$0xff]
    %v192 = vld [vmem:[#allocation9 + $0x3e0] sm:$0xff]
    %v193 = vld [vmem:[#allocation9 + $0x3e8] sm:$0xff]
    %v194 = vld [vmem:[#allocation9 + $0x3f0] sm:$0xff]
    %v195 = vld [vmem:[#allocation9 + $0x3f8] sm:$0xff]
    %s196 = sld [smem:[#allocation2]]
    %v197 = vstv %s196
    %v198 = vmul.f32 %v197, %v66
    %v199 = vadd.f32 %v198, %v67
    %v200 = vxor.u32 %v199, 2147483648
    %v201 = vmul.f32 %v200, 1.442695
    %v202 = vpow.pop %v201
    %v203 = vadd.f32 %v202, 1.0
    %v204 = vrcp.pop %v203
    %v205 = vmul.f32 1.0, %v204
    %v207 = vrot.slane %v66, 4
    %v209 = vmul.f32 %v197, %v207
    %v211 = vrot.slane %v67, 4
    %v213 = vadd.f32 %v209, %v211
    %v214 = vtanh.pop %v213
    %v215 = vrot.slane %v66, 6
    %v217 = vmul.f32 %v197, %v215
    %v218 = vrot.slane %v67, 6
    %v220 = vadd.f32 %v217, %v218
    %v221 = vxor.u32 %v220, 2147483648
    %v222 = vmul.f32 %v221, 1.442695
    %v223 = vpow.pop %v222
    %v224 = vadd.f32 %v223, 1.0
    %v225 = vrcp.pop %v224
    %v226 = vmul.f32 1.0, %v225
    %v227 = vmul.f32 %v205, %v214
    %v228 = vtanh.pop %v227
    %v229 = vmul.f32 %v226, %v228
    %v230 = vpack.c.bf16 %v229, %v229
    %v231 = vpack.c.bf16 0.0, 0.0
    %s232 = sld [smem:[#allocation2 + $0x1]]
    %v233 = vstv %s232
    %v234 = vmul.f32 %v233, %v66
    %v363 = vunpack.c.l.b16 %v68
    %v364 = vunpack.c.h.b16 %v68
    %v365 = vunpack.c.l.b16 %v69
    %v366 = vunpack.c.h.b16 %v69
    %v367 = vunpack.c.l.b16 %v70
    %v368 = vunpack.c.h.b16 %v70
    %v369 = vunpack.c.l.b16 %v71
    %v370 = vunpack.c.h.b16 %v71
    %v371 = vunpack.c.l.b16 %v72
    %v372 = vunpack.c.h.b16 %v72
    %v373 = vunpack.c.l.b16 %v73
    %v374 = vunpack.c.h.b16 %v73
    %v375 = vunpack.c.l.b16 %v74
    %v376 = vunpack.c.h.b16 %v74
    %v377 = vunpack.c.l.b16 %v75
    %v378 = vunpack.c.h.b16 %v75
    %v379 = vunpack.c.l.b16 %v76
    %v380 = vunpack.c.h.b16 %v76
    %v381 = vunpack.c.l.b16 %v77
    %v382 = vunpack.c.h.b16 %v77
    %v383 = vunpack.c.l.b16 %v78
    %v384 = vunpack.c.h.b16 %v78
    %v385 = vunpack.c.l.b16 %v79
    %v386 = vunpack.c.h.b16 %v79
    %v387 = vunpack.c.l.b16 %v80
    %v388 = vunpack.c.h.b16 %v80
    %v389 = vunpack.c.l.b16 %v81
    %v390 = vunpack.c.h.b16 %v81
    %v391 = vunpack.c.l.b16 %v82
    %v392 = vunpack.c.h.b16 %v82
    %v393 = vunpack.c.l.b16 %v83
    %v394 = vunpack.c.h.b16 %v83
    %v395 = vunpack.c.l.b16 %v84
    %v396 = vunpack.c.h.b16 %v84
    %v397 = vunpack.c.l.b16 %v85
    %v398 = vunpack.c.h.b16 %v85
    %v399 = vunpack.c.l.b16 %v86
    %v400 = vunpack.c.h.b16 %v86
    %v401 = vunpack.c.l.b16 %v87
    %v402 = vunpack.c.h.b16 %v87
    %v403 = vunpack.c.l.b16 %v88
    %v404 = vunpack.c.h.b16 %v88
    %v405 = vunpack.c.l.b16 %v89
    %v406 = vunpack.c.h.b16 %v89
    %v407 = vunpack.c.l.b16 %v90
    %v408 = vunpack.c.h.b16 %v90
    %v409 = vunpack.c.l.b16 %v91
    %v410 = vunpack.c.h.b16 %v91
    %v411 = vunpack.c.l.b16 %v92
    %v412 = vunpack.c.h.b16 %v92
    %v413 = vunpack.c.l.b16 %v93
    %v414 = vunpack.c.h.b16 %v93
    %v415 = vunpack.c.l.b16 %v94
    %v416 = vunpack.c.h.b16 %v94
    %v417 = vunpack.c.l.b16 %v95
    %v418 = vunpack.c.h.b16 %v95
    %v419 = vunpack.c.l.b16 %v96
    %v420 = vunpack.c.h.b16 %v96
    %v421 = vunpack.c.l.b16 %v97
    %v422 = vunpack.c.h.b16 %v97
    %v423 = vunpack.c.l.b16 %v98
    %v424 = vunpack.c.h.b16 %v98
    %v425 = vunpack.c.l.b16 %v99
    %v426 = vunpack.c.h.b16 %v99
    %v427 = vunpack.c.l.b16 %v100
    %v428 = vunpack.c.h.b16 %v100
    %v429 = vunpack.c.l.b16 %v101
    %v430 = vunpack.c.h.b16 %v101
    %v431 = vunpack.c.l.b16 %v102
    %v432 = vunpack.c.h.b16 %v102
    %v433 = vunpack.c.l.b16 %v103
    %v434 = vunpack.c.h.b16 %v103
    %v435 = vunpack.c.l.b16 %v104
    %v436 = vunpack.c.h.b16 %v104
    %v437 = vunpack.c.l.b16 %v105
    %v438 = vunpack.c.h.b16 %v105
    %v439 = vunpack.c.l.b16 %v106
    %v440 = vunpack.c.h.b16 %v106
    %v441 = vunpack.c.l.b16 %v107
    %v442 = vunpack.c.h.b16 %v107
    %v443 = vunpack.c.l.b16 %v108
    %v444 = vunpack.c.h.b16 %v108
    %v445 = vunpack.c.l.b16 %v109
    %v446 = vunpack.c.h.b16 %v109
    %v447 = vunpack.c.l.b16 %v110
    %v448 = vunpack.c.h.b16 %v110
    %v449 = vunpack.c.l.b16 %v111
    %v450 = vunpack.c.h.b16 %v111
    %v451 = vunpack.c.l.b16 %v112
    %v452 = vunpack.c.h.b16 %v112
    %v453 = vunpack.c.l.b16 %v113
    %v454 = vunpack.c.h.b16 %v113
    %v455 = vunpack.c.l.b16 %v114
    %v456 = vunpack.c.h.b16 %v114
    %v457 = vunpack.c.l.b16 %v115
    %v458 = vunpack.c.h.b16 %v115
    %v459 = vunpack.c.l.b16 %v116
    %v460 = vunpack.c.h.b16 %v116
    %v461 = vunpack.c.l.b16 %v117
    %v462 = vunpack.c.h.b16 %v117
    %v463 = vunpack.c.l.b16 %v118
    %v464 = vunpack.c.h.b16 %v118
    %v465 = vunpack.c.l.b16 %v119
    %v466 = vunpack.c.h.b16 %v119
    %v467 = vunpack.c.l.b16 %v120
    %v468 = vunpack.c.h.b16 %v120
    %v469 = vunpack.c.l.b16 %v121
    %v470 = vunpack.c.h.b16 %v121
    %v471 = vunpack.c.l.b16 %v122
    %v472 = vunpack.c.h.b16 %v122
    %v473 = vunpack.c.l.b16 %v123
    %v474 = vunpack.c.h.b16 %v123
    %v475 = vunpack.c.l.b16 %v124
    %v476 = vunpack.c.h.b16 %v124
    %v477 = vunpack.c.l.b16 %v125
    %v478 = vunpack.c.h.b16 %v125
    %v479 = vunpack.c.l.b16 %v126
    %v480 = vunpack.c.h.b16 %v126
    %v481 = vunpack.c.l.b16 %v127
    %v482 = vunpack.c.h.b16 %v127
    %v483 = vunpack.c.l.b16 %v128
    %v484 = vunpack.c.h.b16 %v128
    %v485 = vunpack.c.l.b16 %v129
    %v486 = vunpack.c.h.b16 %v129
    %v487 = vunpack.c.l.b16 %v130
    %v488 = vunpack.c.h.b16 %v130
    %v489 = vunpack.c.l.b16 %v131
    %v490 = vunpack.c.h.b16 %v131
    %v491 = vunpack.c.l.b16 %v132
    %v492 = vunpack.c.h.b16 %v132
    %v493 = vunpack.c.l.b16 %v133
    %v494 = vunpack.c.h.b16 %v133
    %v495 = vunpack.c.l.b16 %v134
    %v496 = vunpack.c.h.b16 %v134
    %v497 = vunpack.c.l.b16 %v135
    %v498 = vunpack.c.h.b16 %v135
    %v499 = vunpack.c.l.b16 %v136
    %v500 = vunpack.c.h.b16 %v136
    %v501 = vunpack.c.l.b16 %v137
    %v502 = vunpack.c.h.b16 %v137
    %v503 = vunpack.c.l.b16 %v138
    %v504 = vunpack.c.h.b16 %v138
    %v505 = vunpack.c.l.b16 %v139
    %v506 = vunpack.c.h.b16 %v139
    %v507 = vunpack.c.l.b16 %v140
    %v508 = vunpack.c.h.b16 %v140
    %v509 = vunpack.c.l.b16 %v141
    %v510 = vunpack.c.h.b16 %v141
    %v511 = vunpack.c.l.b16 %v142
    %v512 = vunpack.c.h.b16 %v142
    %v513 = vunpack.c.l.b16 %v143
    %v514 = vunpack.c.h.b16 %v143
    %v515 = vunpack.c.l.b16 %v144
    %v516 = vunpack.c.h.b16 %v144
    %v517 = vunpack.c.l.b16 %v145
    %v518 = vunpack.c.h.b16 %v145
    %v519 = vunpack.c.l.b16 %v146
    %v520 = vunpack.c.h.b16 %v146
    %v521 = vunpack.c.l.b16 %v147
    %v522 = vunpack.c.h.b16 %v147
    %v523 = vunpack.c.l.b16 %v148
    %v524 = vunpack.c.h.b16 %v148
    %v525 = vunpack.c.l.b16 %v149
    %v526 = vunpack.c.h.b16 %v149
    %v527 = vunpack.c.l.b16 %v150
    %v528 = vunpack.c.h.b16 %v150
    %v529 = vunpack.c.l.b16 %v151
    %v530 = vunpack.c.h.b16 %v151
    %v531 = vunpack.c.l.b16 %v152
    %v532 = vunpack.c.h.b16 %v152
    %v533 = vunpack.c.l.b16 %v153
    %v534 = vunpack.c.h.b16 %v153
    %v535 = vunpack.c.l.b16 %v154
    %v536 = vunpack.c.h.b16 %v154
    %v537 = vunpack.c.l.b16 %v155
    %v538 = vunpack.c.h.b16 %v155
    %v539 = vunpack.c.l.b16 %v156
    %v540 = vunpack.c.h.b16 %v156
    %v541 = vunpack.c.l.b16 %v157
    %v542 = vunpack.c.h.b16 %v157
    %v543 = vunpack.c.l.b16 %v158
    %v544 = vunpack.c.h.b16 %v158
    %v545 = vunpack.c.l.b16 %v159
    %v546 = vunpack.c.h.b16 %v159
    %v547 = vunpack.c.l.b16 %v160
    %v548 = vunpack.c.h.b16 %v160
    %v549 = vunpack.c.l.b16 %v161
    %v550 = vunpack.c.h.b16 %v161
    %v551 = vunpack.c.l.b16 %v162
    %v552 = vunpack.c.h.b16 %v162
    %v553 = vunpack.c.l.b16 %v163
    %v554 = vunpack.c.h.b16 %v163
    %v555 = vunpack.c.l.b16 %v164
    %v556 = vunpack.c.h.b16 %v164
    %v557 = vunpack.c.l.b16 %v165
    %v558 = vunpack.c.h.b16 %v165
    %v559 = vunpack.c.l.b16 %v166
    %v560 = vunpack.c.h.b16 %v166
    %v561 = vunpack.c.l.b16 %v167
    %v562 = vunpack.c.h.b16 %v167
    %v563 = vunpack.c.l.b16 %v168
    %v564 = vunpack.c.h.b16 %v168
    %v565 = vunpack.c.l.b16 %v169
    %v566 = vunpack.c.h.b16 %v169
    %v567 = vunpack.c.l.b16 %v170
    %v568 = vunpack.c.h.b16 %v170
    %v569 = vunpack.c.l.b16 %v171
    %v570 = vunpack.c.h.b16 %v171
    %v571 = vunpack.c.l.b16 %v172
    %v572 = vunpack.c.h.b16 %v172
    %v573 = vunpack.c.l.b16 %v173
    %v574 = vunpack.c.h.b16 %v173
    %v575 = vunpack.c.l.b16 %v174
    %v576 = vunpack.c.h.b16 %v174
    %v577 = vunpack.c.l.b16 %v175
    %v578 = vunpack.c.h.b16 %v175
    %v579 = vunpack.c.l.b16 %v176
    %v580 = vunpack.c.h.b16 %v176
    %v581 = vunpack.c.l.b16 %v177
    %v582 = vunpack.c.h.b16 %v177
    %v583 = vunpack.c.l.b16 %v178
    %v584 = vunpack.c.h.b16 %v178
    %v585 = vunpack.c.l.b16 %v179
    %v586 = vunpack.c.h.b16 %v179
    %v587 = vunpack.c.l.b16 %v180
    %v588 = vunpack.c.h.b16 %v180
    %v589 = vunpack.c.l.b16 %v181
    %v590 = vunpack.c.h.b16 %v181
    %v591 = vunpack.c.l.b16 %v182
    %v592 = vunpack.c.h.b16 %v182
    %v593 = vunpack.c.l.b16 %v183
    %v594 = vunpack.c.h.b16 %v183
    %v595 = vunpack.c.l.b16 %v184
    %v596 = vunpack.c.h.b16 %v184
    %v597 = vunpack.c.l.b16 %v185
    %v598 = vunpack.c.h.b16 %v185
    %v599 = vunpack.c.l.b16 %v186
    %v600 = vunpack.c.h.b16 %v186
    %v601 = vunpack.c.l.b16 %v187
    %v602 = vunpack.c.h.b16 %v187
    %v603 = vunpack.c.l.b16 %v188
    %v604 = vunpack.c.h.b16 %v188
    %v605 = vunpack.c.l.b16 %v189
    %v606 = vunpack.c.h.b16 %v189
    %v607 = vunpack.c.l.b16 %v190
    %v608 = vunpack.c.h.b16 %v190
    %v609 = vunpack.c.l.b16 %v191
    %v610 = vunpack.c.h.b16 %v191
    %v611 = vunpack.c.l.b16 %v192
    %v612 = vunpack.c.h.b16 %v192
    %v613 = vunpack.c.l.b16 %v193
    %v614 = vunpack.c.h.b16 %v193
    %v615 = vunpack.c.l.b16 %v194
    %v616 = vunpack.c.h.b16 %v194
    %v617 = vunpack.c.l.b16 %v195
    %v618 = vunpack.c.h.b16 %v195
    %v619 = vpack.c.b16 %v371, %v363
    %v620 = vpack.c.b16 %v372, %v364
    %v621 = vpack.c.b16 %v373, %v365
    %v622 = vpack.c.b16 %v374, %v366
    %v623 = vpack.c.b16 %v375, %v367
    %v624 = vpack.c.b16 %v376, %v368
    %v625 = vpack.c.b16 %v377, %v369
    %v626 = vpack.c.b16 %v378, %v370
    %v627 = vpack.c.b16 %v387, %v379
    %v628 = vpack.c.b16 %v388, %v380
    %v629 = vpack.c.b16 %v389, %v381
    %v630 = vpack.c.b16 %v390, %v382
    %v631 = vpack.c.b16 %v391, %v383
    %v632 = vpack.c.b16 %v392, %v384
    %v633 = vpack.c.b16 %v393, %v385
    %v634 = vpack.c.b16 %v394, %v386
    %v635 = vpack.c.b16 %v403, %v395
    %v636 = vpack.c.b16 %v404, %v396
    %v637 = vpack.c.b16 %v405, %v397
    %v638 = vpack.c.b16 %v406, %v398
    %v639 = vpack.c.b16 %v407, %v399
    %v640 = vpack.c.b16 %v408, %v400
    %v641 = vpack.c.b16 %v409, %v401
    %v642 = vpack.c.b16 %v410, %v402
    %v643 = vpack.c.b16 %v419, %v411
    %v644 = vpack.c.b16 %v420, %v412
    %v645 = vpack.c.b16 %v421, %v413
    %v646 = vpack.c.b16 %v422, %v414
    %v647 = vpack.c.b16 %v423, %v415
    %v648 = vpack.c.b16 %v424, %v416
    %v649 = vpack.c.b16 %v425, %v417
    %v650 = vpack.c.b16 %v426, %v418
    %v651 = vpack.c.b16 %v435, %v427
    %v652 = vpack.c.b16 %v436, %v428
    %v653 = vpack.c.b16 %v437, %v429
    %v654 = vpack.c.b16 %v438, %v430
    %v655 = vpack.c.b16 %v439, %v431
    %v656 = vpack.c.b16 %v440, %v432
    %v657 = vpack.c.b16 %v441, %v433
    %v658 = vpack.c.b16 %v442, %v434
    %v659 = vpack.c.b16 %v451, %v443
    %v660 = vpack.c.b16 %v452, %v444
    %v661 = vpack.c.b16 %v453, %v445
    %v662 = vpack.c.b16 %v454, %v446
    %v663 = vpack.c.b16 %v455, %v447
    %v664 = vpack.c.b16 %v456, %v448
    %v665 = vpack.c.b16 %v457, %v449
    %v666 = vpack.c.b16 %v458, %v450
    %v667 = vpack.c.b16 %v467, %v459
    %v668 = vpack.c.b16 %v468, %v460
    %v669 = vpack.c.b16 %v469, %v461
    %v670 = vpack.c.b16 %v470, %v462
    %v671 = vpack.c.b16 %v471, %v463
    %v672 = vpack.c.b16 %v472, %v464
    %v673 = vpack.c.b16 %v473, %v465
    %v674 = vpack.c.b16 %v474, %v466
    %v675 = vpack.c.b16 %v483, %v475
    %v676 = vpack.c.b16 %v484, %v476
    %v677 = vpack.c.b16 %v485, %v477
    %v678 = vpack.c.b16 %v486, %v478
    %v679 = vpack.c.b16 %v487, %v479
    %v680 = vpack.c.b16 %v488, %v480
    %v681 = vpack.c.b16 %v489, %v481
    %v682 = vpack.c.b16 %v490, %v482
    %v683 = vpack.c.b16 %v499, %v491
    %v684 = vpack.c.b16 %v500, %v492
    %v685 = vpack.c.b16 %v501, %v493
    %v686 = vpack.c.b16 %v502, %v494
    %v687 = vpack.c.b16 %v503, %v495
    %v688 = vpack.c.b16 %v504, %v496
    %v689 = vpack.c.b16 %v505, %v497
    %v690 = vpack.c.b16 %v506, %v498
    %v691 = vpack.c.b16 %v515, %v507
    %v692 = vpack.c.b16 %v516, %v508
    %v693 = vpack.c.b16 %v517, %v509
    %v694 = vpack.c.b16 %v518, %v510
    %v695 = vpack.c.b16 %v519, %v511
    %v696 = vpack.c.b16 %v520, %v512
    %v697 = vpack.c.b16 %v521, %v513
    %v698 = vpack.c.b16 %v522, %v514
    %v699 = vpack.c.b16 %v531, %v523
    %v700 = vpack.c.b16 %v532, %v524
    %v701 = vpack.c.b16 %v533, %v525
    %v702 = vpack.c.b16 %v534, %v526
    %v703 = vpack.c.b16 %v535, %v527
    %v704 = vpack.c.b16 %v536, %v528
    %v705 = vpack.c.b16 %v537, %v529
    %v706 = vpack.c.b16 %v538, %v530
    %v707 = vpack.c.b16 %v547, %v539
    %v708 = vpack.c.b16 %v548, %v540
    %v709 = vpack.c.b16 %v549, %v541
    %v710 = vpack.c.b16 %v550, %v542
    %v711 = vpack.c.b16 %v551, %v543
    %v712 = vpack.c.b16 %v552, %v544
    %v713 = vpack.c.b16 %v553, %v545
    %v714 = vpack.c.b16 %v554, %v546
    %v715 = vpack.c.b16 %v563, %v555
    %v716 = vpack.c.b16 %v564, %v556
    %v717 = vpack.c.b16 %v565, %v557
    %v718 = vpack.c.b16 %v566, %v558
    %v719 = vpack.c.b16 %v567, %v559
    %v720 = vpack.c.b16 %v568, %v560
    %v721 = vpack.c.b16 %v569, %v561
    %v722 = vpack.c.b16 %v570, %v562
    %v723 = vpack.c.b16 %v579, %v571
    %v724 = vpack.c.b16 %v580, %v572
    %v725 = vpack.c.b16 %v581, %v573
    %v726 = vpack.c.b16 %v582, %v574
    %v727 = vpack.c.b16 %v583, %v575
    %v728 = vpack.c.b16 %v584, %v576
    %v729 = vpack.c.b16 %v585, %v577
    %v730 = vpack.c.b16 %v586, %v578
    %v731 = vpack.c.b16 %v595, %v587
    %v732 = vpack.c.b16 %v596, %v588
    %v733 = vpack.c.b16 %v597, %v589
    %v734 = vpack.c.b16 %v598, %v590
    %v735 = vpack.c.b16 %v599, %v591
    %v736 = vpack.c.b16 %v600, %v592
    %v737 = vpack.c.b16 %v601, %v593
    %v738 = vpack.c.b16 %v602, %v594
    %v739 = vpack.c.b16 %v611, %v603
    %v740 = vpack.c.b16 %v612, %v604
    %v741 = vpack.c.b16 %v613, %v605
    %v742 = vpack.c.b16 %v614, %v606
    %v743 = vpack.c.b16 %v615, %v607
    %v744 = vpack.c.b16 %v616, %v608
    %v745 = vpack.c.b16 %v617, %v609
    %v746 = vpack.c.b16 %v618, %v610
    %v876 = vlaneseq
    %v877 = vshrl.u32 %v876, 7
    %v878 = vsub.s32 0, %v877
    %v879 = vrot.slane %v234, %v878
    %v880 = vlaneseq
    %v881 = vshrl.u32 %v880, 7
    %v882 = vsub.s32 1, %v881
    %v883 = vrot.slane %v234, %v882
    %v884 = vlaneseq
    %v885 = vshrl.u32 %v884, 7
    %v886 = vsub.s32 2, %v885
    %v887 = vrot.slane %v234, %v886
    %v888 = vlaneseq
    %v889 = vshrl.u32 %v888, 7
    %v890 = vsub.s32 3, %v889
    %v891 = vrot.slane %v234, %v890
    %v892 = vlaneseq
    %v893 = vshrl.u32 %v892, 7
    %v894 = vsub.s32 4, %v893
    %v895 = vrot.slane %v234, %v894
    %v896 = vlaneseq
    %v897 = vshrl.u32 %v896, 7
    %v898 = vsub.s32 5, %v897
    %v899 = vrot.slane %v234, %v898
    %v900 = vlaneseq
    %v901 = vshrl.u32 %v900, 7
    %v902 = vsub.s32 6, %v901
    %v903 = vrot.slane %v234, %v902
    %v904 = vlaneseq
    %v905 = vshrl.u32 %v904, 7
    %v906 = vsub.s32 7, %v905
    %v907 = vrot.slane %v234, %v906
    %916 = vmatprep.subr.bf16.mxu0 %v620
    %917 = vmatpush1.bf16.msra.mxu0 %v619
    %918 = vmatprep.subr.bf16.mxu0 %v628
    %919 = vmatpush1.bf16.msra.mxu0 %v627
    %920 = vmatprep.subr.bf16.mxu0 %v636
    %921 = vmatpush1.bf16.msra.mxu0 %v635
    %922 = vmatprep.subr.bf16.mxu0 %v644
    %923 = vmatpush1.bf16.msra.mxu0 %v643
    %924 = vmatprep.subr.bf16.mxu0 %v652
    %925 = vmatpush1.bf16.msra.mxu0 %v651
    %926 = vmatprep.subr.bf16.mxu0 %v660
    %927 = vmatpush1.bf16.msra.mxu0 %v659
    %928 = vmatprep.subr.bf16.mxu0 %v668
    %929 = vmatpush1.bf16.msra.mxu0 %v667
    %930 = vmatprep.subr.bf16.mxu0 %v676
    %931 = vmatpush1.bf16.msra.mxu0 %v675
    %932 = vmatprep.subr.bf16.mxu0 %v684
    %933 = vmatpush1.bf16.msra.mxu0 %v683
    %934 = vmatprep.subr.bf16.mxu0 %v692
    %935 = vmatpush1.bf16.msra.mxu0 %v691
    %936 = vmatprep.subr.bf16.mxu0 %v700
    %937 = vmatpush1.bf16.msra.mxu0 %v699
    %938 = vmatprep.subr.bf16.mxu0 %v708
    %939 = vmatpush1.bf16.msra.mxu0 %v707
    %940 = vmatprep.subr.bf16.mxu0 %v716
    %941 = vmatpush1.bf16.msra.mxu0 %v715
    %942 = vmatprep.subr.bf16.mxu0 %v724
    %943 = vmatpush1.bf16.msra.mxu0 %v723
    %944 = vmatprep.subr.bf16.mxu0 %v732
    %945 = vmatpush1.bf16.msra.mxu0 %v731
    %946 = vmatprep.subr.bf16.mxu0 %v740
    %947 = vmatpush1.bf16.msra.mxu0 %v739
    %948 = vmatprep.mubr.bf16.mxu0 %v231
    %949 = vmatmul.mubr.bf16.gmra.mrb[0].mxu0 %v230
    %v950 = vpop.f32.mrb[0].mxu0
    %v951 = vadd.f32 %v879, %v950
    %v952 = vpop.f32.mrb[0].mxu0
    %v953 = vadd.f32 %v883, %v952
    %v954 = vpop.f32.mrb[0].mxu0
    %v955 = vpop.f32.mrb[0].mxu0
    %956 = vdwg.mxu0
    %957 = vmatprep.subr.bf16.mxu0 %v622
    %958 = vmatpush1.bf16.msra.mxu0 %v621
    %959 = vmatprep.subr.bf16.mxu0 %v630
    %960 = vmatpush1.bf16.msra.mxu0 %v629
    %961 = vmatprep.subr.bf16.mxu0 %v638
    %962 = vmatpush1.bf16.msra.mxu0 %v637
    %963 = vmatprep.subr.bf16.mxu0 %v646
    %964 = vmatpush1.bf16.msra.mxu0 %v645
    %965 = vmatprep.subr.bf16.mxu0 %v654
    %966 = vmatpush1.bf16.msra.mxu0 %v653
    %967 = vmatprep.subr.bf16.mxu0 %v662
    %968 = vmatpush1.bf16.msra.mxu0 %v661
    %969 = vmatprep.subr.bf16.mxu0 %v670
    %970 = vmatpush1.bf16.msra.mxu0 %v669
    %971 = vmatprep.subr.bf16.mxu0 %v678
    %972 = vmatpush1.bf16.msra.mxu0 %v677
    %973 = vmatprep.subr.bf16.mxu0 %v686
    %974 = vmatpush1.bf16.msra.mxu0 %v685
    %975 = vmatprep.subr.bf16.mxu0 %v694
    %976 = vmatpush1.bf16.msra.mxu0 %v693
    %977 = vmatprep.subr.bf16.mxu0 %v702
    %978 = vmatpush1.bf16.msra.mxu0 %v701
    %979 = vmatprep.subr.bf16.mxu0 %v710
    %980 = vmatpush1.bf16.msra.mxu0 %v709
    %981 = vmatprep.subr.bf16.mxu0 %v718
    %982 = vmatpush1.bf16.msra.mxu0 %v717
    %983 = vmatprep.subr.bf16.mxu0 %v726
    %984 = vmatpush1.bf16.msra.mxu0 %v725
    %985 = vmatprep.subr.bf16.mxu0 %v734
    %986 = vmatpush1.bf16.msra.mxu0 %v733
    %987 = vmatprep.subr.bf16.mxu0 %v742
    %988 = vmatpush1.bf16.msra.mxu0 %v741
    %989 = vmatprep.mubr.bf16.mxu0 %v231
    %990 = vmatmul.mubr.bf16.gmra.mrb[0].mxu0 %v230
    %v991 = vpop.f32.mrb[0].mxu0
    %v992 = vadd.f32 %v887, %v991
    %v993 = vpop.f32.mrb[0].mxu0
    %v994 = vadd.f32 %v891, %v993
    %v995 = vpop.f32.mrb[0].mxu0
    %v996 = vpop.f32.mrb[0].mxu0
    %997 = vdwg.mxu0
    %998 = vmatprep.subr.bf16.mxu0 %v624
    %999 = vmatpush1.bf16.msra.mxu0 %v623
    %1000 = vmatprep.subr.bf16.mxu0 %v632
    %1001 = vmatpush1.bf16.msra.mxu0 %v631
    %1002 = vmatprep.subr.bf16.mxu0 %v640
    %1003 = vmatpush1.bf16.msra.mxu0 %v639
    %1004 = vmatprep.subr.bf16.mxu0 %v648
    %1005 = vmatpush1.bf16.msra.mxu0 %v647
    %1006 = vmatprep.subr.bf16.mxu0 %v656
    %1007 = vmatpush1.bf16.msra.mxu0 %v655
    %1008 = vmatprep.subr.bf16.mxu0 %v664
    %1009 = vmatpush1.bf16.msra.mxu0 %v663
    %1010 = vmatprep.subr.bf16.mxu0 %v672
    %1011 = vmatpush1.bf16.msra.mxu0 %v671
    %1012 = vmatprep.subr.bf16.mxu0 %v680
    %1013 = vmatpush1.bf16.msra.mxu0 %v679
    %1014 = vmatprep.subr.bf16.mxu0 %v688
    %1015 = vmatpush1.bf16.msra.mxu0 %v687
    %1016 = vmatprep.subr.bf16.mxu0 %v696
    %1017 = vmatpush1.bf16.msra.mxu0 %v695
    %1018 = vmatprep.subr.bf16.mxu0 %v704
    %1019 = vmatpush1.bf16.msra.mxu0 %v703
    %1020 = vmatprep.subr.bf16.mxu0 %v712
    %1021 = vmatpush1.bf16.msra.mxu0 %v711
    %1022 = vmatprep.subr.bf16.mxu0 %v720
    %1023 = vmatpush1.bf16.msra.mxu0 %v719
    %1024 = vmatprep.subr.bf16.mxu0 %v728
    %1025 = vmatpush1.bf16.msra.mxu0 %v727
    %1026 = vmatprep.subr.bf16.mxu0 %v736
    %1027 = vmatpush1.bf16.msra.mxu0 %v735
    %1028 = vmatprep.subr.bf16.mxu0 %v744
    %1029 = vmatpush1.bf16.msra.mxu0 %v743
    %1030 = vmatprep.mubr.bf16.mxu0 %v231
    %1031 = vmatmul.mubr.bf16.gmra.mrb[0].mxu0 %v230
    %v1032 = vpop.f32.mrb[0].mxu0
    %v1033 = vadd.f32 %v895, %v1032
    %v1034 = vpop.f32.mrb[0].mxu0
    %v1035 = vadd.f32 %v899, %v1034
    %v1036 = vpop.f32.mrb[0].mxu0
    %v1037 = vpop.f32.mrb[0].mxu0
    %1038 = vdwg.mxu0
    %1039 = vmatprep.subr.bf16.mxu0 %v626
    %1040 = vmatpush1.bf16.msra.mxu0 %v625
    %1041 = vmatprep.subr.bf16.mxu0 %v634
    %1042 = vmatpush1.bf16.msra.mxu0 %v633
    %1043 = vmatprep.subr.bf16.mxu0 %v642
    %1044 = vmatpush1.bf16.msra.mxu0 %v641
    %1045 = vmatprep.subr.bf16.mxu0 %v650
    %1046 = vmatpush1.bf16.msra.mxu0 %v649
    %1047 = vmatprep.subr.bf16.mxu0 %v658
    %1048 = vmatpush1.bf16.msra.mxu0 %v657
    %1049 = vmatprep.subr.bf16.mxu0 %v666
    %1050 = vmatpush1.bf16.msra.mxu0 %v665
    %1051 = vmatprep.subr.bf16.mxu0 %v674
    %1052 = vmatpush1.bf16.msra.mxu0 %v673
    %1053 = vmatprep.subr.bf16.mxu0 %v682
    %1054 = vmatpush1.bf16.msra.mxu0 %v681
    %1055 = vmatprep.subr.bf16.mxu0 %v690
    %1056 = vmatpush1.bf16.msra.mxu0 %v689
    %1057 = vmatprep.subr.bf16.mxu0 %v698
    %1058 = vmatpush1.bf16.msra.mxu0 %v697
    %1059 = vmatprep.subr.bf16.mxu0 %v706
    %1060 = vmatpush1.bf16.msra.mxu0 %v705
    %1061 = vmatprep.subr.bf16.mxu0 %v714
    %1062 = vmatpush1.bf16.msra.mxu0 %v713
    %1063 = vmatprep.subr.bf16.mxu0 %v722
    %1064 = vmatpush1.bf16.msra.mxu0 %v721
    %1065 = vmatprep.subr.bf16.mxu0 %v730
    %1066 = vmatpush1.bf16.msra.mxu0 %v729
    %1067 = vmatprep.subr.bf16.mxu0 %v738
    %1068 = vmatpush1.bf16.msra.mxu0 %v737
    %1069 = vmatprep.subr.bf16.mxu0 %v746
    %1070 = vmatpush1.bf16.msra.mxu0 %v745
    %1071 = vmatprep.mubr.bf16.mxu0 %v231
    %1072 = vmatmul.mubr.bf16.gmra.mrb[0].mxu0 %v230
    %v1073 = vpop.f32.mrb[0].mxu0
    %v1074 = vadd.f32 %v903, %v1073
    %v1075 = vpop.f32.mrb[0].mxu0
    %v1076 = vadd.f32 %v907, %v1075
    %v1077 = vpop.f32.mrb[0].mxu0
    %v1078 = vpop.f32.mrb[0].mxu0
    %1079 = vdwg.mxu0
    %v1080 = vlaneseq
    %v1081 = vshrl.u32 %v1080, 7
    %v1082 = vsub.s32 0, %v1081
    %v1083 = vrot.slane %v67, %v1082
    %v1084 = vlaneseq
    %v1085 = vshrl.u32 %v1084, 7
    %v1086 = vsub.s32 1, %v1085
    %v1087 = vrot.slane %v67, %v1086
    %v1088 = vlaneseq
    %v1089 = vshrl.u32 %v1088, 7
    %v1090 = vsub.s32 2, %v1089
    %v1091 = vrot.slane %v67, %v1090
    %v1092 = vlaneseq
    %v1093 = vshrl.u32 %v1092, 7
    %v1094 = vsub.s32 3, %v1093
    %v1095 = vrot.slane %v67, %v1094
    %v1096 = vlaneseq
    %v1097 = vshrl.u32 %v1096, 7
    %v1098 = vsub.s32 4, %v1097
    %v1099 = vrot.slane %v67, %v1098
    %v1100 = vlaneseq
    %v1101 = vshrl.u32 %v1100, 7
    %v1102 = vsub.s32 5, %v1101
    %v1103 = vrot.slane %v67, %v1102
    %v1104 = vlaneseq
    %v1105 = vshrl.u32 %v1104, 7
    %v1106 = vsub.s32 6, %v1105
    %v1107 = vrot.slane %v67, %v1106
    %v1108 = vlaneseq
    %v1109 = vshrl.u32 %v1108, 7
    %v1110 = vsub.s32 7, %v1109
    %v1111 = vrot.slane %v67, %v1110
    %v1120 = vadd.f32 %v951, %v1083
    %v1121 = vadd.f32 %v953, %v1087
    %v1122 = vadd.f32 %v992, %v1091
    %v1123 = vadd.f32 %v994, %v1095
    %v1124 = vadd.f32 %v1033, %v1099
    %v1125 = vadd.f32 %v1035, %v1103
    %v1126 = vadd.f32 %v1074, %v1107
    %v1127 = vadd.f32 %v1076, %v1111
    %v1128 = vxor.u32 %v1120, 2147483648
    %v1129 = vxor.u32 %v1121, 2147483648
    %v1130 = vmul.f32 %v1128, 1.442695
    %v1131 = vpow.pop %v1130
    %v1132 = vmul.f32 %v1129, 1.442695
    %v1133 = vpow.pop %v1132
    %v1134 = vadd.f32 %v1131, 1.0
    %v1135 = vadd.f32 %v1133, 1.0
    %v1136 = vrcp.pop %v1134
    %v1137 = vmul.f32 1.0, %v1136
    %v1138 = vrcp.pop %v1135
    %v1139 = vmul.f32 1.0, %v1138
    %v1140 = vxor.u32 %v1122, 2147483648
    %v1141 = vxor.u32 %v1123, 2147483648
    %v1142 = vmul.f32 %v1140, 1.442695
    %v1143 = vpow.pop %v1142
    %v1144 = vmul.f32 %v1141, 1.442695
    %v1145 = vpow.pop %v1144
    %v1146 = vadd.f32 %v1143, 1.0
    %v1147 = vadd.f32 %v1145, 1.0
    %v1148 = vrcp.pop %v1146
    %v1149 = vmul.f32 1.0, %v1148
    %v1150 = vrcp.pop %v1147
    %v1151 = vmul.f32 1.0, %v1150
    %v1152 = vtanh.pop %v1124
    %v1153 = vtanh.pop %v1125
    %v1154 = vxor.u32 %v1126, 2147483648
    %v1155 = vxor.u32 %v1127, 2147483648
    %v1156 = vmul.f32 %v1154, 1.442695
    %v1157 = vpow.pop %v1156
    %v1158 = vmul.f32 %v1155, 1.442695
    %v1159 = vpow.pop %v1158
    %v1160 = vadd.f32 %v1157, 1.0
    %v1161 = vadd.f32 %v1159, 1.0
    %v1162 = vrcp.pop %v1160
    %v1163 = vmul.f32 1.0, %v1162
    %v1164 = vrcp.pop %v1161
    %v1165 = vmul.f32 1.0, %v1164
    %v1166 = vmul.f32 %v1149, %v227
    %v1167 = vmul.f32 %v1151, 0.0
    %v1168 = vmul.f32 %v1137, %v1152
    %v1169 = vmul.f32 %v1139, %v1153
    %v1170 = vadd.f32 %v1166, %v1168
    %v1171 = vadd.f32 %v1167, %v1169
    %v1172 = vtanh.pop %v1170
    %v1173 = vtanh.pop %v1171
    %v1174 = vmul.f32 %v1163, %v1172
    %v1175 = vmul.f32 %v1165, %v1173
    %v1176 = vpack.c.bf16 %v1174, %v1174
    %v1177 = vpack.c.bf16 %v1175, %v1175
    %s1178 = sld [smem:[#allocation2 + $0x2]]
    %v1179 = vstv %s1178
    %v1180 = vmul.f32 %v1179, %v66
    %v1182 = vlaneseq
    %v1183 = vshrl.u32 %v1182, 7
    %v1184 = vsub.s32 0, %v1183
    %v1185 = vrot.slane %v1180, %v1184
    %v1186 = vlaneseq
    %v1187 = vshrl.u32 %v1186, 7
    %v1188 = vsub.s32 1, %v1187
    %v1189 = vrot.slane %v1180, %v1188
    %v1190 = vlaneseq
    %v1191 = vshrl.u32 %v1190, 7
    %v1192 = vsub.s32 2, %v1191
    %v1193 = vrot.slane %v1180, %v1192
    %v1194 = vlaneseq
    %v1195 = vshrl.u32 %v1194, 7
    %v1196 = vsub.s32 3, %v1195
    %v1197 = vrot.slane %v1180, %v1196
    %v1198 = vlaneseq
    %v1199 = vshrl.u32 %v1198, 7
    %v1200 = vsub.s32 4, %v1199
    %v1201 = vrot.slane %v1180, %v1200
    %v1202 = vlaneseq
    %v1203 = vshrl.u32 %v1202, 7
    %v1204 = vsub.s32 5, %v1203
    %v1205 = vrot.slane %v1180, %v1204
    %v1206 = vlaneseq
    %v1207 = vshrl.u32 %v1206, 7
    %v1208 = vsub.s32 6, %v1207
    %v1209 = vrot.slane %v1180, %v1208
    %v1210 = vlaneseq
    %v1211 = vshrl.u32 %v1210, 7
    %v1212 = vsub.s32 7, %v1211
    %v1213 = vrot.slane %v1180, %v1212
    %1222 = vmatprep.subr.bf16.mxu0 %v620
    %1223 = vmatpush1.bf16.msra.mxu0 %v619
    %1224 = vmatprep.subr.bf16.mxu0 %v628
    %1225 = vmatpush1.bf16.msra.mxu0 %v627
    %1226 = vmatprep.subr.bf16.mxu0 %v636
    %1227 = vmatpush1.bf16.msra.mxu0 %v635
    %1228 = vmatprep.subr.bf16.mxu0 %v644
    %1229 = vmatpush1.bf16.msra.mxu0 %v643
    %1230 = vmatprep.subr.bf16.mxu0 %v652
    %1231 = vmatpush1.bf16.msra.mxu0 %v651
    %1232 = vmatprep.subr.bf16.mxu0 %v660
    %1233 = vmatpush1.bf16.msra.mxu0 %v659
    %1234 = vmatprep.subr.bf16.mxu0 %v668
    %1235 = vmatpush1.bf16.msra.mxu0 %v667
    %1236 = vmatprep.subr.bf16.mxu0 %v676
    %1237 = vmatpush1.bf16.msra.mxu0 %v675
    %1238 = vmatprep.subr.bf16.mxu0 %v684
    %1239 = vmatpush1.bf16.msra.mxu0 %v683
    %1240 = vmatprep.subr.bf16.mxu0 %v692
    %1241 = vmatpush1.bf16.msra.mxu0 %v691
    %1242 = vmatprep.subr.bf16.mxu0 %v700
    %1243 = vmatpush1.bf16.msra.mxu0 %v699
    %1244 = vmatprep.subr.bf16.mxu0 %v708
    %1245 = vmatpush1.bf16.msra.mxu0 %v707
    %1246 = vmatprep.subr.bf16.mxu0 %v716
    %1247 = vmatpush1.bf16.msra.mxu0 %v715
    %1248 = vmatprep.subr.bf16.mxu0 %v724
    %1249 = vmatpush1.bf16.msra.mxu0 %v723
    %1250 = vmatprep.subr.bf16.mxu0 %v732
    %1251 = vmatpush1.bf16.msra.mxu0 %v731
    %1252 = vmatprep.subr.bf16.mxu0 %v740
    %1253 = vmatpush1.bf16.msra.mxu0 %v739
    %1254 = vmatprep.mubr.bf16.mxu0 %v1177
    %1255 = vmatmul.mubr.bf16.gmra.mrb[0].mxu0 %v1176
    %v1256 = vpop.f32.mrb[0].mxu0
    %v1257 = vadd.f32 %v1185, %v1256
    %v1258 = vpop.f32.mrb[0].mxu0
    %v1259 = vadd.f32 %v1189, %v1258
    %v1260 = vpop.f32.mrb[0].mxu0
    %v1261 = vpop.f32.mrb[0].mxu0
    %1262 = vdwg.mxu0
    %1263 = vmatprep.subr.bf16.mxu0 %v622
    %1264 = vmatpush1.bf16.msra.mxu0 %v621
    %1265 = vmatprep.subr.bf16.mxu0 %v630
    %1266 = vmatpush1.bf16.msra.mxu0 %v629
    %1267 = vmatprep.subr.bf16.mxu0 %v638
    %1268 = vmatpush1.bf16.msra.mxu0 %v637
    %1269 = vmatprep.subr.bf16.mxu0 %v646
    %1270 = vmatpush1.bf16.msra.mxu0 %v645
    %1271 = vmatprep.subr.bf16.mxu0 %v654
    %1272 = vmatpush1.bf16.msra.mxu0 %v653
    %1273 = vmatprep.subr.bf16.mxu0 %v662
    %1274 = vmatpush1.bf16.msra.mxu0 %v661
    %1275 = vmatprep.subr.bf16.mxu0 %v670
    %1276 = vmatpush1.bf16.msra.mxu0 %v669
    %1277 = vmatprep.subr.bf16.mxu0 %v678
    %1278 = vmatpush1.bf16.msra.mxu0 %v677
    %1279 = vmatprep.subr.bf16.mxu0 %v686
    %1280 = vmatpush1.bf16.msra.mxu0 %v685
    %1281 = vmatprep.subr.bf16.mxu0 %v694
    %1282 = vmatpush1.bf16.msra.mxu0 %v693
    %1283 = vmatprep.subr.bf16.mxu0 %v702
    %1284 = vmatpush1.bf16.msra.mxu0 %v701
    %1285 = vmatprep.subr.bf16.mxu0 %v710
    %1286 = vmatpush1.bf16.msra.mxu0 %v709
    %1287 = vmatprep.subr.bf16.mxu0 %v718
    %1288 = vmatpush1.bf16.msra.mxu0 %v717
    %1289 = vmatprep.subr.bf16.mxu0 %v726
    %1290 = vmatpush1.bf16.msra.mxu0 %v725
    %1291 = vmatprep.subr.bf16.mxu0 %v734
    %1292 = vmatpush1.bf16.msra.mxu0 %v733
    %1293 = vmatprep.subr.bf16.mxu0 %v742
    %1294 = vmatpush1.bf16.msra.mxu0 %v741
    %1295 = vmatprep.mubr.bf16.mxu0 %v1177
    %1296 = vmatmul.mubr.bf16.gmra.mrb[0].mxu0 %v1176
    %v1297 = vpop.f32.mrb[0].mxu0
    %v1298 = vadd.f32 %v1193, %v1297
    %v1299 = vpop.f32.mrb[0].mxu0
    %v1300 = vadd.f32 %v1197, %v1299
    %v1301 = vpop.f32.mrb[0].mxu0
    %v1302 = vpop.f32.mrb[0].mxu0
    %1303 = vdwg.mxu0
    %1304 = vmatprep.subr.bf16.mxu0 %v624
    %1305 = vmatpush1.bf16.msra.mxu0 %v623
    %1306 = vmatprep.subr.bf16.mxu0 %v632
    %1307 = vmatpush1.bf16.msra.mxu0 %v631
    %1308 = vmatprep.subr.bf16.mxu0 %v640
    %1309 = vmatpush1.bf16.msra.mxu0 %v639
    %1310 = vmatprep.subr.bf16.mxu0 %v648
    %1311 = vmatpush1.bf16.msra.mxu0 %v647
    %1312 = vmatprep.subr.bf16.mxu0 %v656
    %1313 = vmatpush1.bf16.msra.mxu0 %v655
    %1314 = vmatprep.subr.bf16.mxu0 %v664
    %1315 = vmatpush1.bf16.msra.mxu0 %v663
    %1316 = vmatprep.subr.bf16.mxu0 %v672
    %1317 = vmatpush1.bf16.msra.mxu0 %v671
    %1318 = vmatprep.subr.bf16.mxu0 %v680
    %1319 = vmatpush1.bf16.msra.mxu0 %v679
    %1320 = vmatprep.subr.bf16.mxu0 %v688
    %1321 = vmatpush1.bf16.msra.mxu0 %v687
    %1322 = vmatprep.subr.bf16.mxu0 %v696
    %1323 = vmatpush1.bf16.msra.mxu0 %v695
    %1324 = vmatprep.subr.bf16.mxu0 %v704
    %1325 = vmatpush1.bf16.msra.mxu0 %v703
    %1326 = vmatprep.subr.bf16.mxu0 %v712
    %1327 = vmatpush1.bf16.msra.mxu0 %v711
    %1328 = vmatprep.subr.bf16.mxu0 %v720
    %1329 = vmatpush1.bf16.msra.mxu0 %v719
    %1330 = vmatprep.subr.bf16.mxu0 %v728
    %1331 = vmatpush1.bf16.msra.mxu0 %v727
    %1332 = vmatprep.subr.bf16.mxu0 %v736
    %1333 = vmatpush1.bf16.msra.mxu0 %v735
    %1334 = vmatprep.subr.bf16.mxu0 %v744
    %1335 = vmatpush1.bf16.msra.mxu0 %v743
    %1336 = vmatprep.mubr.bf16.mxu0 %v1177
    %1337 = vmatmul.mubr.bf16.gmra.mrb[0].mxu0 %v1176
    %v1338 = vpop.f32.mrb[0].mxu0
    %v1339 = vadd.f32 %v1201, %v1338
    %v1340 = vpop.f32.mrb[0].mxu0
    %v1341 = vadd.f32 %v1205, %v1340
    %v1342 = vpop.f32.mrb[0].mxu0
    %v1343 = vpop.f32.mrb[0].mxu0
    %1344 = vdwg.mxu0
    %1345 = vmatprep.subr.bf16.mxu0 %v626
    %1346 = vmatpush1.bf16.msra.mxu0 %v625
    %1347 = vmatprep.subr.bf16.mxu0 %v634
    %1348 = vmatpush1.bf16.msra.mxu0 %v633
    %1349 = vmatprep.subr.bf16.mxu0 %v642
    %1350 = vmatpush1.bf16.msra.mxu0 %v641
    %1351 = vmatprep.subr.bf16.mxu0 %v650
    %1352 = vmatpush1.bf16.msra.mxu0 %v649
    %1353 = vmatprep.subr.bf16.mxu0 %v658
    %1354 = vmatpush1.bf16.msra.mxu0 %v657
    %1355 = vmatprep.subr.bf16.mxu0 %v666
    %1356 = vmatpush1.bf16.msra.mxu0 %v665
    %1357 = vmatprep.subr.bf16.mxu0 %v674
    %1358 = vmatpush1.bf16.msra.mxu0 %v673
    %1359 = vmatprep.subr.bf16.mxu0 %v682
    %1360 = vmatpush1.bf16.msra.mxu0 %v681
    %1361 = vmatprep.subr.bf16.mxu0 %v690
    %1362 = vmatpush1.bf16.msra.mxu0 %v689
    %1363 = vmatprep.subr.bf16.mxu0 %v698
    %1364 = vmatpush1.bf16.msra.mxu0 %v697
    %1365 = vmatprep.subr.bf16.mxu0 %v706
    %1366 = vmatpush1.bf16.msra.mxu0 %v705
    %1367 = vmatprep.subr.bf16.mxu0 %v714
    %1368 = vmatpush1.bf16.msra.mxu0 %v713
    %1369 = vmatprep.subr.bf16.mxu0 %v722
    %1370 = vmatpush1.bf16.msra.mxu0 %v721
    %1371 = vmatprep.subr.bf16.mxu0 %v730
    %1372 = vmatpush1.bf16.msra.mxu0 %v729
    %1373 = vmatprep.subr.bf16.mxu0 %v738
    %1374 = vmatpush1.bf16.msra.mxu0 %v737
    %1375 = vmatprep.subr.bf16.mxu0 %v746
    %1376 = vmatpush1.bf16.msra.mxu0 %v745
    %1377 = vmatprep.mubr.bf16.mxu0 %v1177
    %1378 = vmatmul.mubr.bf16.gmra.mrb[0].mxu0 %v1176
    %v1379 = vpop.f32.mrb[0].mxu0
    %v1380 = vadd.f32 %v1209, %v1379
    %v1381 = vpop.f32.mrb[0].mxu0
    %v1382 = vadd.f32 %v1213, %v1381
    %v1383 = vpop.f32.mrb[0].mxu0
    %v1384 = vpop.f32.mrb[0].mxu0
    %1385 = vdwg.mxu0
    %v1386 = vadd.f32 %v1257, %v1083
    %v1387 = vadd.f32 %v1259, %v1087
    %v1388 = vadd.f32 %v1298, %v1091
    %v1389 = vadd.f32 %v1300, %v1095
    %v1390 = vadd.f32 %v1339, %v1099
    %v1391 = vadd.f32 %v1341, %v1103
    %v1392 = vadd.f32 %v1380, %v1107
    %v1393 = vadd.f32 %v1382, %v1111
    %v1394 = vxor.u32 %v1386, 2147483648
    %v1395 = vxor.u32 %v1387, 2147483648
    %v1396 = vmul.f32 %v1394, 1.442695
    %v1397 = vpow.pop %v1396
    %v1398 = vmul.f32 %v1395, 1.442695
    %v1399 = vpow.pop %v1398
    %v1400 = vadd.f32 %v1397, 1.0
    %v1401 = vadd.f32 %v1399, 1.0
    %v1402 = vrcp.pop %v1400
    %v1403 = vmul.f32 1.0, %v1402
    %v1404 = vrcp.pop %v1401
    %v1405 = vmul.f32 1.0, %v1404
    %v1406 = vxor.u32 %v1388, 2147483648
    %v1407 = vxor.u32 %v1389, 2147483648
    %v1408 = vmul.f32 %v1406, 1.442695
    %v1409 = vpow.pop %v1408
    %v1410 = vmul.f32 %v1407, 1.442695
    %v1411 = vpow.pop %v1410
    %v1412 = vadd.f32 %v1409, 1.0
    %v1413 = vadd.f32 %v1411, 1.0
    %v1414 = vrcp.pop %v1412
    %v1415 = vmul.f32 1.0, %v1414
    %v1416 = vrcp.pop %v1413
    %v1417 = vmul.f32 1.0, %v1416
    %v1418 = vtanh.pop %v1390
    %v1419 = vtanh.pop %v1391
    %v1420 = vxor.u32 %v1392, 2147483648
    %v1421 = vxor.u32 %v1393, 2147483648
    %v1422 = vmul.f32 %v1420, 1.442695
    %v1423 = vpow.pop %v1422
    %v1424 = vmul.f32 %v1421, 1.442695
    %v1425 = vpow.pop %v1424
    %v1426 = vadd.f32 %v1423, 1.0
    %v1427 = vadd.f32 %v1425, 1.0
    %v1428 = vrcp.pop %v1426
    %v1429 = vmul.f32 1.0, %v1428
    %v1430 = vrcp.pop %v1427
    %v1431 = vmul.f32 1.0, %v1430
    %v1432 = vmul.f32 %v1415, %v1170
    %v1433 = vmul.f32 %v1417, %v1171
    %v1434 = vmul.f32 %v1403, %v1418
    %v1435 = vmul.f32 %v1405, %v1419
    %v1436 = vadd.f32 %v1432, %v1434
    %v1437 = vadd.f32 %v1433, %v1435
    %v1438 = vtanh.pop %v1436
    %v1439 = vtanh.pop %v1437
    %v1440 = vmul.f32 %v1429, %v1438
    %v1441 = vmul.f32 %v1431, %v1439
    %v1442 = vpack.c.bf16 %v1440, %v1440
    %v1443 = vpack.c.bf16 %v1441, %v1441
    %s1444 = sld [smem:[#allocation2 + $0x3]]
    %v1445 = vstv %s1444
    %v1446 = vmul.f32 %v1445, %v66
    %v1448 = vlaneseq
    %v1449 = vshrl.u32 %v1448, 7
    %v1450 = vsub.s32 0, %v1449
    %v1451 = vrot.slane %v1446, %v1450
    %v1452 = vlaneseq
    %v1453 = vshrl.u32 %v1452, 7
    %v1454 = vsub.s32 1, %v1453
    %v1455 = vrot.slane %v1446, %v1454
    %v1456 = vlaneseq
    %v1457 = vshrl.u32 %v1456, 7
    %v1458 = vsub.s32 2, %v1457
    %v1459 = vrot.slane %v1446, %v1458
    %v1460 = vlaneseq
    %v1461 = vshrl.u32 %v1460, 7
    %v1462 = vsub.s32 3, %v1461
    %v1463 = vrot.slane %v1446, %v1462
    %v1464 = vlaneseq
    %v1465 = vshrl.u32 %v1464, 7
    %v1466 = vsub.s32 4, %v1465
    %v1467 = vrot.slane %v1446, %v1466
    %v1468 = vlaneseq
    %v1469 = vshrl.u32 %v1468, 7
    %v1470 = vsub.s32 5, %v1469
    %v1471 = vrot.slane %v1446, %v1470
    %v1472 = vlaneseq
    %v1473 = vshrl.u32 %v1472, 7
    %v1474 = vsub.s32 6, %v1473
    %v1475 = vrot.slane %v1446, %v1474
    %v1476 = vlaneseq
    %v1477 = vshrl.u32 %v1476, 7
    %v1478 = vsub.s32 7, %v1477
    %v1479 = vrot.slane %v1446, %v1478
    %1488 = vmatprep.subr.bf16.mxu0 %v620
    %1489 = vmatpush1.bf16.msra.mxu0 %v619
    %1490 = vmatprep.subr.bf16.mxu0 %v628
    %1491 = vmatpush1.bf16.msra.mxu0 %v627
    %1492 = vmatprep.subr.bf16.mxu0 %v636
    %1493 = vmatpush1.bf16.msra.mxu0 %v635
    %1494 = vmatprep.subr.bf16.mxu0 %v644
    %1495 = vmatpush1.bf16.msra.mxu0 %v643
    %1496 = vmatprep.subr.bf16.mxu0 %v652
    %1497 = vmatpush1.bf16.msra.mxu0 %v651
    %1498 = vmatprep.subr.bf16.mxu0 %v660
    %1499 = vmatpush1.bf16.msra.mxu0 %v659
    %1500 = vmatprep.subr.bf16.mxu0 %v668
    %1501 = vmatpush1.bf16.msra.mxu0 %v667
    %1502 = vmatprep.subr.bf16.mxu0 %v676
    %1503 = vmatpush1.bf16.msra.mxu0 %v675
    %1504 = vmatprep.subr.bf16.mxu0 %v684
    %1505 = vmatpush1.bf16.msra.mxu0 %v683
    %1506 = vmatprep.subr.bf16.mxu0 %v692
    %1507 = vmatpush1.bf16.msra.mxu0 %v691
    %1508 = vmatprep.subr.bf16.mxu0 %v700
    %1509 = vmatpush1.bf16.msra.mxu0 %v699
    %1510 = vmatprep.subr.bf16.mxu0 %v708
    %1511 = vmatpush1.bf16.msra.mxu0 %v707
    %1512 = vmatprep.subr.bf16.mxu0 %v716
    %1513 = vmatpush1.bf16.msra.mxu0 %v715
    %1514 = vmatprep.subr.bf16.mxu0 %v724
    %1515 = vmatpush1.bf16.msra.mxu0 %v723
    %1516 = vmatprep.subr.bf16.mxu0 %v732
    %1517 = vmatpush1.bf16.msra.mxu0 %v731
    %1518 = vmatprep.subr.bf16.mxu0 %v740
    %1519 = vmatpush1.bf16.msra.mxu0 %v739
    %1520 = vmatprep.mubr.bf16.mxu0 %v1443
    %1521 = vmatmul.mubr.bf16.gmra.mrb[0].mxu0 %v1442
    %v1522 = vpop.f32.mrb[0].mxu0
    %v1523 = vadd.f32 %v1451, %v1522
    %v1524 = vpop.f32.mrb[0].mxu0
    %v1525 = vadd.f32 %v1455, %v1524
    %v1526 = vpop.f32.mrb[0].mxu0
    %v1527 = vpop.f32.mrb[0].mxu0
    %1528 = vdwg.mxu0
    %1529 = vmatprep.subr.bf16.mxu0 %v622
    %1530 = vmatpush1.bf16.msra.mxu0 %v621
    %1531 = vmatprep.subr.bf16.mxu0 %v630
    %1532 = vmatpush1.bf16.msra.mxu0 %v629
    %1533 = vmatprep.subr.bf16.mxu0 %v638
    %1534 = vmatpush1.bf16.msra.mxu0 %v637
    %1535 = vmatprep.subr.bf16.mxu0 %v646
    %1536 = vmatpush1.bf16.msra.mxu0 %v645
    %1537 = vmatprep.subr.bf16.mxu0 %v654
    %1538 = vmatpush1.bf16.msra.mxu0 %v653
    %1539 = vmatprep.subr.bf16.mxu0 %v662
    %1540 = vmatpush1.bf16.msra.mxu0 %v661
    %1541 = vmatprep.subr.bf16.mxu0 %v670
    %1542 = vmatpush1.bf16.msra.mxu0 %v669
    %1543 = vmatprep.subr.bf16.mxu0 %v678
    %1544 = vmatpush1.bf16.msra.mxu0 %v677
    %1545 = vmatprep.subr.bf16.mxu0 %v686
    %1546 = vmatpush1.bf16.msra.mxu0 %v685
    %1547 = vmatprep.subr.bf16.mxu0 %v694
    %1548 = vmatpush1.bf16.msra.mxu0 %v693
    %1549 = vmatprep.subr.bf16.mxu0 %v702
    %1550 = vmatpush1.bf16.msra.mxu0 %v701
    %1551 = vmatprep.subr.bf16.mxu0 %v710
    %1552 = vmatpush1.bf16.msra.mxu0 %v709
    %1553 = vmatprep.subr.bf16.mxu0 %v718
    %1554 = vmatpush1.bf16.msra.mxu0 %v717
    %1555 = vmatprep.subr.bf16.mxu0 %v726
    %1556 = vmatpush1.bf16.msra.mxu0 %v725
    %1557 = vmatprep.subr.bf16.mxu0 %v734
    %1558 = vmatpush1.bf16.msra.mxu0 %v733
    %1559 = vmatprep.subr.bf16.mxu0 %v742
    %1560 = vmatpush1.bf16.msra.mxu0 %v741
    %1561 = vmatprep.mubr.bf16.mxu0 %v1443
    %1562 = vmatmul.mubr.bf16.gmra.mrb[0].mxu0 %v1442
    %v1563 = vpop.f32.mrb[0].mxu0
    %v1564 = vadd.f32 %v1459, %v1563
    %v1565 = vpop.f32.mrb[0].mxu0
    %v1566 = vadd.f32 %v1463, %v1565
    %v1567 = vpop.f32.mrb[0].mxu0
    %v1568 = vpop.f32.mrb[0].mxu0
    %1569 = vdwg.mxu0
    %1570 = vmatprep.subr.bf16.mxu0 %v624
    %1571 = vmatpush1.bf16.msra.mxu0 %v623
    %1572 = vmatprep.subr.bf16.mxu0 %v632
    %1573 = vmatpush1.bf16.msra.mxu0 %v631
    %1574 = vmatprep.subr.bf16.mxu0 %v640
    %1575 = vmatpush1.bf16.msra.mxu0 %v639
    %1576 = vmatprep.subr.bf16.mxu0 %v648
    %1577 = vmatpush1.bf16.msra.mxu0 %v647
    %1578 = vmatprep.subr.bf16.mxu0 %v656
    %1579 = vmatpush1.bf16.msra.mxu0 %v655
    %1580 = vmatprep.subr.bf16.mxu0 %v664
    %1581 = vmatpush1.bf16.msra.mxu0 %v663
    %1582 = vmatprep.subr.bf16.mxu0 %v672
    %1583 = vmatpush1.bf16.msra.mxu0 %v671
    %1584 = vmatprep.subr.bf16.mxu0 %v680
    %1585 = vmatpush1.bf16.msra.mxu0 %v679
    %1586 = vmatprep.subr.bf16.mxu0 %v688
    %1587 = vmatpush1.bf16.msra.mxu0 %v687
    %1588 = vmatprep.subr.bf16.mxu0 %v696
    %1589 = vmatpush1.bf16.msra.mxu0 %v695
    %1590 = vmatprep.subr.bf16.mxu0 %v704
    %1591 = vmatpush1.bf16.msra.mxu0 %v703
    %1592 = vmatprep.subr.bf16.mxu0 %v712
    %1593 = vmatpush1.bf16.msra.mxu0 %v711
    %1594 = vmatprep.subr.bf16.mxu0 %v720
    %1595 = vmatpush1.bf16.msra.mxu0 %v719
    %1596 = vmatprep.subr.bf16.mxu0 %v728
    %1597 = vmatpush1.bf16.msra.mxu0 %v727
    %1598 = vmatprep.subr.bf16.mxu0 %v736
    %1599 = vmatpush1.bf16.msra.mxu0 %v735
    %1600 = vmatprep.subr.bf16.mxu0 %v744
    %1601 = vmatpush1.bf16.msra.mxu0 %v743
    %1602 = vmatprep.mubr.bf16.mxu0 %v1443
    %1603 = vmatmul.mubr.bf16.gmra.mrb[0].mxu0 %v1442
    %v1604 = vpop.f32.mrb[0].mxu0
    %v1605 = vadd.f32 %v1467, %v1604
    %v1606 = vpop.f32.mrb[0].mxu0
    %v1607 = vadd.f32 %v1471, %v1606
    %v1608 = vpop.f32.mrb[0].mxu0
    %v1609 = vpop.f32.mrb[0].mxu0
    %1610 = vdwg.mxu0
    %1611 = vmatprep.subr.bf16.mxu0 %v626
    %1612 = vmatpush1.bf16.msra.mxu0 %v625
    %1613 = vmatprep.subr.bf16.mxu0 %v634
    %1614 = vmatpush1.bf16.msra.mxu0 %v633
    %1615 = vmatprep.subr.bf16.mxu0 %v642
    %1616 = vmatpush1.bf16.msra.mxu0 %v641
    %1617 = vmatprep.subr.bf16.mxu0 %v650
    %1618 = vmatpush1.bf16.msra.mxu0 %v649
    %1619 = vmatprep.subr.bf16.mxu0 %v658
    %1620 = vmatpush1.bf16.msra.mxu0 %v657
    %1621 = vmatprep.subr.bf16.mxu0 %v666
    %1622 = vmatpush1.bf16.msra.mxu0 %v665
    %1623 = vmatprep.subr.bf16.mxu0 %v674
    %1624 = vmatpush1.bf16.msra.mxu0 %v673
    %1625 = vmatprep.subr.bf16.mxu0 %v682
    %1626 = vmatpush1.bf16.msra.mxu0 %v681
    %1627 = vmatprep.subr.bf16.mxu0 %v690
    %1628 = vmatpush1.bf16.msra.mxu0 %v689
    %1629 = vmatprep.subr.bf16.mxu0 %v698
    %1630 = vmatpush1.bf16.msra.mxu0 %v697
    %1631 = vmatprep.subr.bf16.mxu0 %v706
    %1632 = vmatpush1.bf16.msra.mxu0 %v705
    %1633 = vmatprep.subr.bf16.mxu0 %v714
    %1634 = vmatpush1.bf16.msra.mxu0 %v713
    %1635 = vmatprep.subr.bf16.mxu0 %v722
    %1636 = vmatpush1.bf16.msra.mxu0 %v721
    %1637 = vmatprep.subr.bf16.mxu0 %v730
    %1638 = vmatpush1.bf16.msra.mxu0 %v729
    %1639 = vmatprep.subr.bf16.mxu0 %v738
    %1640 = vmatpush1.bf16.msra.mxu0 %v737
    %1641 = vmatprep.subr.bf16.mxu0 %v746
    %1642 = vmatpush1.bf16.msra.mxu0 %v745
    %1643 = vmatprep.mubr.bf16.mxu0 %v1443
    %1644 = vmatmul.mubr.bf16.gmra.mrb[0].mxu0 %v1442
    %v1645 = vpop.f32.mrb[0].mxu0
    %v1646 = vadd.f32 %v1475, %v1645
    %v1647 = vpop.f32.mrb[0].mxu0
    %v1648 = vadd.f32 %v1479, %v1647
    %v1649 = vpop.f32.mrb[0].mxu0
    %v1650 = vpop.f32.mrb[0].mxu0
    %1651 = vdwg.mxu0
    %v1652 = vadd.f32 %v1523, %v1083
    %v1653 = vadd.f32 %v1525, %v1087
    %v1654 = vadd.f32 %v1564, %v1091
    %v1655 = vadd.f32 %v1566, %v1095
    %v1656 = vadd.f32 %v1605, %v1099
    %v1657 = vadd.f32 %v1607, %v1103
    %v1658 = vadd.f32 %v1646, %v1107
    %v1659 = vadd.f32 %v1648, %v1111
    %v1660 = vxor.u32 %v1652, 2147483648
    %v1661 = vxor.u32 %v1653, 2147483648
    %v1662 = vmul.f32 %v1660, 1.442695
    %v1663 = vpow.pop %v1662
    %v1664 = vmul.f32 %v1661, 1.442695
    %v1665 = vpow.pop %v1664
    %v1666 = vadd.f32 %v1663, 1.0
    %v1667 = vadd.f32 %v1665, 1.0
    %v1668 = vrcp.pop %v1666
    %v1669 = vmul.f32 1.0, %v1668
    %v1670 = vrcp.pop %v1667
    %v1671 = vmul.f32 1.0, %v1670
    %v1672 = vxor.u32 %v1654, 2147483648
    %v1673 = vxor.u32 %v1655, 2147483648
    %v1674 = vmul.f32 %v1672, 1.442695
    %v1675 = vpow.pop %v1674
    %v1676 = vmul.f32 %v1673, 1.442695
    %v1677 = vpow.pop %v1676
    %v1678 = vadd.f32 %v1675, 1.0
    %v1679 = vadd.f32 %v1677, 1.0
    %v1680 = vrcp.pop %v1678
    %v1681 = vmul.f32 1.0, %v1680
    %v1682 = vrcp.pop %v1679
    %v1683 = vmul.f32 1.0, %v1682
    %v1684 = vtanh.pop %v1656
    %v1685 = vtanh.pop %v1657
    %v1686 = vxor.u32 %v1658, 2147483648
    %v1687 = vxor.u32 %v1659, 2147483648
    %v1688 = vmul.f32 %v1686, 1.442695
    %v1689 = vpow.pop %v1688
    %v1690 = vmul.f32 %v1687, 1.442695
    %v1691 = vpow.pop %v1690
    %v1692 = vadd.f32 %v1689, 1.0
    %v1693 = vadd.f32 %v1691, 1.0
    %v1694 = vrcp.pop %v1692
    %v1695 = vmul.f32 1.0, %v1694
    %v1696 = vrcp.pop %v1693
    %v1697 = vmul.f32 1.0, %v1696
    %v1698 = vmul.f32 %v1681, %v1436
    %v1699 = vmul.f32 %v1683, %v1437
    %v1700 = vmul.f32 %v1669, %v1684
    %v1701 = vmul.f32 %v1671, %v1685
    %v1702 = vadd.f32 %v1698, %v1700
    %v1703 = vadd.f32 %v1699, %v1701
    %v1704 = vtanh.pop %v1702
    %v1705 = vtanh.pop %v1703
    %v1706 = vmul.f32 %v1695, %v1704
    %v1707 = vmul.f32 %v1697, %v1705
    %v1708 = vpack.c.bf16 %v1706, %v1706
    %v1709 = vpack.c.bf16 %v1707, %v1707
    %s1710 = sld [smem:[#allocation2 + $0x4]]
    %v1711 = vstv %s1710
    %v1712 = vmul.f32 %v1711, %v66
    %v1714 = vlaneseq
    %v1715 = vshrl.u32 %v1714, 7
    %v1716 = vsub.s32 0, %v1715
    %v1717 = vrot.slane %v1712, %v1716
    %v1718 = vlaneseq
    %v1719 = vshrl.u32 %v1718, 7
    %v1720 = vsub.s32 1, %v1719
    %v1721 = vrot.slane %v1712, %v1720
    %v1722 = vlaneseq
    %v1723 = vshrl.u32 %v1722, 7
    %v1724 = vsub.s32 2, %v1723
    %v1725 = vrot.slane %v1712, %v1724
    %v1726 = vlaneseq
    %v1727 = vshrl.u32 %v1726, 7
    %v1728 = vsub.s32 3, %v1727
    %v1729 = vrot.slane %v1712, %v1728
    %v1730 = vlaneseq
    %v1731 = vshrl.u32 %v1730, 7
    %v1732 = vsub.s32 4, %v1731
    %v1733 = vrot.slane %v1712, %v1732
    %v1734 = vlaneseq
    %v1735 = vshrl.u32 %v1734, 7
    %v1736 = vsub.s32 5, %v1735
    %v1737 = vrot.slane %v1712, %v1736
    %v1738 = vlaneseq
    %v1739 = vshrl.u32 %v1738, 7
    %v1740 = vsub.s32 6, %v1739
    %v1741 = vrot.slane %v1712, %v1740
    %v1742 = vlaneseq
    %v1743 = vshrl.u32 %v1742, 7
    %v1744 = vsub.s32 7, %v1743
    %v1745 = vrot.slane %v1712, %v1744
    %1754 = vmatprep.subr.bf16.mxu0 %v620
    %1755 = vmatpush1.bf16.msra.mxu0 %v619
    %1756 = vmatprep.subr.bf16.mxu0 %v628
    %1757 = vmatpush1.bf16.msra.mxu0 %v627
    %1758 = vmatprep.subr.bf16.mxu0 %v636
    %1759 = vmatpush1.bf16.msra.mxu0 %v635
    %1760 = vmatprep.subr.bf16.mxu0 %v644
    %1761 = vmatpush1.bf16.msra.mxu0 %v643
    %1762 = vmatprep.subr.bf16.mxu0 %v652
    %1763 = vmatpush1.bf16.msra.mxu0 %v651
    %1764 = vmatprep.subr.bf16.mxu0 %v660
    %1765 = vmatpush1.bf16.msra.mxu0 %v659
    %1766 = vmatprep.subr.bf16.mxu0 %v668
    %1767 = vmatpush1.bf16.msra.mxu0 %v667
    %1768 = vmatprep.subr.bf16.mxu0 %v676
    %1769 = vmatpush1.bf16.msra.mxu0 %v675
    %1770 = vmatprep.subr.bf16.mxu0 %v684
    %1771 = vmatpush1.bf16.msra.mxu0 %v683
    %1772 = vmatprep.subr.bf16.mxu0 %v692
    %1773 = vmatpush1.bf16.msra.mxu0 %v691
    %1774 = vmatprep.subr.bf16.mxu0 %v700
    %1775 = vmatpush1.bf16.msra.mxu0 %v699
    %1776 = vmatprep.subr.bf16.mxu0 %v708
    %1777 = vmatpush1.bf16.msra.mxu0 %v707
    %1778 = vmatprep.subr.bf16.mxu0 %v716
    %1779 = vmatpush1.bf16.msra.mxu0 %v715
    %1780 = vmatprep.subr.bf16.mxu0 %v724
    %1781 = vmatpush1.bf16.msra.mxu0 %v723
    %1782 = vmatprep.subr.bf16.mxu0 %v732
    %1783 = vmatpush1.bf16.msra.mxu0 %v731
    %1784 = vmatprep.subr.bf16.mxu0 %v740
    %1785 = vmatpush1.bf16.msra.mxu0 %v739
    %1786 = vmatprep.mubr.bf16.mxu0 %v1709
    %1787 = vmatmul.mubr.bf16.gmra.mrb[0].mxu0 %v1708
    %v1788 = vpop.f32.mrb[0].mxu0
    %v1789 = vadd.f32 %v1717, %v1788
    %v1790 = vpop.f32.mrb[0].mxu0
    %v1791 = vadd.f32 %v1721, %v1790
    %v1792 = vpop.f32.mrb[0].mxu0
    %v1793 = vpop.f32.mrb[0].mxu0
    %1794 = vdwg.mxu0
    %1795 = vmatprep.subr.bf16.mxu0 %v622
    %1796 = vmatpush1.bf16.msra.mxu0 %v621
    %1797 = vmatprep.subr.bf16.mxu0 %v630
    %1798 = vmatpush1.bf16.msra.mxu0 %v629
    %1799 = vmatprep.subr.bf16.mxu0 %v638
    %1800 = vmatpush1.bf16.msra.mxu0 %v637
    %1801 = vmatprep.subr.bf16.mxu0 %v646
    %1802 = vmatpush1.bf16.msra.mxu0 %v645
    %1803 = vmatprep.subr.bf16.mxu0 %v654
    %1804 = vmatpush1.bf16.msra.mxu0 %v653
    %1805 = vmatprep.subr.bf16.mxu0 %v662
    %1806 = vmatpush1.bf16.msra.mxu0 %v661
    %1807 = vmatprep.subr.bf16.mxu0 %v670
    %1808 = vmatpush1.bf16.msra.mxu0 %v669
    %1809 = vmatprep.subr.bf16.mxu0 %v678
    %1810 = vmatpush1.bf16.msra.mxu0 %v677
    %1811 = vmatprep.subr.bf16.mxu0 %v686
    %1812 = vmatpush1.bf16.msra.mxu0 %v685
    %1813 = vmatprep.subr.bf16.mxu0 %v694
    %1814 = vmatpush1.bf16.msra.mxu0 %v693
    %1815 = vmatprep.subr.bf16.mxu0 %v702
    %1816 = vmatpush1.bf16.msra.mxu0 %v701
    %1817 = vmatprep.subr.bf16.mxu0 %v710
    %1818 = vmatpush1.bf16.msra.mxu0 %v709
    %1819 = vmatprep.subr.bf16.mxu0 %v718
    %1820 = vmatpush1.bf16.msra.mxu0 %v717
    %1821 = vmatprep.subr.bf16.mxu0 %v726
    %1822 = vmatpush1.bf16.msra.mxu0 %v725
    %1823 = vmatprep.subr.bf16.mxu0 %v734
    %1824 = vmatpush1.bf16.msra.mxu0 %v733
    %1825 = vmatprep.subr.bf16.mxu0 %v742
    %1826 = vmatpush1.bf16.msra.mxu0 %v741
    %1827 = vmatprep.mubr.bf16.mxu0 %v1709
    %1828 = vmatmul.mubr.bf16.gmra.mrb[0].mxu0 %v1708
    %v1829 = vpop.f32.mrb[0].mxu0
    %v1830 = vadd.f32 %v1725, %v1829
    %v1831 = vpop.f32.mrb[0].mxu0
    %v1832 = vadd.f32 %v1729, %v1831
    %v1833 = vpop.f32.mrb[0].mxu0
    %v1834 = vpop.f32.mrb[0].mxu0
    %1835 = vdwg.mxu0
    %1836 = vmatprep.subr.bf16.mxu0 %v624
    %1837 = vmatpush1.bf16.msra.mxu0 %v623
    %1838 = vmatprep.subr.bf16.mxu0 %v632
    %1839 = vmatpush1.bf16.msra.mxu0 %v631
    %1840 = vmatprep.subr.bf16.mxu0 %v640
    %1841 = vmatpush1.bf16.msra.mxu0 %v639
    %1842 = vmatprep.subr.bf16.mxu0 %v648
    %1843 = vmatpush1.bf16.msra.mxu0 %v647
    %1844 = vmatprep.subr.bf16.mxu0 %v656
    %1845 = vmatpush1.bf16.msra.mxu0 %v655
    %1846 = vmatprep.subr.bf16.mxu0 %v664
    %1847 = vmatpush1.bf16.msra.mxu0 %v663
    %1848 = vmatprep.subr.bf16.mxu0 %v672
    %1849 = vmatpush1.bf16.msra.mxu0 %v671
    %1850 = vmatprep.subr.bf16.mxu0 %v680
    %1851 = vmatpush1.bf16.msra.mxu0 %v679
    %1852 = vmatprep.subr.bf16.mxu0 %v688
    %1853 = vmatpush1.bf16.msra.mxu0 %v687
    %1854 = vmatprep.subr.bf16.mxu0 %v696
    %1855 = vmatpush1.bf16.msra.mxu0 %v695
    %1856 = vmatprep.subr.bf16.mxu0 %v704
    %1857 = vmatpush1.bf16.msra.mxu0 %v703
    %1858 = vmatprep.subr.bf16.mxu0 %v712
    %1859 = vmatpush1.bf16.msra.mxu0 %v711
    %1860 = vmatprep.subr.bf16.mxu0 %v720
    %1861 = vmatpush1.bf16.msra.mxu0 %v719
    %1862 = vmatprep.subr.bf16.mxu0 %v728
    %1863 = vmatpush1.bf16.msra.mxu0 %v727
    %1864 = vmatprep.subr.bf16.mxu0 %v736
    %1865 = vmatpush1.bf16.msra.mxu0 %v735
    %1866 = vmatprep.subr.bf16.mxu0 %v744
    %1867 = vmatpush1.bf16.msra.mxu0 %v743
    %1868 = vmatprep.mubr.bf16.mxu0 %v1709
    %1869 = vmatmul.mubr.bf16.gmra.mrb[0].mxu0 %v1708
    %v1870 = vpop.f32.mrb[0].mxu0
    %v1871 = vadd.f32 %v1733, %v1870
    %v1872 = vpop.f32.mrb[0].mxu0
    %v1873 = vadd.f32 %v1737, %v1872
    %v1874 = vpop.f32.mrb[0].mxu0
    %v1875 = vpop.f32.mrb[0].mxu0
    %1876 = vdwg.mxu0
    %1877 = vmatprep.subr.bf16.mxu0 %v626
    %1878 = vmatpush1.bf16.msra.mxu0 %v625
    %1879 = vmatprep.subr.bf16.mxu0 %v634
    %1880 = vmatpush1.bf16.msra.mxu0 %v633
    %1881 = vmatprep.subr.bf16.mxu0 %v642
    %1882 = vmatpush1.bf16.msra.mxu0 %v641
    %1883 = vmatprep.subr.bf16.mxu0 %v650
    %1884 = vmatpush1.bf16.msra.mxu0 %v649
    %1885 = vmatprep.subr.bf16.mxu0 %v658
    %1886 = vmatpush1.bf16.msra.mxu0 %v657
    %1887 = vmatprep.subr.bf16.mxu0 %v666
    %1888 = vmatpush1.bf16.msra.mxu0 %v665
    %1889 = vmatprep.subr.bf16.mxu0 %v674
    %1890 = vmatpush1.bf16.msra.mxu0 %v673
    %1891 = vmatprep.subr.bf16.mxu0 %v682
    %1892 = vmatpush1.bf16.msra.mxu0 %v681
    %1893 = vmatprep.subr.bf16.mxu0 %v690
    %1894 = vmatpush1.bf16.msra.mxu0 %v689
    %1895 = vmatprep.subr.bf16.mxu0 %v698
    %1896 = vmatpush1.bf16.msra.mxu0 %v697
    %1897 = vmatprep.subr.bf16.mxu0 %v706
    %1898 = vmatpush1.bf16.msra.mxu0 %v705
    %1899 = vmatprep.subr.bf16.mxu0 %v714
    %1900 = vmatpush1.bf16.msra.mxu0 %v713
    %1901 = vmatprep.subr.bf16.mxu0 %v722
    %1902 = vmatpush1.bf16.msra.mxu0 %v721
    %1903 = vmatprep.subr.bf16.mxu0 %v730
    %1904 = vmatpush1.bf16.msra.mxu0 %v729
    %1905 = vmatprep.subr.bf16.mxu0 %v738
    %1906 = vmatpush1.bf16.msra.mxu0 %v737
    %1907 = vmatprep.subr.bf16.mxu0 %v746
    %1908 = vmatpush1.bf16.msra.mxu0 %v745
    %1909 = vmatprep.mubr.bf16.mxu0 %v1709
    %1910 = vmatmul.mubr.bf16.gmra.mrb[0].mxu0 %v1708
    %v1911 = vpop.f32.mrb[0].mxu0
    %v1912 = vadd.f32 %v1741, %v1911
    %v1913 = vpop.f32.mrb[0].mxu0
    %v1914 = vadd.f32 %v1745, %v1913
    %v1915 = vpop.f32.mrb[0].mxu0
    %v1916 = vpop.f32.mrb[0].mxu0
    %1917 = vdwg.mxu0
    %v1918 = vadd.f32 %v1789, %v1083
    %v1919 = vadd.f32 %v1791, %v1087
    %v1920 = vadd.f32 %v1830, %v1091
    %v1921 = vadd.f32 %v1832, %v1095
    %v1922 = vadd.f32 %v1871, %v1099
    %v1923 = vadd.f32 %v1873, %v1103
    %v1924 = vadd.f32 %v1912, %v1107
    %v1925 = vadd.f32 %v1914, %v1111
    %v1926 = vxor.u32 %v1918, 2147483648
    %v1927 = vxor.u32 %v1919, 2147483648
    %v1928 = vmul.f32 %v1926, 1.442695
    %v1929 = vpow.pop %v1928
    %v1930 = vmul.f32 %v1927, 1.442695
    %v1931 = vpow.pop %v1930
    %v1932 = vadd.f32 %v1929, 1.0
    %v1933 = vadd.f32 %v1931, 1.0
    %v1934 = vrcp.pop %v1932
    %v1935 = vmul.f32 1.0, %v1934
    %v1936 = vrcp.pop %v1933
    %v1937 = vmul.f32 1.0, %v1936
    %v1938 = vxor.u32 %v1920, 2147483648
    %v1939 = vxor.u32 %v1921, 2147483648
    %v1940 = vmul.f32 %v1938, 1.442695
    %v1941 = vpow.pop %v1940
    %v1942 = vmul.f32 %v1939, 1.442695
    %v1943 = vpow.pop %v1942
    %v1944 = vadd.f32 %v1941, 1.0
    %v1945 = vadd.f32 %v1943, 1.0
    %v1946 = vrcp.pop %v1944
    %v1947 = vmul.f32 1.0, %v1946
    %v1948 = vrcp.pop %v1945
    %v1949 = vmul.f32 1.0, %v1948
    %v1950 = vtanh.pop %v1922
    %v1951 = vtanh.pop %v1923
    %v1952 = vxor.u32 %v1924, 2147483648
    %v1953 = vxor.u32 %v1925, 2147483648
    %v1954 = vmul.f32 %v1952, 1.442695
    %v1955 = vpow.pop %v1954
    %v1956 = vmul.f32 %v1953, 1.442695
    %v1957 = vpow.pop %v1956
    %v1958 = vadd.f32 %v1955, 1.0
    %v1959 = vadd.f32 %v1957, 1.0
    %v1960 = vrcp.pop %v1958
    %v1961 = vmul.f32 1.0, %v1960
    %v1962 = vrcp.pop %v1959
    %v1963 = vmul.f32 1.0, %v1962
    %v1964 = vmul.f32 %v1947, %v1702
    %v1965 = vmul.f32 %v1949, %v1703
    %v1966 = vmul.f32 %v1935, %v1950
    %v1967 = vmul.f32 %v1937, %v1951
    %v1968 = vadd.f32 %v1964, %v1966
    %v1969 = vadd.f32 %v1965, %v1967
    %v1970 = vtanh.pop %v1968
    %v1971 = vtanh.pop %v1969
    %v1972 = vmul.f32 %v1961, %v1970
    %v1973 = vmul.f32 %v1963, %v1971
    %v1974 = vpack.c.bf16 %v1972, %v1972
    %v1975 = vpack.c.bf16 %v1973, %v1973
    %s1976 = sld [smem:[#allocation2 + $0x5]]
    %v1977 = vstv %s1976
    %v1978 = vmul.f32 %v1977, %v66
    %v1980 = vlaneseq
    %v1981 = vshrl.u32 %v1980, 7
    %v1982 = vsub.s32 0, %v1981
    %v1983 = vrot.slane %v1978, %v1982
    %v1984 = vlaneseq
    %v1985 = vshrl.u32 %v1984, 7
    %v1986 = vsub.s32 1, %v1985
    %v1987 = vrot.slane %v1978, %v1986
    %v1988 = vlaneseq
    %v1989 = vshrl.u32 %v1988, 7
    %v1990 = vsub.s32 2, %v1989
    %v1991 = vrot.slane %v1978, %v1990
    %v1992 = vlaneseq
    %v1993 = vshrl.u32 %v1992, 7
    %v1994 = vsub.s32 3, %v1993
    %v1995 = vrot.slane %v1978, %v1994
    %v1996 = vlaneseq
    %v1997 = vshrl.u32 %v1996, 7
    %v1998 = vsub.s32 4, %v1997
    %v1999 = vrot.slane %v1978, %v1998
    %v2000 = vlaneseq
    %v2001 = vshrl.u32 %v2000, 7
    %v2002 = vsub.s32 5, %v2001
    %v2003 = vrot.slane %v1978, %v2002
    %v2004 = vlaneseq
    %v2005 = vshrl.u32 %v2004, 7
    %v2006 = vsub.s32 6, %v2005
    %v2007 = vrot.slane %v1978, %v2006
    %v2008 = vlaneseq
    %v2009 = vshrl.u32 %v2008, 7
    %v2010 = vsub.s32 7, %v2009
    %v2011 = vrot.slane %v1978, %v2010
    %2020 = vmatprep.subr.bf16.mxu0 %v620
    %2021 = vmatpush1.bf16.msra.mxu0 %v619
    %2022 = vmatprep.subr.bf16.mxu0 %v628
    %2023 = vmatpush1.bf16.msra.mxu0 %v627
    %2024 = vmatprep.subr.bf16.mxu0 %v636
    %2025 = vmatpush1.bf16.msra.mxu0 %v635
    %2026 = vmatprep.subr.bf16.mxu0 %v644
    %2027 = vmatpush1.bf16.msra.mxu0 %v643
    %2028 = vmatprep.subr.bf16.mxu0 %v652
    %2029 = vmatpush1.bf16.msra.mxu0 %v651
    %2030 = vmatprep.subr.bf16.mxu0 %v660
    %2031 = vmatpush1.bf16.msra.mxu0 %v659
    %2032 = vmatprep.subr.bf16.mxu0 %v668
    %2033 = vmatpush1.bf16.msra.mxu0 %v667
    %2034 = vmatprep.subr.bf16.mxu0 %v676
    %2035 = vmatpush1.bf16.msra.mxu0 %v675
    %2036 = vmatprep.subr.bf16.mxu0 %v684
    %2037 = vmatpush1.bf16.msra.mxu0 %v683
    %2038 = vmatprep.subr.bf16.mxu0 %v692
    %2039 = vmatpush1.bf16.msra.mxu0 %v691
    %2040 = vmatprep.subr.bf16.mxu0 %v700
    %2041 = vmatpush1.bf16.msra.mxu0 %v699
    %2042 = vmatprep.subr.bf16.mxu0 %v708
    %2043 = vmatpush1.bf16.msra.mxu0 %v707
    %2044 = vmatprep.subr.bf16.mxu0 %v716
    %2045 = vmatpush1.bf16.msra.mxu0 %v715
    %2046 = vmatprep.subr.bf16.mxu0 %v724
    %2047 = vmatpush1.bf16.msra.mxu0 %v723
    %2048 = vmatprep.subr.bf16.mxu0 %v732
    %2049 = vmatpush1.bf16.msra.mxu0 %v731
    %2050 = vmatprep.subr.bf16.mxu0 %v740
    %2051 = vmatpush1.bf16.msra.mxu0 %v739
    %2052 = vmatprep.mubr.bf16.mxu0 %v1975
    %2053 = vmatmul.mubr.bf16.gmra.mrb[0].mxu0 %v1974
    %v2054 = vpop.f32.mrb[0].mxu0
    %v2055 = vadd.f32 %v1983, %v2054
    %v2056 = vpop.f32.mrb[0].mxu0
    %v2057 = vadd.f32 %v1987, %v2056
    %v2058 = vpop.f32.mrb[0].mxu0
    %v2059 = vpop.f32.mrb[0].mxu0
    %2060 = vdwg.mxu0
    %2061 = vmatprep.subr.bf16.mxu0 %v622
    %2062 = vmatpush1.bf16.msra.mxu0 %v621
    %2063 = vmatprep.subr.bf16.mxu0 %v630
    %2064 = vmatpush1.bf16.msra.mxu0 %v629
    %2065 = vmatprep.subr.bf16.mxu0 %v638
    %2066 = vmatpush1.bf16.msra.mxu0 %v637
    %2067 = vmatprep.subr.bf16.mxu0 %v646
    %2068 = vmatpush1.bf16.msra.mxu0 %v645
    %2069 = vmatprep.subr.bf16.mxu0 %v654
    %2070 = vmatpush1.bf16.msra.mxu0 %v653
    %2071 = vmatprep.subr.bf16.mxu0 %v662
    %2072 = vmatpush1.bf16.msra.mxu0 %v661
    %2073 = vmatprep.subr.bf16.mxu0 %v670
    %2074 = vmatpush1.bf16.msra.mxu0 %v669
    %2075 = vmatprep.subr.bf16.mxu0 %v678
    %2076 = vmatpush1.bf16.msra.mxu0 %v677
    %2077 = vmatprep.subr.bf16.mxu0 %v686
    %2078 = vmatpush1.bf16.msra.mxu0 %v685
    %2079 = vmatprep.subr.bf16.mxu0 %v694
    %2080 = vmatpush1.bf16.msra.mxu0 %v693
    %2081 = vmatprep.subr.bf16.mxu0 %v702
    %2082 = vmatpush1.bf16.msra.mxu0 %v701
    %2083 = vmatprep.subr.bf16.mxu0 %v710
    %2084 = vmatpush1.bf16.msra.mxu0 %v709
    %2085 = vmatprep.subr.bf16.mxu0 %v718
    %2086 = vmatpush1.bf16.msra.mxu0 %v717
    %2087 = vmatprep.subr.bf16.mxu0 %v726
    %2088 = vmatpush1.bf16.msra.mxu0 %v725
    %2089 = vmatprep.subr.bf16.mxu0 %v734
    %2090 = vmatpush1.bf16.msra.mxu0 %v733
    %2091 = vmatprep.subr.bf16.mxu0 %v742
    %2092 = vmatpush1.bf16.msra.mxu0 %v741
    %2093 = vmatprep.mubr.bf16.mxu0 %v1975
    %2094 = vmatmul.mubr.bf16.gmra.mrb[0].mxu0 %v1974
    %v2095 = vpop.f32.mrb[0].mxu0
    %v2096 = vadd.f32 %v1991, %v2095
    %v2097 = vpop.f32.mrb[0].mxu0
    %v2098 = vadd.f32 %v1995, %v2097
    %v2099 = vpop.f32.mrb[0].mxu0
    %v2100 = vpop.f32.mrb[0].mxu0
    %2101 = vdwg.mxu0
    %2102 = vmatprep.subr.bf16.mxu0 %v624
    %2103 = vmatpush1.bf16.msra.mxu0 %v623
    %2104 = vmatprep.subr.bf16.mxu0 %v632
    %2105 = vmatpush1.bf16.msra.mxu0 %v631
    %2106 = vmatprep.subr.bf16.mxu0 %v640
    %2107 = vmatpush1.bf16.msra.mxu0 %v639
    %2108 = vmatprep.subr.bf16.mxu0 %v648
    %2109 = vmatpush1.bf16.msra.mxu0 %v647
    %2110 = vmatprep.subr.bf16.mxu0 %v656
    %2111 = vmatpush1.bf16.msra.mxu0 %v655
    %2112 = vmatprep.subr.bf16.mxu0 %v664
    %2113 = vmatpush1.bf16.msra.mxu0 %v663
    %2114 = vmatprep.subr.bf16.mxu0 %v672
    %2115 = vmatpush1.bf16.msra.mxu0 %v671
    %2116 = vmatprep.subr.bf16.mxu0 %v680
    %2117 = vmatpush1.bf16.msra.mxu0 %v679
    %2118 = vmatprep.subr.bf16.mxu0 %v688
    %2119 = vmatpush1.bf16.msra.mxu0 %v687
    %2120 = vmatprep.subr.bf16.mxu0 %v696
    %2121 = vmatpush1.bf16.msra.mxu0 %v695
    %2122 = vmatprep.subr.bf16.mxu0 %v704
    %2123 = vmatpush1.bf16.msra.mxu0 %v703
    %2124 = vmatprep.subr.bf16.mxu0 %v712
    %2125 = vmatpush1.bf16.msra.mxu0 %v711
    %2126 = vmatprep.subr.bf16.mxu0 %v720
    %2127 = vmatpush1.bf16.msra.mxu0 %v719
    %2128 = vmatprep.subr.bf16.mxu0 %v728
    %2129 = vmatpush1.bf16.msra.mxu0 %v727
    %2130 = vmatprep.subr.bf16.mxu0 %v736
    %2131 = vmatpush1.bf16.msra.mxu0 %v735
    %2132 = vmatprep.subr.bf16.mxu0 %v744
    %2133 = vmatpush1.bf16.msra.mxu0 %v743
    %2134 = vmatprep.mubr.bf16.mxu0 %v1975
    %2135 = vmatmul.mubr.bf16.gmra.mrb[0].mxu0 %v1974
    %v2136 = vpop.f32.mrb[0].mxu0
    %v2137 = vadd.f32 %v1999, %v2136
    %v2138 = vpop.f32.mrb[0].mxu0
    %v2139 = vadd.f32 %v2003, %v2138
    %v2140 = vpop.f32.mrb[0].mxu0
    %v2141 = vpop.f32.mrb[0].mxu0
    %2142 = vdwg.mxu0
    %2143 = vmatprep.subr.bf16.mxu0 %v626
    %2144 = vmatpush1.bf16.msra.mxu0 %v625
    %2145 = vmatprep.subr.bf16.mxu0 %v634
    %2146 = vmatpush1.bf16.msra.mxu0 %v633
    %2147 = vmatprep.subr.bf16.mxu0 %v642
    %2148 = vmatpush1.bf16.msra.mxu0 %v641
    %2149 = vmatprep.subr.bf16.mxu0 %v650
    %2150 = vmatpush1.bf16.msra.mxu0 %v649
    %2151 = vmatprep.subr.bf16.mxu0 %v658
    %2152 = vmatpush1.bf16.msra.mxu0 %v657
    %2153 = vmatprep.subr.bf16.mxu0 %v666
    %2154 = vmatpush1.bf16.msra.mxu0 %v665
    %2155 = vmatprep.subr.bf16.mxu0 %v674
    %2156 = vmatpush1.bf16.msra.mxu0 %v673
    %2157 = vmatprep.subr.bf16.mxu0 %v682
    %2158 = vmatpush1.bf16.msra.mxu0 %v681
    %2159 = vmatprep.subr.bf16.mxu0 %v690
    %2160 = vmatpush1.bf16.msra.mxu0 %v689
    %2161 = vmatprep.subr.bf16.mxu0 %v698
    %2162 = vmatpush1.bf16.msra.mxu0 %v697
    %2163 = vmatprep.subr.bf16.mxu0 %v706
    %2164 = vmatpush1.bf16.msra.mxu0 %v705
    %2165 = vmatprep.subr.bf16.mxu0 %v714
    %2166 = vmatpush1.bf16.msra.mxu0 %v713
    %2167 = vmatprep.subr.bf16.mxu0 %v722
    %2168 = vmatpush1.bf16.msra.mxu0 %v721
    %2169 = vmatprep.subr.bf16.mxu0 %v730
    %2170 = vmatpush1.bf16.msra.mxu0 %v729
    %2171 = vmatprep.subr.bf16.mxu0 %v738
    %2172 = vmatpush1.bf16.msra.mxu0 %v737
    %2173 = vmatprep.subr.bf16.mxu0 %v746
    %2174 = vmatpush1.bf16.msra.mxu0 %v745
    %2175 = vmatprep.mubr.bf16.mxu0 %v1975
    %2176 = vmatmul.mubr.bf16.gmra.mrb[0].mxu0 %v1974
    %v2177 = vpop.f32.mrb[0].mxu0
    %v2178 = vadd.f32 %v2007, %v2177
    %v2179 = vpop.f32.mrb[0].mxu0
    %v2180 = vadd.f32 %v2011, %v2179
    %v2181 = vpop.f32.mrb[0].mxu0
    %v2182 = vpop.f32.mrb[0].mxu0
    %2183 = vdwg.mxu0
    %v2184 = vadd.f32 %v2055, %v1083
    %v2185 = vadd.f32 %v2057, %v1087
    %v2186 = vadd.f32 %v2096, %v1091
    %v2187 = vadd.f32 %v2098, %v1095
    %v2188 = vadd.f32 %v2137, %v1099
    %v2189 = vadd.f32 %v2139, %v1103
    %v2190 = vadd.f32 %v2178, %v1107
    %v2191 = vadd.f32 %v2180, %v1111
    %v2192 = vxor.u32 %v2184, 2147483648
    %v2193 = vxor.u32 %v2185, 2147483648
    %v2194 = vmul.f32 %v2192, 1.442695
    %v2195 = vpow.pop %v2194
    %v2196 = vmul.f32 %v2193, 1.442695
    %v2197 = vpow.pop %v2196
    %v2198 = vadd.f32 %v2195, 1.0
    %v2199 = vadd.f32 %v2197, 1.0
    %v2200 = vrcp.pop %v2198
    %v2201 = vmul.f32 1.0, %v2200
    %v2202 = vrcp.pop %v2199
    %v2203 = vmul.f32 1.0, %v2202
    %v2204 = vxor.u32 %v2186, 2147483648
    %v2205 = vxor.u32 %v2187, 2147483648
    %v2206 = vmul.f32 %v2204, 1.442695
    %v2207 = vpow.pop %v2206
    %v2208 = vmul.f32 %v2205, 1.442695
    %v2209 = vpow.pop %v2208
    %v2210 = vadd.f32 %v2207, 1.0
    %v2211 = vadd.f32 %v2209, 1.0
    %v2212 = vrcp.pop %v2210
    %v2213 = vmul.f32 1.0, %v2212
    %v2214 = vrcp.pop %v2211
    %v2215 = vmul.f32 1.0, %v2214
    %v2216 = vtanh.pop %v2188
    %v2217 = vtanh.pop %v2189
    %v2218 = vxor.u32 %v2190, 2147483648
    %v2219 = vxor.u32 %v2191, 2147483648
    %v2220 = vmul.f32 %v2218, 1.442695
    %v2221 = vpow.pop %v2220
    %v2222 = vmul.f32 %v2219, 1.442695
    %v2223 = vpow.pop %v2222
    %v2224 = vadd.f32 %v2221, 1.0
    %v2225 = vadd.f32 %v2223, 1.0
    %v2226 = vrcp.pop %v2224
    %v2227 = vmul.f32 1.0, %v2226
    %v2228 = vrcp.pop %v2225
    %v2229 = vmul.f32 1.0, %v2228
    %v2230 = vmul.f32 %v2213, %v1968
    %v2231 = vmul.f32 %v2215, %v1969
    %v2232 = vmul.f32 %v2201, %v2216
    %v2233 = vmul.f32 %v2203, %v2217
    %v2234 = vadd.f32 %v2230, %v2232
    %v2235 = vadd.f32 %v2231, %v2233
    %v2236 = vtanh.pop %v2234
    %v2237 = vtanh.pop %v2235
    %v2238 = vmul.f32 %v2227, %v2236
    %v2239 = vmul.f32 %v2229, %v2237
    %v2240 = vpack.c.bf16 %v2238, %v2238
    %v2241 = vpack.c.bf16 %v2239, %v2239
    %s2242 = sld [smem:[#allocation2 + $0x6]]
    %v2243 = vstv %s2242
    %v2244 = vmul.f32 %v2243, %v66
    %v2246 = vlaneseq
    %v2247 = vshrl.u32 %v2246, 7
    %v2248 = vsub.s32 0, %v2247
    %v2249 = vrot.slane %v2244, %v2248
    %v2250 = vlaneseq
    %v2251 = vshrl.u32 %v2250, 7
    %v2252 = vsub.s32 1, %v2251
    %v2253 = vrot.slane %v2244, %v2252
    %v2254 = vlaneseq
    %v2255 = vshrl.u32 %v2254, 7
    %v2256 = vsub.s32 2, %v2255
    %v2257 = vrot.slane %v2244, %v2256
    %v2258 = vlaneseq
    %v2259 = vshrl.u32 %v2258, 7
    %v2260 = vsub.s32 3, %v2259
    %v2261 = vrot.slane %v2244, %v2260
    %v2262 = vlaneseq
    %v2263 = vshrl.u32 %v2262, 7
    %v2264 = vsub.s32 4, %v2263
    %v2265 = vrot.slane %v2244, %v2264
    %v2266 = vlaneseq
    %v2267 = vshrl.u32 %v2266, 7
    %v2268 = vsub.s32 5, %v2267
    %v2269 = vrot.slane %v2244, %v2268
    %v2270 = vlaneseq
    %v2271 = vshrl.u32 %v2270, 7
    %v2272 = vsub.s32 6, %v2271
    %v2273 = vrot.slane %v2244, %v2272
    %v2274 = vlaneseq
    %v2275 = vshrl.u32 %v2274, 7
    %v2276 = vsub.s32 7, %v2275
    %v2277 = vrot.slane %v2244, %v2276
    %2286 = vmatprep.subr.bf16.mxu0 %v620
    %2287 = vmatpush1.bf16.msra.mxu0 %v619
    %2288 = vmatprep.subr.bf16.mxu0 %v628
    %2289 = vmatpush1.bf16.msra.mxu0 %v627
    %2290 = vmatprep.subr.bf16.mxu0 %v636
    %2291 = vmatpush1.bf16.msra.mxu0 %v635
    %2292 = vmatprep.subr.bf16.mxu0 %v644
    %2293 = vmatpush1.bf16.msra.mxu0 %v643
    %2294 = vmatprep.subr.bf16.mxu0 %v652
    %2295 = vmatpush1.bf16.msra.mxu0 %v651
    %2296 = vmatprep.subr.bf16.mxu0 %v660
    %2297 = vmatpush1.bf16.msra.mxu0 %v659
    %2298 = vmatprep.subr.bf16.mxu0 %v668
    %2299 = vmatpush1.bf16.msra.mxu0 %v667
    %2300 = vmatprep.subr.bf16.mxu0 %v676
    %2301 = vmatpush1.bf16.msra.mxu0 %v675
    %2302 = vmatprep.subr.bf16.mxu0 %v684
    %2303 = vmatpush1.bf16.msra.mxu0 %v683
    %2304 = vmatprep.subr.bf16.mxu0 %v692
    %2305 = vmatpush1.bf16.msra.mxu0 %v691
    %2306 = vmatprep.subr.bf16.mxu0 %v700
    %2307 = vmatpush1.bf16.msra.mxu0 %v699
    %2308 = vmatprep.subr.bf16.mxu0 %v708
    %2309 = vmatpush1.bf16.msra.mxu0 %v707
    %2310 = vmatprep.subr.bf16.mxu0 %v716
    %2311 = vmatpush1.bf16.msra.mxu0 %v715
    %2312 = vmatprep.subr.bf16.mxu0 %v724
    %2313 = vmatpush1.bf16.msra.mxu0 %v723
    %2314 = vmatprep.subr.bf16.mxu0 %v732
    %2315 = vmatpush1.bf16.msra.mxu0 %v731
    %2316 = vmatprep.subr.bf16.mxu0 %v740
    %2317 = vmatpush1.bf16.msra.mxu0 %v739
    %2318 = vmatprep.mubr.bf16.mxu0 %v2241
    %2319 = vmatmul.mubr.bf16.gmra.mrb[0].mxu0 %v2240
    %v2320 = vpop.f32.mrb[0].mxu0
    %v2321 = vadd.f32 %v2249, %v2320
    %v2322 = vpop.f32.mrb[0].mxu0
    %v2323 = vadd.f32 %v2253, %v2322
    %v2324 = vpop.f32.mrb[0].mxu0
    %v2325 = vpop.f32.mrb[0].mxu0
    %2326 = vdwg.mxu0
    %2327 = vmatprep.subr.bf16.mxu0 %v622
    %2328 = vmatpush1.bf16.msra.mxu0 %v621
    %2329 = vmatprep.subr.bf16.mxu0 %v630
    %2330 = vmatpush1.bf16.msra.mxu0 %v629
    %2331 = vmatprep.subr.bf16.mxu0 %v638
    %2332 = vmatpush1.bf16.msra.mxu0 %v637
    %2333 = vmatprep.subr.bf16.mxu0 %v646
    %2334 = vmatpush1.bf16.msra.mxu0 %v645
    %2335 = vmatprep.subr.bf16.mxu0 %v654
    %2336 = vmatpush1.bf16.msra.mxu0 %v653
    %2337 = vmatprep.subr.bf16.mxu0 %v662
    %2338 = vmatpush1.bf16.msra.mxu0 %v661
    %2339 = vmatprep.subr.bf16.mxu0 %v670
    %2340 = vmatpush1.bf16.msra.mxu0 %v669
    %2341 = vmatprep.subr.bf16.mxu0 %v678
    %2342 = vmatpush1.bf16.msra.mxu0 %v677
    %2343 = vmatprep.subr.bf16.mxu0 %v686
    %2344 = vmatpush1.bf16.msra.mxu0 %v685
    %2345 = vmatprep.subr.bf16.mxu0 %v694
    %2346 = vmatpush1.bf16.msra.mxu0 %v693
    %2347 = vmatprep.subr.bf16.mxu0 %v702
    %2348 = vmatpush1.bf16.msra.mxu0 %v701
    %2349 = vmatprep.subr.bf16.mxu0 %v710
    %2350 = vmatpush1.bf16.msra.mxu0 %v709
    %2351 = vmatprep.subr.bf16.mxu0 %v718
    %2352 = vmatpush1.bf16.msra.mxu0 %v717
    %2353 = vmatprep.subr.bf16.mxu0 %v726
    %2354 = vmatpush1.bf16.msra.mxu0 %v725
    %2355 = vmatprep.subr.bf16.mxu0 %v734
    %2356 = vmatpush1.bf16.msra.mxu0 %v733
    %2357 = vmatprep.subr.bf16.mxu0 %v742
    %2358 = vmatpush1.bf16.msra.mxu0 %v741
    %2359 = vmatprep.mubr.bf16.mxu0 %v2241
    %2360 = vmatmul.mubr.bf16.gmra.mrb[0].mxu0 %v2240
    %v2361 = vpop.f32.mrb[0].mxu0
    %v2362 = vadd.f32 %v2257, %v2361
    %v2363 = vpop.f32.mrb[0].mxu0
    %v2364 = vadd.f32 %v2261, %v2363
    %v2365 = vpop.f32.mrb[0].mxu0
    %v2366 = vpop.f32.mrb[0].mxu0
    %2367 = vdwg.mxu0
    %2368 = vmatprep.subr.bf16.mxu0 %v624
    %2369 = vmatpush1.bf16.msra.mxu0 %v623
    %2370 = vmatprep.subr.bf16.mxu0 %v632
    %2371 = vmatpush1.bf16.msra.mxu0 %v631
    %2372 = vmatprep.subr.bf16.mxu0 %v640
    %2373 = vmatpush1.bf16.msra.mxu0 %v639
    %2374 = vmatprep.subr.bf16.mxu0 %v648
    %2375 = vmatpush1.bf16.msra.mxu0 %v647
    %2376 = vmatprep.subr.bf16.mxu0 %v656
    %2377 = vmatpush1.bf16.msra.mxu0 %v655
    %2378 = vmatprep.subr.bf16.mxu0 %v664
    %2379 = vmatpush1.bf16.msra.mxu0 %v663
    %2380 = vmatprep.subr.bf16.mxu0 %v672
    %2381 = vmatpush1.bf16.msra.mxu0 %v671
    %2382 = vmatprep.subr.bf16.mxu0 %v680
    %2383 = vmatpush1.bf16.msra.mxu0 %v679
    %2384 = vmatprep.subr.bf16.mxu0 %v688
    %2385 = vmatpush1.bf16.msra.mxu0 %v687
    %2386 = vmatprep.subr.bf16.mxu0 %v696
    %2387 = vmatpush1.bf16.msra.mxu0 %v695
    %2388 = vmatprep.subr.bf16.mxu0 %v704
    %2389 = vmatpush1.bf16.msra.mxu0 %v703
    %2390 = vmatprep.subr.bf16.mxu0 %v712
    %2391 = vmatpush1.bf16.msra.mxu0 %v711
    %2392 = vmatprep.subr.bf16.mxu0 %v720
    %2393 = vmatpush1.bf16.msra.mxu0 %v719
    %2394 = vmatprep.subr.bf16.mxu0 %v728
    %2395 = vmatpush1.bf16.msra.mxu0 %v727
    %2396 = vmatprep.subr.bf16.mxu0 %v736
    %2397 = vmatpush1.bf16.msra.mxu0 %v735
    %2398 = vmatprep.subr.bf16.mxu0 %v744
    %2399 = vmatpush1.bf16.msra.mxu0 %v743
    %2400 = vmatprep.mubr.bf16.mxu0 %v2241
    %2401 = vmatmul.mubr.bf16.gmra.mrb[0].mxu0 %v2240
    %v2402 = vpop.f32.mrb[0].mxu0
    %v2403 = vadd.f32 %v2265, %v2402
    %v2404 = vpop.f32.mrb[0].mxu0
    %v2405 = vadd.f32 %v2269, %v2404
    %v2406 = vpop.f32.mrb[0].mxu0
    %v2407 = vpop.f32.mrb[0].mxu0
    %2408 = vdwg.mxu0
    %2409 = vmatprep.subr.bf16.mxu0 %v626
    %2410 = vmatpush1.bf16.msra.mxu0 %v625
    %2411 = vmatprep.subr.bf16.mxu0 %v634
    %2412 = vmatpush1.bf16.msra.mxu0 %v633
    %2413 = vmatprep.subr.bf16.mxu0 %v642
    %2414 = vmatpush1.bf16.msra.mxu0 %v641
    %2415 = vmatprep.subr.bf16.mxu0 %v650
    %2416 = vmatpush1.bf16.msra.mxu0 %v649
    %2417 = vmatprep.subr.bf16.mxu0 %v658
    %2418 = vmatpush1.bf16.msra.mxu0 %v657
    %2419 = vmatprep.subr.bf16.mxu0 %v666
    %2420 = vmatpush1.bf16.msra.mxu0 %v665
    %2421 = vmatprep.subr.bf16.mxu0 %v674
    %2422 = vmatpush1.bf16.msra.mxu0 %v673
    %2423 = vmatprep.subr.bf16.mxu0 %v682
    %2424 = vmatpush1.bf16.msra.mxu0 %v681
    %2425 = vmatprep.subr.bf16.mxu0 %v690
    %2426 = vmatpush1.bf16.msra.mxu0 %v689
    %2427 = vmatprep.subr.bf16.mxu0 %v698
    %2428 = vmatpush1.bf16.msra.mxu0 %v697
    %2429 = vmatprep.subr.bf16.mxu0 %v706
    %2430 = vmatpush1.bf16.msra.mxu0 %v705
    %2431 = vmatprep.subr.bf16.mxu0 %v714
    %2432 = vmatpush1.bf16.msra.mxu0 %v713
    %2433 = vmatprep.subr.bf16.mxu0 %v722
    %2434 = vmatpush1.bf16.msra.mxu0 %v721
    %2435 = vmatprep.subr.bf16.mxu0 %v730
    %2436 = vmatpush1.bf16.msra.mxu0 %v729
    %2437 = vmatprep.subr.bf16.mxu0 %v738
    %2438 = vmatpush1.bf16.msra.mxu0 %v737
    %2439 = vmatprep.subr.bf16.mxu0 %v746
    %2440 = vmatpush1.bf16.msra.mxu0 %v745
    %2441 = vmatprep.mubr.bf16.mxu0 %v2241
    %2442 = vmatmul.mubr.bf16.gmra.mrb[0].mxu0 %v2240
    %v2443 = vpop.f32.mrb[0].mxu0
    %v2444 = vadd.f32 %v2273, %v2443
    %v2445 = vpop.f32.mrb[0].mxu0
    %v2446 = vadd.f32 %v2277, %v2445
    %v2447 = vpop.f32.mrb[0].mxu0
    %v2448 = vpop.f32.mrb[0].mxu0
    %2449 = vdwg.mxu0
    %v2450 = vadd.f32 %v2321, %v1083
    %v2451 = vadd.f32 %v2323, %v1087
    %v2452 = vadd.f32 %v2362, %v1091
    %v2453 = vadd.f32 %v2364, %v1095
    %v2454 = vadd.f32 %v2403, %v1099
    %v2455 = vadd.f32 %v2405, %v1103
    %v2456 = vadd.f32 %v2444, %v1107
    %v2457 = vadd.f32 %v2446, %v1111
    %v2458 = vxor.u32 %v2450, 2147483648
    %v2459 = vxor.u32 %v2451, 2147483648
    %v2460 = vmul.f32 %v2458, 1.442695
    %v2461 = vpow.pop %v2460
    %v2462 = vmul.f32 %v2459, 1.442695
    %v2463 = vpow.pop %v2462
    %v2464 = vadd.f32 %v2461, 1.0
    %v2465 = vadd.f32 %v2463, 1.0
    %v2466 = vrcp.pop %v2464
    %v2467 = vmul.f32 1.0, %v2466
    %v2468 = vrcp.pop %v2465
    %v2469 = vmul.f32 1.0, %v2468
    %v2470 = vxor.u32 %v2452, 2147483648
    %v2471 = vxor.u32 %v2453, 2147483648
    %v2472 = vmul.f32 %v2470, 1.442695
    %v2473 = vpow.pop %v2472
    %v2474 = vmul.f32 %v2471, 1.442695
    %v2475 = vpow.pop %v2474
    %v2476 = vadd.f32 %v2473, 1.0
    %v2477 = vadd.f32 %v2475, 1.0
    %v2478 = vrcp.pop %v2476
    %v2479 = vmul.f32 1.0, %v2478
    %v2480 = vrcp.pop %v2477
    %v2481 = vmul.f32 1.0, %v2480
    %v2482 = vtanh.pop %v2454
    %v2483 = vtanh.pop %v2455
    %v2484 = vxor.u32 %v2456, 2147483648
    %v2485 = vxor.u32 %v2457, 2147483648
    %v2486 = vmul.f32 %v2484, 1.442695
    %v2487 = vpow.pop %v2486
    %v2488 = vmul.f32 %v2485, 1.442695
    %v2489 = vpow.pop %v2488
    %v2490 = vadd.f32 %v2487, 1.0
    %v2491 = vadd.f32 %v2489, 1.0
    %v2492 = vrcp.pop %v2490
    %v2493 = vmul.f32 1.0, %v2492
    %v2494 = vrcp.pop %v2491
    %v2495 = vmul.f32 1.0, %v2494
    %v2496 = vmul.f32 %v2479, %v2234
    %v2497 = vmul.f32 %v2481, %v2235
    %v2498 = vmul.f32 %v2467, %v2482
    %v2499 = vmul.f32 %v2469, %v2483
    %v2500 = vadd.f32 %v2496, %v2498
    %v2501 = vadd.f32 %v2497, %v2499
    %v2502 = vtanh.pop %v2500
    %v2503 = vtanh.pop %v2501
    %v2504 = vmul.f32 %v2493, %v2502
    %v2505 = vmul.f32 %v2495, %v2503
    %v2506 = vpack.c.bf16 %v2504, %v2504
    %v2507 = vpack.c.bf16 %v2505, %v2505
    %s2508 = sld [smem:[#allocation2 + $0x7]]
    %v2509 = vstv %s2508
    %v2510 = vmul.f32 %v2509, %v66
    %v2512 = vlaneseq
    %v2513 = vshrl.u32 %v2512, 7
    %v2514 = vsub.s32 0, %v2513
    %v2515 = vrot.slane %v2510, %v2514
    %v2516 = vlaneseq
    %v2517 = vshrl.u32 %v2516, 7
    %v2518 = vsub.s32 1, %v2517
    %v2519 = vrot.slane %v2510, %v2518
    %v2520 = vlaneseq
    %v2521 = vshrl.u32 %v2520, 7
    %v2522 = vsub.s32 2, %v2521
    %v2523 = vrot.slane %v2510, %v2522
    %v2524 = vlaneseq
    %v2525 = vshrl.u32 %v2524, 7
    %v2526 = vsub.s32 3, %v2525
    %v2527 = vrot.slane %v2510, %v2526
    %v2528 = vlaneseq
    %v2529 = vshrl.u32 %v2528, 7
    %v2530 = vsub.s32 4, %v2529
    %v2531 = vrot.slane %v2510, %v2530
    %v2532 = vlaneseq
    %v2533 = vshrl.u32 %v2532, 7
    %v2534 = vsub.s32 5, %v2533
    %v2535 = vrot.slane %v2510, %v2534
    %v2536 = vlaneseq
    %v2537 = vshrl.u32 %v2536, 7
    %v2538 = vsub.s32 6, %v2537
    %v2539 = vrot.slane %v2510, %v2538
    %v2540 = vlaneseq
    %v2541 = vshrl.u32 %v2540, 7
    %v2542 = vsub.s32 7, %v2541
    %v2543 = vrot.slane %v2510, %v2542
    %2552 = vmatprep.subr.bf16.mxu0 %v620
    %2553 = vmatpush1.bf16.msra.mxu0 %v619
    %2554 = vmatprep.subr.bf16.mxu0 %v628
    %2555 = vmatpush1.bf16.msra.mxu0 %v627
    %2556 = vmatprep.subr.bf16.mxu0 %v636
    %2557 = vmatpush1.bf16.msra.mxu0 %v635
    %2558 = vmatprep.subr.bf16.mxu0 %v644
    %2559 = vmatpush1.bf16.msra.mxu0 %v643
    %2560 = vmatprep.subr.bf16.mxu0 %v652
    %2561 = vmatpush1.bf16.msra.mxu0 %v651
    %2562 = vmatprep.subr.bf16.mxu0 %v660
    %2563 = vmatpush1.bf16.msra.mxu0 %v659
    %2564 = vmatprep.subr.bf16.mxu0 %v668
    %2565 = vmatpush1.bf16.msra.mxu0 %v667
    %2566 = vmatprep.subr.bf16.mxu0 %v676
    %2567 = vmatpush1.bf16.msra.mxu0 %v675
    %2568 = vmatprep.subr.bf16.mxu0 %v684
    %2569 = vmatpush1.bf16.msra.mxu0 %v683
    %2570 = vmatprep.subr.bf16.mxu0 %v692
    %2571 = vmatpush1.bf16.msra.mxu0 %v691
    %2572 = vmatprep.subr.bf16.mxu0 %v700
    %2573 = vmatpush1.bf16.msra.mxu0 %v699
    %2574 = vmatprep.subr.bf16.mxu0 %v708
    %2575 = vmatpush1.bf16.msra.mxu0 %v707
    %2576 = vmatprep.subr.bf16.mxu0 %v716
    %2577 = vmatpush1.bf16.msra.mxu0 %v715
    %2578 = vmatprep.subr.bf16.mxu0 %v724
    %2579 = vmatpush1.bf16.msra.mxu0 %v723
    %2580 = vmatprep.subr.bf16.mxu0 %v732
    %2581 = vmatpush1.bf16.msra.mxu0 %v731
    %2582 = vmatprep.subr.bf16.mxu0 %v740
    %2583 = vmatpush1.bf16.msra.mxu0 %v739
    %2584 = vmatprep.mubr.bf16.mxu0 %v2507
    %2585 = vmatmul.mubr.bf16.gmra.mrb[0].mxu0 %v2506
    %v2586 = vpop.f32.mrb[0].mxu0
    %v2587 = vadd.f32 %v2515, %v2586
    %v2588 = vpop.f32.mrb[0].mxu0
    %v2589 = vadd.f32 %v2519, %v2588
    %v2590 = vpop.f32.mrb[0].mxu0
    %v2591 = vpop.f32.mrb[0].mxu0
    %2592 = vdwg.mxu0
    %2593 = vmatprep.subr.bf16.mxu0 %v622
    %2594 = vmatpush1.bf16.msra.mxu0 %v621
    %2595 = vmatprep.subr.bf16.mxu0 %v630
    %2596 = vmatpush1.bf16.msra.mxu0 %v629
    %2597 = vmatprep.subr.bf16.mxu0 %v638
    %2598 = vmatpush1.bf16.msra.mxu0 %v637
    %2599 = vmatprep.subr.bf16.mxu0 %v646
    %2600 = vmatpush1.bf16.msra.mxu0 %v645
    %2601 = vmatprep.subr.bf16.mxu0 %v654
    %2602 = vmatpush1.bf16.msra.mxu0 %v653
    %2603 = vmatprep.subr.bf16.mxu0 %v662
    %2604 = vmatpush1.bf16.msra.mxu0 %v661
    %2605 = vmatprep.subr.bf16.mxu0 %v670
    %2606 = vmatpush1.bf16.msra.mxu0 %v669
    %2607 = vmatprep.subr.bf16.mxu0 %v678
    %2608 = vmatpush1.bf16.msra.mxu0 %v677
    %2609 = vmatprep.subr.bf16.mxu0 %v686
    %2610 = vmatpush1.bf16.msra.mxu0 %v685
    %2611 = vmatprep.subr.bf16.mxu0 %v694
    %2612 = vmatpush1.bf16.msra.mxu0 %v693
    %2613 = vmatprep.subr.bf16.mxu0 %v702
    %2614 = vmatpush1.bf16.msra.mxu0 %v701
    %2615 = vmatprep.subr.bf16.mxu0 %v710
    %2616 = vmatpush1.bf16.msra.mxu0 %v709
    %2617 = vmatprep.subr.bf16.mxu0 %v718
    %2618 = vmatpush1.bf16.msra.mxu0 %v717
    %2619 = vmatprep.subr.bf16.mxu0 %v726
    %2620 = vmatpush1.bf16.msra.mxu0 %v725
    %2621 = vmatprep.subr.bf16.mxu0 %v734
    %2622 = vmatpush1.bf16.msra.mxu0 %v733
    %2623 = vmatprep.subr.bf16.mxu0 %v742
    %2624 = vmatpush1.bf16.msra.mxu0 %v741
    %2625 = vmatprep.mubr.bf16.mxu0 %v2507
    %2626 = vmatmul.mubr.bf16.gmra.mrb[0].mxu0 %v2506
    %v2627 = vpop.f32.mrb[0].mxu0
    %v2628 = vadd.f32 %v2523, %v2627
    %v2629 = vpop.f32.mrb[0].mxu0
    %v2630 = vadd.f32 %v2527, %v2629
    %v2631 = vpop.f32.mrb[0].mxu0
    %v2632 = vpop.f32.mrb[0].mxu0
    %2633 = vdwg.mxu0
    %2634 = vmatprep.subr.bf16.mxu0 %v624
    %2635 = vmatpush1.bf16.msra.mxu0 %v623
    %2636 = vmatprep.subr.bf16.mxu0 %v632
    %2637 = vmatpush1.bf16.msra.mxu0 %v631
    %2638 = vmatprep.subr.bf16.mxu0 %v640
    %2639 = vmatpush1.bf16.msra.mxu0 %v639
    %2640 = vmatprep.subr.bf16.mxu0 %v648
    %2641 = vmatpush1.bf16.msra.mxu0 %v647
    %2642 = vmatprep.subr.bf16.mxu0 %v656
    %2643 = vmatpush1.bf16.msra.mxu0 %v655
    %2644 = vmatprep.subr.bf16.mxu0 %v664
    %2645 = vmatpush1.bf16.msra.mxu0 %v663
    %2646 = vmatprep.subr.bf16.mxu0 %v672
    %2647 = vmatpush1.bf16.msra.mxu0 %v671
    %2648 = vmatprep.subr.bf16.mxu0 %v680
    %2649 = vmatpush1.bf16.msra.mxu0 %v679
    %2650 = vmatprep.subr.bf16.mxu0 %v688
    %2651 = vmatpush1.bf16.msra.mxu0 %v687
    %2652 = vmatprep.subr.bf16.mxu0 %v696
    %2653 = vmatpush1.bf16.msra.mxu0 %v695
    %2654 = vmatprep.subr.bf16.mxu0 %v704
    %2655 = vmatpush1.bf16.msra.mxu0 %v703
    %2656 = vmatprep.subr.bf16.mxu0 %v712
    %2657 = vmatpush1.bf16.msra.mxu0 %v711
    %2658 = vmatprep.subr.bf16.mxu0 %v720
    %2659 = vmatpush1.bf16.msra.mxu0 %v719
    %2660 = vmatprep.subr.bf16.mxu0 %v728
    %2661 = vmatpush1.bf16.msra.mxu0 %v727
    %2662 = vmatprep.subr.bf16.mxu0 %v736
    %2663 = vmatpush1.bf16.msra.mxu0 %v735
    %2664 = vmatprep.subr.bf16.mxu0 %v744
    %2665 = vmatpush1.bf16.msra.mxu0 %v743
    %2666 = vmatprep.mubr.bf16.mxu0 %v2507
    %2667 = vmatmul.mubr.bf16.gmra.mrb[0].mxu0 %v2506
    %v2668 = vpop.f32.mrb[0].mxu0
    %v2669 = vadd.f32 %v2531, %v2668
    %v2670 = vpop.f32.mrb[0].mxu0
    %v2671 = vadd.f32 %v2535, %v2670
    %v2672 = vpop.f32.mrb[0].mxu0
    %v2673 = vpop.f32.mrb[0].mxu0
    %2674 = vdwg.mxu0
    %2675 = vmatprep.subr.bf16.mxu0 %v626
    %2676 = vmatpush1.bf16.msra.mxu0 %v625
    %2677 = vmatprep.subr.bf16.mxu0 %v634
    %2678 = vmatpush1.bf16.msra.mxu0 %v633
    %2679 = vmatprep.subr.bf16.mxu0 %v642
    %2680 = vmatpush1.bf16.msra.mxu0 %v641
    %2681 = vmatprep.subr.bf16.mxu0 %v650
    %2682 = vmatpush1.bf16.msra.mxu0 %v649
    %2683 = vmatprep.subr.bf16.mxu0 %v658
    %2684 = vmatpush1.bf16.msra.mxu0 %v657
    %2685 = vmatprep.subr.bf16.mxu0 %v666
    %2686 = vmatpush1.bf16.msra.mxu0 %v665
    %2687 = vmatprep.subr.bf16.mxu0 %v674
    %2688 = vmatpush1.bf16.msra.mxu0 %v673
    %2689 = vmatprep.subr.bf16.mxu0 %v682
    %2690 = vmatpush1.bf16.msra.mxu0 %v681
    %2691 = vmatprep.subr.bf16.mxu0 %v690
    %2692 = vmatpush1.bf16.msra.mxu0 %v689
    %2693 = vmatprep.subr.bf16.mxu0 %v698
    %2694 = vmatpush1.bf16.msra.mxu0 %v697
    %2695 = vmatprep.subr.bf16.mxu0 %v706
    %2696 = vmatpush1.bf16.msra.mxu0 %v705
    %2697 = vmatprep.subr.bf16.mxu0 %v714
    %2698 = vmatpush1.bf16.msra.mxu0 %v713
    %2699 = vmatprep.subr.bf16.mxu0 %v722
    %2700 = vmatpush1.bf16.msra.mxu0 %v721
    %2701 = vmatprep.subr.bf16.mxu0 %v730
    %2702 = vmatpush1.bf16.msra.mxu0 %v729
    %2703 = vmatprep.subr.bf16.mxu0 %v738
    %2704 = vmatpush1.bf16.msra.mxu0 %v737
    %2705 = vmatprep.subr.bf16.mxu0 %v746
    %2706 = vmatpush1.bf16.msra.mxu0 %v745
    %2707 = vmatprep.mubr.bf16.mxu0 %v2507
    %2708 = vmatmul.mubr.bf16.gmra.mrb[0].mxu0 %v2506
    %v2709 = vpop.f32.mrb[0].mxu0
    %v2710 = vadd.f32 %v2539, %v2709
    %v2711 = vpop.f32.mrb[0].mxu0
    %v2712 = vadd.f32 %v2543, %v2711
    %v2713 = vpop.f32.mrb[0].mxu0
    %v2714 = vpop.f32.mrb[0].mxu0
    %2715 = vdwg.mxu0
    %v2716 = vadd.f32 %v2587, %v1083
    %v2717 = vadd.f32 %v2589, %v1087
    %v2718 = vadd.f32 %v2628, %v1091
    %v2719 = vadd.f32 %v2630, %v1095
    %v2720 = vadd.f32 %v2669, %v1099
    %v2721 = vadd.f32 %v2671, %v1103
    %v2722 = vadd.f32 %v2710, %v1107
    %v2723 = vadd.f32 %v2712, %v1111
    %v2724 = vxor.u32 %v2716, 2147483648
    %v2725 = vxor.u32 %v2717, 2147483648
    %v2726 = vmul.f32 %v2724, 1.442695
    %v2727 = vpow.pop %v2726
    %v2728 = vmul.f32 %v2725, 1.442695
    %v2729 = vpow.pop %v2728
    %v2730 = vadd.f32 %v2727, 1.0
    %v2731 = vadd.f32 %v2729, 1.0
    %v2732 = vrcp.pop %v2730
    %v2733 = vmul.f32 1.0, %v2732
    %v2734 = vrcp.pop %v2731
    %v2735 = vmul.f32 1.0, %v2734
    %v2736 = vxor.u32 %v2718, 2147483648
    %v2737 = vxor.u32 %v2719, 2147483648
    %v2738 = vmul.f32 %v2736, 1.442695
    %v2739 = vpow.pop %v2738
    %v2740 = vmul.f32 %v2737, 1.442695
    %v2741 = vpow.pop %v2740
    %v2742 = vadd.f32 %v2739, 1.0
    %v2743 = vadd.f32 %v2741, 1.0
    %v2744 = vrcp.pop %v2742
    %v2745 = vmul.f32 1.0, %v2744
    %v2746 = vrcp.pop %v2743
    %v2747 = vmul.f32 1.0, %v2746
    %v2748 = vtanh.pop %v2720
    %v2749 = vtanh.pop %v2721
    %v2750 = vxor.u32 %v2722, 2147483648
    %v2751 = vxor.u32 %v2723, 2147483648
    %v2752 = vmul.f32 %v2750, 1.442695
    %v2753 = vpow.pop %v2752
    %v2754 = vmul.f32 %v2751, 1.442695
    %v2755 = vpow.pop %v2754
    %v2756 = vadd.f32 %v2753, 1.0
    %v2757 = vadd.f32 %v2755, 1.0
    %v2758 = vrcp.pop %v2756
    %v2759 = vmul.f32 1.0, %v2758
    %v2760 = vrcp.pop %v2757
    %v2761 = vmul.f32 1.0, %v2760
    %v2762 = vmul.f32 %v2745, %v2500
    %v2763 = vmul.f32 %v2747, %v2501
    %v2764 = vmul.f32 %v2733, %v2748
    %v2765 = vmul.f32 %v2735, %v2749
    %v2766 = vadd.f32 %v2762, %v2764
    %v2767 = vadd.f32 %v2763, %v2765
    %v2768 = vtanh.pop %v2766
    %v2769 = vtanh.pop %v2767
    %v2770 = vmul.f32 %v2759, %v2768
    %v2771 = vmul.f32 %v2761, %v2769
    %v2772 = vpack.c.bf16 %v2770, %v2770
    %v2773 = vpack.c.bf16 %v2771, %v2771
    %s2774 = sld [smem:[#allocation2 + $0x8]]
    %v2775 = vstv %s2774
    %v2776 = vmul.f32 %v2775, %v66
    %v2778 = vlaneseq
    %v2779 = vshrl.u32 %v2778, 7
    %v2780 = vsub.s32 1, %v2779
    %v2781 = vrot.slane %v2776, %v2780
    %v2782 = vlaneseq
    %v2783 = vshrl.u32 %v2782, 7
    %v2784 = vsub.s32 3, %v2783
    %v2785 = vrot.slane %v2776, %v2784
    %v2786 = vlaneseq
    %v2787 = vshrl.u32 %v2786, 7
    %v2788 = vsub.s32 5, %v2787
    %v2789 = vrot.slane %v2776, %v2788
    %v2790 = vlaneseq
    %v2791 = vshrl.u32 %v2790, 7
    %v2792 = vsub.s32 7, %v2791
    %v2793 = vrot.slane %v2776, %v2792
    %2798 = vmatprep.subr.bf16.mxu0 %v620
    %2799 = vmatpush1.bf16.msra.mxu0 %v619
    %2800 = vmatprep.subr.bf16.mxu0 %v628
    %2801 = vmatpush1.bf16.msra.mxu0 %v627
    %2802 = vmatprep.subr.bf16.mxu0 %v636
    %2803 = vmatpush1.bf16.msra.mxu0 %v635
    %2804 = vmatprep.subr.bf16.mxu0 %v644
    %2805 = vmatpush1.bf16.msra.mxu0 %v643
    %2806 = vmatprep.subr.bf16.mxu0 %v652
    %2807 = vmatpush1.bf16.msra.mxu0 %v651
    %2808 = vmatprep.subr.bf16.mxu0 %v660
    %2809 = vmatpush1.bf16.msra.mxu0 %v659
    %2810 = vmatprep.subr.bf16.mxu0 %v668
    %2811 = vmatpush1.bf16.msra.mxu0 %v667
    %2812 = vmatprep.subr.bf16.mxu0 %v676
    %2813 = vmatpush1.bf16.msra.mxu0 %v675
    %2814 = vmatprep.subr.bf16.mxu0 %v684
    %2815 = vmatpush1.bf16.msra.mxu0 %v683
    %2816 = vmatprep.subr.bf16.mxu0 %v692
    %2817 = vmatpush1.bf16.msra.mxu0 %v691
    %2818 = vmatprep.subr.bf16.mxu0 %v700
    %2819 = vmatpush1.bf16.msra.mxu0 %v699
    %2820 = vmatprep.subr.bf16.mxu0 %v708
    %2821 = vmatpush1.bf16.msra.mxu0 %v707
    %2822 = vmatprep.subr.bf16.mxu0 %v716
    %2823 = vmatpush1.bf16.msra.mxu0 %v715
    %2824 = vmatprep.subr.bf16.mxu0 %v724
    %2825 = vmatpush1.bf16.msra.mxu0 %v723
    %2826 = vmatprep.subr.bf16.mxu0 %v732
    %2827 = vmatpush1.bf16.msra.mxu0 %v731
    %2828 = vmatprep.subr.bf16.mxu0 %v740
    %2829 = vmatpush1.bf16.msra.mxu0 %v739
    %2830 = vmatprep.mubr.bf16.mxu0 %v2773
    %2831 = vmatmul.mubr.bf16.gmra.mrb[0].mxu0 %v2772
    %v2832 = vpop.f32.mrb[0].mxu0
    %v2833 = vpop.f32.mrb[0].mxu0
    %v2834 = vadd.f32 %v2781, %v2833
    %v2835 = vpop.f32.mrb[0].mxu0
    %v2836 = vpop.f32.mrb[0].mxu0
    %2837 = vdwg.mxu0
    %2838 = vmatprep.subr.bf16.mxu0 %v622
    %2839 = vmatpush1.bf16.msra.mxu0 %v621
    %2840 = vmatprep.subr.bf16.mxu0 %v630
    %2841 = vmatpush1.bf16.msra.mxu0 %v629
    %2842 = vmatprep.subr.bf16.mxu0 %v638
    %2843 = vmatpush1.bf16.msra.mxu0 %v637
    %2844 = vmatprep.subr.bf16.mxu0 %v646
    %2845 = vmatpush1.bf16.msra.mxu0 %v645
    %2846 = vmatprep.subr.bf16.mxu0 %v654
    %2847 = vmatpush1.bf16.msra.mxu0 %v653
    %2848 = vmatprep.subr.bf16.mxu0 %v662
    %2849 = vmatpush1.bf16.msra.mxu0 %v661
    %2850 = vmatprep.subr.bf16.mxu0 %v670
    %2851 = vmatpush1.bf16.msra.mxu0 %v669
    %2852 = vmatprep.subr.bf16.mxu0 %v678
    %2853 = vmatpush1.bf16.msra.mxu0 %v677
    %2854 = vmatprep.subr.bf16.mxu0 %v686
    %2855 = vmatpush1.bf16.msra.mxu0 %v685
    %2856 = vmatprep.subr.bf16.mxu0 %v694
    %2857 = vmatpush1.bf16.msra.mxu0 %v693
    %2858 = vmatprep.subr.bf16.mxu0 %v702
    %2859 = vmatpush1.bf16.msra.mxu0 %v701
    %2860 = vmatprep.subr.bf16.mxu0 %v710
    %2861 = vmatpush1.bf16.msra.mxu0 %v709
    %2862 = vmatprep.subr.bf16.mxu0 %v718
    %2863 = vmatpush1.bf16.msra.mxu0 %v717
    %2864 = vmatprep.subr.bf16.mxu0 %v726
    %2865 = vmatpush1.bf16.msra.mxu0 %v725
    %2866 = vmatprep.subr.bf16.mxu0 %v734
    %2867 = vmatpush1.bf16.msra.mxu0 %v733
    %2868 = vmatprep.subr.bf16.mxu0 %v742
    %2869 = vmatpush1.bf16.msra.mxu0 %v741
    %2870 = vmatprep.mubr.bf16.mxu0 %v2773
    %2871 = vmatmul.mubr.bf16.gmra.mrb[0].mxu0 %v2772
    %v2872 = vpop.f32.mrb[0].mxu0
    %v2873 = vpop.f32.mrb[0].mxu0
    %v2874 = vadd.f32 %v2785, %v2873
    %v2875 = vpop.f32.mrb[0].mxu0
    %v2876 = vpop.f32.mrb[0].mxu0
    %2877 = vdwg.mxu0
    %2878 = vmatprep.subr.bf16.mxu0 %v624
    %2879 = vmatpush1.bf16.msra.mxu0 %v623
    %2880 = vmatprep.subr.bf16.mxu0 %v632
    %2881 = vmatpush1.bf16.msra.mxu0 %v631
    %2882 = vmatprep.subr.bf16.mxu0 %v640
    %2883 = vmatpush1.bf16.msra.mxu0 %v639
    %2884 = vmatprep.subr.bf16.mxu0 %v648
    %2885 = vmatpush1.bf16.msra.mxu0 %v647
    %2886 = vmatprep.subr.bf16.mxu0 %v656
    %2887 = vmatpush1.bf16.msra.mxu0 %v655
    %2888 = vmatprep.subr.bf16.mxu0 %v664
    %2889 = vmatpush1.bf16.msra.mxu0 %v663
    %2890 = vmatprep.subr.bf16.mxu0 %v672
    %2891 = vmatpush1.bf16.msra.mxu0 %v671
    %2892 = vmatprep.subr.bf16.mxu0 %v680
    %2893 = vmatpush1.bf16.msra.mxu0 %v679
    %2894 = vmatprep.subr.bf16.mxu0 %v688
    %2895 = vmatpush1.bf16.msra.mxu0 %v687
    %2896 = vmatprep.subr.bf16.mxu0 %v696
    %2897 = vmatpush1.bf16.msra.mxu0 %v695
    %2898 = vmatprep.subr.bf16.mxu0 %v704
    %2899 = vmatpush1.bf16.msra.mxu0 %v703
    %2900 = vmatprep.subr.bf16.mxu0 %v712
    %2901 = vmatpush1.bf16.msra.mxu0 %v711
    %2902 = vmatprep.subr.bf16.mxu0 %v720
    %2903 = vmatpush1.bf16.msra.mxu0 %v719
    %2904 = vmatprep.subr.bf16.mxu0 %v728
    %2905 = vmatpush1.bf16.msra.mxu0 %v727
    %2906 = vmatprep.subr.bf16.mxu0 %v736
    %2907 = vmatpush1.bf16.msra.mxu0 %v735
    %2908 = vmatprep.subr.bf16.mxu0 %v744
    %2909 = vmatpush1.bf16.msra.mxu0 %v743
    %2910 = vmatprep.mubr.bf16.mxu0 %v2773
    %2911 = vmatmul.mubr.bf16.gmra.mrb[0].mxu0 %v2772
    %v2912 = vpop.f32.mrb[0].mxu0
    %v2913 = vpop.f32.mrb[0].mxu0
    %v2914 = vadd.f32 %v2789, %v2913
    %v2915 = vpop.f32.mrb[0].mxu0
    %v2916 = vpop.f32.mrb[0].mxu0
    %2917 = vdwg.mxu0
    %2918 = vmatprep.subr.bf16.mxu0 %v626
    %2919 = vmatpush1.bf16.msra.mxu0 %v625
    %2920 = vmatprep.subr.bf16.mxu0 %v634
    %2921 = vmatpush1.bf16.msra.mxu0 %v633
    %2922 = vmatprep.subr.bf16.mxu0 %v642
    %2923 = vmatpush1.bf16.msra.mxu0 %v641
    %2924 = vmatprep.subr.bf16.mxu0 %v650
    %2925 = vmatpush1.bf16.msra.mxu0 %v649
    %2926 = vmatprep.subr.bf16.mxu0 %v658
    %2927 = vmatpush1.bf16.msra.mxu0 %v657
    %2928 = vmatprep.subr.bf16.mxu0 %v666
    %2929 = vmatpush1.bf16.msra.mxu0 %v665
    %2930 = vmatprep.subr.bf16.mxu0 %v674
    %2931 = vmatpush1.bf16.msra.mxu0 %v673
    %2932 = vmatprep.subr.bf16.mxu0 %v682
    %2933 = vmatpush1.bf16.msra.mxu0 %v681
    %2934 = vmatprep.subr.bf16.mxu0 %v690
    %2935 = vmatpush1.bf16.msra.mxu0 %v689
    %2936 = vmatprep.subr.bf16.mxu0 %v698
    %2937 = vmatpush1.bf16.msra.mxu0 %v697
    %2938 = vmatprep.subr.bf16.mxu0 %v706
    %2939 = vmatpush1.bf16.msra.mxu0 %v705
    %2940 = vmatprep.subr.bf16.mxu0 %v714
    %2941 = vmatpush1.bf16.msra.mxu0 %v713
    %2942 = vmatprep.subr.bf16.mxu0 %v722
    %2943 = vmatpush1.bf16.msra.mxu0 %v721
    %2944 = vmatprep.subr.bf16.mxu0 %v730
    %2945 = vmatpush1.bf16.msra.mxu0 %v729
    %2946 = vmatprep.subr.bf16.mxu0 %v738
    %2947 = vmatpush1.bf16.msra.mxu0 %v737
    %2948 = vmatprep.subr.bf16.mxu0 %v746
    %2949 = vmatpush1.bf16.msra.mxu0 %v745
    %2950 = vmatprep.mubr.bf16.mxu0 %v2773
    %2951 = vmatmul.mubr.bf16.gmra.mrb[0].mxu0 %v2772
    %v2952 = vpop.f32.mrb[0].mxu0
    %v2953 = vpop.f32.mrb[0].mxu0
    %v2954 = vadd.f32 %v2793, %v2953
    %v2955 = vpop.f32.mrb[0].mxu0
    %v2956 = vpop.f32.mrb[0].mxu0
    %2957 = vdwg.mxu0
    %v2958 = vadd.f32 %v2834, %v1087
    %v2959 = vadd.f32 %v2874, %v1095
    %v2960 = vadd.f32 %v2914, %v1103
    %v2961 = vadd.f32 %v2954, %v1111
    %v2962 = vxor.u32 %v2958, 2147483648
    %v2963 = vmul.f32 %v2962, 1.442695
    %v2964 = vpow.pop %v2963
    %v2965 = vadd.f32 %v2964, 1.0
    %v2966 = vrcp.pop %v2965
    %v2967 = vmul.f32 1.0, %v2966
    %v2968 = vxor.u32 %v2959, 2147483648
    %v2969 = vmul.f32 %v2968, 1.442695
    %v2970 = vpow.pop %v2969
    %v2971 = vadd.f32 %v2970, 1.0
    %v2972 = vrcp.pop %v2971
    %v2973 = vmul.f32 1.0, %v2972
    %v2974 = vtanh.pop %v2960
    %v2975 = vxor.u32 %v2961, 2147483648
    %v2976 = vmul.f32 %v2975, 1.442695
    %v2977 = vpow.pop %v2976
    %v2978 = vadd.f32 %v2977, 1.0
    %v2979 = vrcp.pop %v2978
    %v2980 = vmul.f32 1.0, %v2979
    %v2981 = vmul.f32 %v2973, %v2767
    %v2982 = vmul.f32 %v2967, %v2974
    %v2983 = vadd.f32 %v2981, %v2982
    %v2984 = vtanh.pop %v2983
    %v2985 = vmul.f32 %v2980, %v2984
    %2986 = vst [vmem:[#allocation10] sm:$0x1] %v2985
    // Predicated region
    $region34: #{tpu_custom_call.1} parent=1 // pred_check
      _
    $region35: #{tpu_custom_call.1} parent=1 // pred_check_branch
      %2988 = sbr.rel (0) target = $region37
    $region36: #{tpu_custom_call.1} parent=1 // pred_region
      %s2990 = ssub.s32 16, 16
      %2991 = vsyncadd [#allocation4], %s2990
      %s2993 = sshll.u32 [#allocation10], 4
      %s2994 = int_to_ptr.vmem [resolvable:$true] %s2993
      %2996 = dma.vmem_to_hbm [thread:$0]  %s2994, 16, %s4, [#allocation4]
    $region37: #{tpu_custom_call.1} parent=1 // pred_fallthru
      _
    // Predicated region
    $region38: #{tpu_custom_call.1} parent=1 // pred_check
      _
    $region39: #{tpu_custom_call.1} parent=1 // pred_check_branch
      %2998 = sbr.rel (0) target = $region41
    $region40: #{tpu_custom_call.1} parent=1 // pred_region
      %2999 = dma.done [#allocation4], 16
    $region41: #{tpu_custom_call.1} parent=1 // pred_fallthru
      _
    %3000 = vsyncpa [#allocation3], 1
    %3001 = vsyncpa [#allocation8], 1
    %3002 = vsyncpa [#allocation4], 1
    %3003 = vsyncpa [#allocation5], 1

</llo_original>
